<compile_context>
chip_gen: v6e
topology: v6e:2x2x1
jax: 0.10.0
libtpu: 0.0.40
codegen_flags: <defaults>
</compile_context>

<pallas_src>
import functools

import jax
import jax.numpy as jnp
import numpy as np
from jax import lax
from jax.experimental import pallas as pl
from jax.experimental.pallas import tpu as pltpu

EPS = 1e-5  # nn.LayerNorm default eps


# ----------------------------- in-kernel math -----------------------------
def _layer_norm(x, g, b):
    mu = jnp.mean(x, axis=-1, keepdims=True)
    var = jnp.mean((x - mu) ** 2, axis=-1, keepdims=True)
    return (x - mu) * lax.rsqrt(var + EPS) * g + b


def _gelu_tanh(x):
    # tanh-form GELU: single EUP tanh + a few VALU ops; |err| vs the exact
    # erf GELU < 1e-3, well inside the test tolerance.
    c = 0.7978845608028654  # sqrt(2/pi)
    return 0.5 * x * (1.0 + jnp.tanh(c * (x + 0.044715 * x * x * x)))


# ------------------------------- fused kernel ------------------------------
def _vit_fused_kernel(patches_ref, conv_w_ref, ebias_ref,
                      ln1g_ref, ln1b_ref,
                      wq_ref, wk_ref, wv_ref, bq_ref, bk_ref, bv_ref,
                      wo_ref, bo_ref,
                      ln2g_ref, ln2b_ref, w1_ref, b1_ref, w2_ref, b2_ref,
                      hg_ref, hb_ref, hw_ref, hbias_ref,
                      out_ref, h_scr, *, num_heads):
    l = pl.program_id(1)
    num_layers = pl.num_programs(1)

    # ---- l == 0: patch embedding (conv-as-matmul) + cls token + pos emb ----
    @pl.when(l == 0)
    def _():
        pp = patches_ref[0].astype(jnp.bfloat16)          # (S, C*P*P), row 0 = 0
        h_scr[...] = (jnp.dot(pp, conv_w_ref[...],
                              preferred_element_type=jnp.float32)
                      + ebias_ref[...])                   # bias holds pos (+cls)

    # ---- transformer encoder layer `l` on the VMEM-resident activation ----
    x = h_scr[...]                                        # (S, E) f32
    S, E = x.shape
    dh = E // num_heads
    scale = 1.0 / (dh ** 0.5)

    xn = _layer_norm(x, ln1g_ref[0], ln1b_ref[0])
    xb = xn.astype(jnp.bfloat16)

    attn = jnp.zeros((S, E), jnp.float32)
    for hi in range(num_heads):
        qh = jnp.dot(xb, wq_ref[0, hi],
                     preferred_element_type=jnp.float32) + bq_ref[0, hi]
        kh = jnp.dot(xb, wk_ref[0, hi],
                     preferred_element_type=jnp.float32) + bk_ref[0, hi]
        vh = jnp.dot(xb, wv_ref[0, hi],
                     preferred_element_type=jnp.float32) + bv_ref[0, hi]
        # scores = (q * scale) @ k^T without an explicit transpose op.
        s = lax.dot_general((qh * scale).astype(jnp.bfloat16),
                            kh.astype(jnp.bfloat16),
                            (((1,), (1,)), ((), ())),
                            preferred_element_type=jnp.float32)   # (S, S)
        mx = jnp.max(s, axis=-1, keepdims=True)
        ex = jnp.exp(s - mx)
        pr = ex * pl.reciprocal(jnp.sum(ex, axis=-1, keepdims=True), approx=True)
        oh = jnp.dot(pr.astype(jnp.bfloat16), vh.astype(jnp.bfloat16),
                     preferred_element_type=jnp.float32)          # (S, dh)
        # concat_h(o_h) @ Wo  ==  sum_h o_h @ Wo[h]  -> no lane-offset stores.
        attn = attn + jnp.dot(oh.astype(jnp.bfloat16), wo_ref[0, hi],
                              preferred_element_type=jnp.float32)
    attn = attn + bo_ref[0]

    hn = _layer_norm(attn, ln2g_ref[0], ln2b_ref[0])
    m = jnp.dot(hn.astype(jnp.bfloat16), w1_ref[0],
                preferred_element_type=jnp.float32) + b1_ref[0]
    m = _gelu_tanh(m)
    y = jnp.dot(m.astype(jnp.bfloat16), w2_ref[0],
                preferred_element_type=jnp.float32) + b2_ref[0]
    h_scr[...] = y

    # ---- l == last: classifier head on the cls token ----
    @pl.when(l == num_layers - 1)
    def _():
        cls_tok = h_scr[0:1, :]                           # (1, E)
        c = _layer_norm(cls_tok, hg_ref[...], hb_ref[...])
        out_ref[0] = (jnp.dot(c.astype(jnp.bfloat16), hw_ref[...],
                              preferred_element_type=jnp.float32)
                      + hbias_ref[...])


# ------------------------------- wrappers ----------------------------------
def extract_patches(x, patch):
    # NCHW -> (B, N, C*P*P), flattening order (c, ph, pw) to match Conv2d.
    B, C, H, W = x.shape
    hp, wp = H // patch, W // patch
    x = x.reshape(B, C, hp, patch, wp, patch)
    x = x.transpose(0, 2, 4, 1, 3, 5)                     # (B, hp, wp, C, P, P)
    return x.reshape(B, hp * wp, C * patch * patch)


def _stack(layers, name):
    return jnp.stack([lp[name] for lp in layers])


@functools.partial(jax.jit, static_argnames=("num_heads", "patch"))
def vit_forward(x, params, num_heads, patch):
    bf = jnp.bfloat16
    B = x.shape[0]
    E = params["cls"].shape[-1]
    Hn = num_heads
    dh = E // Hn

    layers = params["layers"]
    L = len(layers)
    M = layers[0]["w1"].shape[1]
    NCLS = params["head_w"].shape[1]

    patches = extract_patches(x, patch)                   # (B, N, CPP)
    N, CPP = patches.shape[1], patches.shape[2]
    S = N + 1
    # Fold the cls token / conv bias / position embedding into one additive
    # bias so the kernel does a single aligned (S,CPP)x(CPP,E) matmul.
    patches_pad = jnp.concatenate(
        [jnp.zeros((B, 1, CPP), patches.dtype), patches], axis=1)   # (B, S, CPP)
    ebias = params["pos"][0] + params["conv_b"][None, :]            # (S, E)
    ebias = ebias.at[0].set(params["pos"][0, 0] + params["cls"][0, 0])

    # Stack per-layer params with a leading L axis; pre-split attention
    # weights per head so the kernel never slices at lane offsets.
    ln1g = _stack(layers, "ln1_g")[:, None, :]                       # (L,1,E)
    ln1b = _stack(layers, "ln1_b")[:, None, :]
    wq = _stack(layers, "wq").reshape(L, E, Hn, dh).transpose(0, 2, 1, 3).astype(bf)
    wk = _stack(layers, "wk").reshape(L, E, Hn, dh).transpose(0, 2, 1, 3).astype(bf)
    wv = _stack(layers, "wv").reshape(L, E, Hn, dh).transpose(0, 2, 1, 3).astype(bf)
    bq = _stack(layers, "bq").reshape(L, Hn, 1, dh)                  # (L,H,1,dh)
    bk = _stack(layers, "bk").reshape(L, Hn, 1, dh)
    bv = _stack(layers, "bv").reshape(L, Hn, 1, dh)
    wo = _stack(layers, "wo").reshape(L, Hn, dh, E).astype(bf)       # (L,H,dh,E)
    bo = _stack(layers, "bo")[:, None, :]                            # (L,1,E)
    ln2g = _stack(layers, "ln2_g")[:, None, :]
    ln2b = _stack(layers, "ln2_b")[:, None, :]
    w1 = _stack(layers, "w1").astype(bf)                             # (L,E,M)
    b1 = _stack(layers, "b1")[:, None, :]                            # (L,1,M)
    w2 = _stack(layers, "w2").astype(bf)                             # (L,M,E)
    b2 = _stack(layers, "b2")[:, None, :]                            # (L,1,E)

    conv_w = params["conv_w"].astype(bf)                             # (CPP,E)
    hg = params["head_ln_g"][None, :]
    hb = params["head_ln_b"][None, :]
    hw = params["head_w"].astype(bf)                                 # (E,NCLS)
    hbias = params["head_b"][None, :]

    def const_spec(a):
        nd = a.ndim
        return pl.BlockSpec(a.shape, lambda b, l, _n=nd: (0,) * _n)

    def layer_spec(a):
        nd = a.ndim
        return pl.BlockSpec((1,) + a.shape[1:],
                            lambda b, l, _n=nd: (l,) + (0,) * (_n - 1))

    kern = functools.partial(_vit_fused_kernel, num_heads=num_heads)

    out = pl.pallas_call(
        kern,
        out_shape=jax.ShapeDtypeStruct((B, 1, NCLS), jnp.float32),
        grid=(B, L),
        in_specs=[
            pl.BlockSpec((1, S, CPP), lambda b, l: (b, 0, 0)),       # patches
            const_spec(conv_w), const_spec(ebias),
            layer_spec(ln1g), layer_spec(ln1b),
            layer_spec(wq), layer_spec(wk), layer_spec(wv),
            layer_spec(bq), layer_spec(bk), layer_spec(bv),
            layer_spec(wo), layer_spec(bo),
            layer_spec(ln2g), layer_spec(ln2b),
            layer_spec(w1), layer_spec(b1), layer_spec(w2), layer_spec(b2),
            const_spec(hg), const_spec(hb), const_spec(hw), const_spec(hbias),
        ],
        out_specs=pl.BlockSpec((1, 1, NCLS), lambda b, l: (b, 0, 0)),
        scratch_shapes=[pltpu.VMEM((S, E), jnp.float32)],
        compiler_params=pltpu.CompilerParams(
            dimension_semantics=("parallel", "arbitrary")),
    )(patches_pad, conv_w, ebias,
      ln1g, ln1b, wq, wk, wv, bq, bk, bv, wo, bo,
      ln2g, ln2b, w1, b1, w2, b2,
      hg, hb, hw, hbias)
    return out.reshape(B, NCLS)


# -------------------------- pure-JAX reference ------------------------------
def ref_forward(x, params, num_heads, patch):
    B = x.shape[0]
    E = params["cls"].shape[-1]
    patches = extract_patches(x, patch)
    pe = patches @ params["conv_w"] + params["conv_b"]
    cls = jnp.broadcast_to(params["cls"], (B, 1, E))
    h = jnp.concatenate([cls, pe], axis=1) + params["pos"]
    for p in params["layers"]:
        hn = _layer_norm(h, p["ln1_g"], p["ln1_b"])
        q = hn @ p["wq"] + p["bq"]
        k = hn @ p["wk"] + p["bk"]
        v = hn @ p["wv"] + p["bv"]
        S = q.shape[1]
        dh = E // num_heads

        def heads(t):
            return t.reshape(B, S, num_heads, dh).transpose(0, 2, 1, 3)

        qh, kh, vh = heads(q), heads(k), heads(v)
        s = (qh / jnp.sqrt(dh)) @ kh.transpose(0, 1, 3, 2)
        a = jax.nn.softmax(s, axis=-1) @ vh
        a = a.transpose(0, 2, 1, 3).reshape(B, S, E)
        attn = a @ p["wo"] + p["bo"]
        hm = _layer_norm(attn, p["ln2_g"], p["ln2_b"])
        m = jax.nn.gelu(hm @ p["w1"] + p["b1"], approximate=False)
        h = m @ p["w2"] + p["b2"]
    cls_tok = h[:, 0]
    hn = _layer_norm(cls_tok, params["head_ln_g"], params["head_ln_b"])
    return hn @ params["head_w"] + params["head_b"]


# ------------------------------- params ------------------------------------
def init_params(key, *, in_channels, patch, embed, mlp, layers, num_classes,
                num_patch):
    ks = iter(jax.random.split(key, 10 + 20 * layers))

    def nrm(shape, scale=0.02):
        return (scale * jax.random.normal(next(ks), shape)).astype(jnp.float32)

    params = {
        "cls": nrm((1, 1, embed), 1.0),                       # class_embedding
        "pos": nrm((1, num_patch + 1, embed), 1.0),           # position_embedding
        "conv_w": nrm((in_channels * patch * patch, embed)),  # Conv2d weight reshaped+T
        "conv_b": nrm((embed,), 0.01),
        "head_ln_g": 1.0 + nrm((embed,), 0.01),
        "head_ln_b": nrm((embed,), 0.01),
        "head_w": nrm((embed, num_classes)),                  # Linear.weight.T
        "head_b": nrm((num_classes,), 0.01),
        "layers": [],
    }
    for _ in range(layers):
        params["layers"].append({
            "ln1_g": 1.0 + nrm((embed,), 0.01),
            "ln1_b": nrm((embed,), 0.01),
            "wq": nrm((embed, embed)),
            "wk": nrm((embed, embed)),
            "wv": nrm((embed, embed)),
            "bq": nrm((embed,), 0.01),
            "bk": nrm((embed,), 0.01),
            "bv": nrm((embed,), 0.01),
            "wo": nrm((embed, embed)),
            "bo": nrm((embed,), 0.01),
            "ln2_g": 1.0 + nrm((embed,), 0.01),
            "ln2_b": nrm((embed,), 0.01),
            "w1": nrm((embed, mlp)),
            "b1": nrm((mlp,), 0.01),
            "w2": nrm((mlp, embed)),
            "b2": nrm((embed,), 0.01),
        })
    return params


# --------------------------------- main -------------------------------------
if __name__ == "__main__":
    # Small ViT: 16x16 image, patch 4, 3 channels -> 16 patches, seq len 17.
    B, C, IMG, P = 2, 3, 16, 4
    E, MLP, HEADS, LAYERS, NCLS = 32, 64, 4, 2, 10
    NPATCH = (IMG // P) ** 2

    key = jax.random.PRNGKey(0)
    kx, kp = jax.random.split(key)
    x = jax.random.normal(kx, (B, C, IMG, IMG), dtype=jnp.float32)
    params = init_params(kp, in_channels=C, patch=P, embed=E, mlp=MLP,
                         layers=LAYERS, num_classes=NCLS, num_patch=NPATCH)

    out = jax.block_until_ready(vit_forward(x, params, num_heads=HEADS, patch=P))
    assert out.shape == (B, NCLS)

    ref = jax.block_until_ready(ref_forward(x, params, HEADS, P))
    err = float(np.max(np.abs(np.asarray(out) - np.asarray(ref))))
    # bf16 matmuls / tanh-GELU / approx reciprocal vs f32 exact reference.
    assert np.allclose(np.asarray(out), np.asarray(ref), atol=2e-2, rtol=2e-2), err

    print("KERNEL_OK")
</pallas_src>

<mosaic_0001>
module attributes {stable_mosaic.version = 11 : i64} {
  func.func @_vit_fused_kernel(%arg0: i32, %arg1: i32, %arg2: memref<1x17x48xf32, #tpu.memory_space<vmem>>, %arg3: memref<48x32xbf16, #tpu.memory_space<vmem>>, %arg4: memref<17x32xf32, #tpu.memory_space<vmem>>, %arg5: memref<1x1x32xf32, #tpu.memory_space<vmem>>, %arg6: memref<1x1x32xf32, #tpu.memory_space<vmem>>, %arg7: memref<1x4x32x8xbf16, #tpu.memory_space<vmem>>, %arg8: memref<1x4x32x8xbf16, #tpu.memory_space<vmem>>, %arg9: memref<1x4x32x8xbf16, #tpu.memory_space<vmem>>, %arg10: memref<1x4x1x8xf32, #tpu.memory_space<vmem>>, %arg11: memref<1x4x1x8xf32, #tpu.memory_space<vmem>>, %arg12: memref<1x4x1x8xf32, #tpu.memory_space<vmem>>, %arg13: memref<1x4x8x32xbf16, #tpu.memory_space<vmem>>, %arg14: memref<1x1x32xf32, #tpu.memory_space<vmem>>, %arg15: memref<1x1x32xf32, #tpu.memory_space<vmem>>, %arg16: memref<1x1x32xf32, #tpu.memory_space<vmem>>, %arg17: memref<1x32x64xbf16, #tpu.memory_space<vmem>>, %arg18: memref<1x1x64xf32, #tpu.memory_space<vmem>>, %arg19: memref<1x64x32xbf16, #tpu.memory_space<vmem>>, %arg20: memref<1x1x32xf32, #tpu.memory_space<vmem>>, %arg21: memref<1x32xf32, #tpu.memory_space<vmem>>, %arg22: memref<1x32xf32, #tpu.memory_space<vmem>>, %arg23: memref<32x10xbf16, #tpu.memory_space<vmem>>, %arg24: memref<1x10xf32, #tpu.memory_space<vmem>>, %arg25: memref<1x1x10xf32, #tpu.memory_space<vmem>>, %arg26: memref<17x32xf32, #tpu.memory_space<vmem>>) attributes {dimension_semantics = [#tpu.dimension_semantics<parallel>, #tpu.dimension_semantics<arbitrary>], iteration_bounds = array<i64: 2, 2>, scalar_prefetch = 0 : i64, scratch_operands = 1 : i64, tpu.core_type = #tpu.core_type<tc>, window_params = [{transform_indices = @transform_0, window_bounds = array<i64: 1, 17, 48>}, {pipeline_mode = #tpu.pipeline_mode<synchronous>, transform_indices = @transform_1, window_bounds = array<i64: 48, 32>}, {pipeline_mode = #tpu.pipeline_mode<synchronous>, transform_indices = @transform_2, window_bounds = array<i64: 17, 32>}, {transform_indices = @transform_3, window_bounds = array<i64: 1, 1, 32>}, {transform_indices = @transform_4, window_bounds = array<i64: 1, 1, 32>}, {transform_indices = @transform_5, window_bounds = array<i64: 1, 4, 32, 8>}, {transform_indices = @transform_6, window_bounds = array<i64: 1, 4, 32, 8>}, {transform_indices = @transform_7, window_bounds = array<i64: 1, 4, 32, 8>}, {transform_indices = @transform_8, window_bounds = array<i64: 1, 4, 1, 8>}, {transform_indices = @transform_9, window_bounds = array<i64: 1, 4, 1, 8>}, {transform_indices = @transform_10, window_bounds = array<i64: 1, 4, 1, 8>}, {transform_indices = @transform_11, window_bounds = array<i64: 1, 4, 8, 32>}, {transform_indices = @transform_12, window_bounds = array<i64: 1, 1, 32>}, {transform_indices = @transform_13, window_bounds = array<i64: 1, 1, 32>}, {transform_indices = @transform_14, window_bounds = array<i64: 1, 1, 32>}, {transform_indices = @transform_15, window_bounds = array<i64: 1, 32, 64>}, {transform_indices = @transform_16, window_bounds = array<i64: 1, 1, 64>}, {transform_indices = @transform_17, window_bounds = array<i64: 1, 64, 32>}, {transform_indices = @transform_18, window_bounds = array<i64: 1, 1, 32>}, {pipeline_mode = #tpu.pipeline_mode<synchronous>, transform_indices = @transform_19, window_bounds = array<i64: 1, 32>}, {pipeline_mode = #tpu.pipeline_mode<synchronous>, transform_indices = @transform_20, window_bounds = array<i64: 1, 32>}, {pipeline_mode = #tpu.pipeline_mode<synchronous>, transform_indices = @transform_21, window_bounds = array<i64: 32, 10>}, {pipeline_mode = #tpu.pipeline_mode<synchronous>, transform_indices = @transform_22, window_bounds = array<i64: 1, 10>}, {transform_indices = @transform_23, window_bounds = array<i64: 1, 1, 10>}]} {
    %c0_i32 = arith.constant 0 : i32
    %0 = arith.cmpi eq, %arg1, %c0_i32 : i32
    %1 = arith.extui %0 : i1 to i32
    %c0_i32_0 = arith.constant 0 : i32
    %2 = arith.cmpi ne, %1, %c0_i32_0 : i32
    scf.if %2 {
      %c0_193 = arith.constant 0 : index
      %c0_194 = arith.constant 0 : index
      %c0_195 = arith.constant 0 : index
      %271 = vector.load %arg2[%c0_193, %c0_194, %c0_195] : memref<1x17x48xf32, #tpu.memory_space<vmem>>, vector<1x17x48xf32>
      %272 = vector.shape_cast %271 : vector<1x17x48xf32> to vector<17x48xf32>
      %273 = arith.truncf %272 : vector<17x48xf32> to vector<17x48xbf16>
      %c0_196 = arith.constant 0 : index
      %c0_197 = arith.constant 0 : index
      %274 = vector.load %arg3[%c0_196, %c0_197] : memref<48x32xbf16, #tpu.memory_space<vmem>>, vector<48x32xbf16>
      %cst_198 = arith.constant dense<0.000000e+00> : vector<17x32xf32>
      %275 = tpu.matmul %273, %274, %cst_198 {dimension_numbers = #tpu.dot_dimension_numbers<[1], [0], [0], [1], [0, 0, 1, 1], [], []>} : vector<17x48xbf16>, vector<48x32xbf16>, vector<17x32xf32> -> vector<17x32xf32>
      %c0_199 = arith.constant 0 : index
      %c0_200 = arith.constant 0 : index
      %276 = vector.load %arg4[%c0_199, %c0_200] : memref<17x32xf32, #tpu.memory_space<vmem>>, vector<17x32xf32>
      %277 = arith.addf %275, %276 : vector<17x32xf32>
      %c0_201 = arith.constant 0 : index
      %c0_202 = arith.constant 0 : index
      %278 = vector.load %arg26[%c0_201, %c0_202] : memref<17x32xf32, #tpu.memory_space<vmem>>, vector<17x32xf32>
      tpu.vector_store %arg26[%c0_201, %c0_202], %277 {strides = array<i32>} : memref<17x32xf32, #tpu.memory_space<vmem>>, vector<17x32xf32>,
    } else {
    }
    %c0 = arith.constant 0 : index
    %c0_1 = arith.constant 0 : index
    %3 = vector.load %arg26[%c0, %c0_1] : memref<17x32xf32, #tpu.memory_space<vmem>>, vector<17x32xf32>
    %c0_2 = arith.constant 0 : index
    %c0_3 = arith.constant 0 : index
    %c0_4 = arith.constant 0 : index
    %4 = vector.load %arg5[%c0_2, %c0_3, %c0_4] : memref<1x1x32xf32, #tpu.memory_space<vmem>>, vector<1x1x32xf32>
    %5 = vector.shape_cast %4 : vector<1x1x32xf32> to vector<1x32xf32>
    %c0_5 = arith.constant 0 : index
    %c0_6 = arith.constant 0 : index
    %c0_7 = arith.constant 0 : index
    %6 = vector.load %arg6[%c0_5, %c0_6, %c0_7] : memref<1x1x32xf32, #tpu.memory_space<vmem>>, vector<1x1x32xf32>
    %7 = vector.shape_cast %6 : vector<1x1x32xf32> to vector<1x32xf32>
    %cst = arith.constant dense<0.000000e+00> : vector<17xf32>
    %8 = vector.multi_reduction <add>, %3, %cst [1] : vector<17x32xf32> to vector<17xf32>
    %9 = vector.shape_cast %8 : vector<17xf32> to vector<17x1xf32>
    %cst_8 = arith.constant 3.200000e+01 : f32
    %10 = vector.broadcast %cst_8 : f32 to vector<17x1xf32>
    %11 = arith.divf %9, %10 : vector<17x1xf32>
    %12 = vector.broadcast %11 : vector<17x1xf32> to vector<17x32xf32>
    %13 = arith.subf %3, %12 : vector<17x32xf32>
    %14 = arith.mulf %13, %13 : vector<17x32xf32>
    %cst_9 = arith.constant dense<0.000000e+00> : vector<17xf32>
    %15 = vector.multi_reduction <add>, %14, %cst_9 [1] : vector<17x32xf32> to vector<17xf32>
    %16 = vector.shape_cast %15 : vector<17xf32> to vector<17x1xf32>
    %cst_10 = arith.constant 3.200000e+01 : f32
    %17 = vector.broadcast %cst_10 : f32 to vector<17x1xf32>
    %18 = arith.divf %16, %17 : vector<17x1xf32>
    %19 = vector.broadcast %11 : vector<17x1xf32> to vector<17x32xf32>
    %20 = arith.subf %3, %19 : vector<17x32xf32>
    %cst_11 = arith.constant 9.99999974E-6 : f32
    %21 = vector.broadcast %cst_11 : f32 to vector<17x1xf32>
    %22 = arith.addf %18, %21 : vector<17x1xf32>
    %23 = math.rsqrt %22 : vector<17x1xf32>
    %24 = vector.broadcast %23 : vector<17x1xf32> to vector<17x32xf32>
    %25 = arith.mulf %20, %24 : vector<17x32xf32>
    %26 = vector.broadcast %5 : vector<1x32xf32> to vector<17x32xf32>
    %27 = arith.mulf %25, %26 : vector<17x32xf32>
    %28 = vector.broadcast %7 : vector<1x32xf32> to vector<17x32xf32>
    %29 = arith.addf %27, %28 : vector<17x32xf32>
    %30 = arith.truncf %29 : vector<17x32xf32> to vector<17x32xbf16>
    %cst_12 = arith.constant 0.000000e+00 : f32
    %31 = vector.broadcast %cst_12 : f32 to vector<17x32xf32>
    %c0_13 = arith.constant 0 : index
    %c0_14 = arith.constant 0 : index
    %c0_15 = arith.constant 0 : index
    %c0_16 = arith.constant 0 : index
    %32 = vector.load %arg7[%c0_13, %c0_14, %c0_15, %c0_16] : memref<1x4x32x8xbf16, #tpu.memory_space<vmem>>, vector<1x1x32x8xbf16>
    %33 = vector.shape_cast %32 : vector<1x1x32x8xbf16> to vector<32x8xbf16>
    %cst_17 = arith.constant dense<0.000000e+00> : vector<17x8xf32>
    %34 = tpu.matmul %30, %33, %cst_17 {dimension_numbers = #tpu.dot_dimension_numbers<[1], [0], [0], [1], [0, 0, 1, 1], [], []>} : vector<17x32xbf16>, vector<32x8xbf16>, vector<17x8xf32> -> vector<17x8xf32>
    %c0_18 = arith.constant 0 : index
    %c0_19 = arith.constant 0 : index
    %c0_20 = arith.constant 0 : index
    %c0_21 = arith.constant 0 : index
    %35 = vector.load %arg10[%c0_18, %c0_19, %c0_20, %c0_21] : memref<1x4x1x8xf32, #tpu.memory_space<vmem>>, vector<1x1x1x8xf32>
    %36 = vector.shape_cast %35 : vector<1x1x1x8xf32> to vector<1x8xf32>
    %37 = vector.broadcast %36 : vector<1x8xf32> to vector<17x8xf32>
    %38 = arith.addf %34, %37 : vector<17x8xf32>
    %c0_22 = arith.constant 0 : index
    %c0_23 = arith.constant 0 : index
    %c0_24 = arith.constant 0 : index
    %c0_25 = arith.constant 0 : index
    %39 = vector.load %arg8[%c0_22, %c0_23, %c0_24, %c0_25] : memref<1x4x32x8xbf16, #tpu.memory_space<vmem>>, vector<1x1x32x8xbf16>
    %40 = vector.shape_cast %39 : vector<1x1x32x8xbf16> to vector<32x8xbf16>
    %cst_26 = arith.constant dense<0.000000e+00> : vector<17x8xf32>
    %41 = tpu.matmul %30, %40, %cst_26 {dimension_numbers = #tpu.dot_dimension_numbers<[1], [0], [0], [1], [0, 0, 1, 1], [], []>} : vector<17x32xbf16>, vector<32x8xbf16>, vector<17x8xf32> -> vector<17x8xf32>
    %c0_27 = arith.constant 0 : index
    %c0_28 = arith.constant 0 : index
    %c0_29 = arith.constant 0 : index
    %c0_30 = arith.constant 0 : index
    %42 = vector.load %arg11[%c0_27, %c0_28, %c0_29, %c0_30] : memref<1x4x1x8xf32, #tpu.memory_space<vmem>>, vector<1x1x1x8xf32>
    %43 = vector.shape_cast %42 : vector<1x1x1x8xf32> to vector<1x8xf32>
    %44 = vector.broadcast %43 : vector<1x8xf32> to vector<17x8xf32>
    %45 = arith.addf %41, %44 : vector<17x8xf32>
    %c0_31 = arith.constant 0 : index
    %c0_32 = arith.constant 0 : index
    %c0_33 = arith.constant 0 : index
    %c0_34 = arith.constant 0 : index
    %46 = vector.load %arg9[%c0_31, %c0_32, %c0_33, %c0_34] : memref<1x4x32x8xbf16, #tpu.memory_space<vmem>>, vector<1x1x32x8xbf16>
    %47 = vector.shape_cast %46 : vector<1x1x32x8xbf16> to vector<32x8xbf16>
    %cst_35 = arith.constant dense<0.000000e+00> : vector<17x8xf32>
    %48 = tpu.matmul %30, %47, %cst_35 {dimension_numbers = #tpu.dot_dimension_numbers<[1], [0], [0], [1], [0, 0, 1, 1], [], []>} : vector<17x32xbf16>, vector<32x8xbf16>, vector<17x8xf32> -> vector<17x8xf32>
    %c0_36 = arith.constant 0 : index
    %c0_37 = arith.constant 0 : index
    %c0_38 = arith.constant 0 : index
    %c0_39 = arith.constant 0 : index
    %49 = vector.load %arg12[%c0_36, %c0_37, %c0_38, %c0_39] : memref<1x4x1x8xf32, #tpu.memory_space<vmem>>, vector<1x1x1x8xf32>
    %50 = vector.shape_cast %49 : vector<1x1x1x8xf32> to vector<1x8xf32>
    %51 = vector.broadcast %50 : vector<1x8xf32> to vector<17x8xf32>
    %52 = arith.addf %48, %51 : vector<17x8xf32>
    %cst_40 = arith.constant 0.353553385 : f32
    %53 = vector.broadcast %cst_40 : f32 to vector<17x8xf32>
    %54 = arith.mulf %38, %53 : vector<17x8xf32>
    %55 = arith.truncf %54 : vector<17x8xf32> to vector<17x8xbf16>
    %56 = arith.truncf %45 : vector<17x8xf32> to vector<17x8xbf16>
    %cst_41 = arith.constant dense<0.000000e+00> : vector<17x17xf32>
    %57 = tpu.matmul %55, %56, %cst_41 {dimension_numbers = #tpu.dot_dimension_numbers<[1], [1], [0], [0], [0, 0, 1, 0], [], []>} : vector<17x8xbf16>, vector<17x8xbf16>, vector<17x17xf32> -> vector<17x17xf32>
    %cst_42 = arith.constant dense<0xFF800000> : vector<17xf32>
    %58 = vector.multi_reduction <maximumf>, %57, %cst_42 [1] : vector<17x17xf32> to vector<17xf32>
    %59 = vector.shape_cast %58 : vector<17xf32> to vector<17x1xf32>
    %60 = vector.broadcast %59 : vector<17x1xf32> to vector<17x17xf32>
    %61 = arith.subf %57, %60 : vector<17x17xf32>
    %62 = math.exp %61 : vector<17x17xf32>
    %cst_43 = arith.constant dense<0.000000e+00> : vector<17xf32>
    %63 = vector.multi_reduction <add>, %62, %cst_43 [1] : vector<17x17xf32> to vector<17xf32>
    %64 = vector.shape_cast %63 : vector<17xf32> to vector<17x1xf32>
    %65 = tpu.reciprocal %64 {approx = true} : vector<17x1xf32> -> vector<17x1xf32>
    %66 = vector.broadcast %65 : vector<17x1xf32> to vector<17x17xf32>
    %67 = arith.mulf %62, %66 : vector<17x17xf32>
    %68 = arith.truncf %67 : vector<17x17xf32> to vector<17x17xbf16>
    %69 = arith.truncf %52 : vector<17x8xf32> to vector<17x8xbf16>
    %cst_44 = arith.constant dense<0.000000e+00> : vector<17x8xf32>
    %70 = tpu.matmul %68, %69, %cst_44 {dimension_numbers = #tpu.dot_dimension_numbers<[1], [0], [0], [1], [0, 0, 1, 1], [], []>} : vector<17x17xbf16>, vector<17x8xbf16>, vector<17x8xf32> -> vector<17x8xf32>
    %71 = arith.truncf %70 : vector<17x8xf32> to vector<17x8xbf16>
    %c0_45 = arith.constant 0 : index
    %c0_46 = arith.constant 0 : index
    %c0_47 = arith.constant 0 : index
    %c0_48 = arith.constant 0 : index
    %72 = vector.load %arg13[%c0_45, %c0_46, %c0_47, %c0_48] : memref<1x4x8x32xbf16, #tpu.memory_space<vmem>>, vector<1x1x8x32xbf16>
    %73 = vector.shape_cast %72 : vector<1x1x8x32xbf16> to vector<8x32xbf16>
    %cst_49 = arith.constant dense<0.000000e+00> : vector<17x32xf32>
    %74 = tpu.matmul %71, %73, %cst_49 {dimension_numbers = #tpu.dot_dimension_numbers<[1], [0], [0], [1], [0, 0, 1, 1], [], []>} : vector<17x8xbf16>, vector<8x32xbf16>, vector<17x32xf32> -> vector<17x32xf32>
    %75 = arith.addf %31, %74 : vector<17x32xf32>
    %c0_50 = arith.constant 0 : index
    %c1 = arith.constant 1 : index
    %c0_51 = arith.constant 0 : index
    %c0_52 = arith.constant 0 : index
    %76 = vector.load %arg7[%c0_50, %c1, %c0_51, %c0_52] : memref<1x4x32x8xbf16, #tpu.memory_space<vmem>>, vector<1x1x32x8xbf16>
    %77 = vector.shape_cast %76 : vector<1x1x32x8xbf16> to vector<32x8xbf16>
    %cst_53 = arith.constant dense<0.000000e+00> : vector<17x8xf32>
    %78 = tpu.matmul %30, %77, %cst_53 {dimension_numbers = #tpu.dot_dimension_numbers<[1], [0], [0], [1], [0, 0, 1, 1], [], []>} : vector<17x32xbf16>, vector<32x8xbf16>, vector<17x8xf32> -> vector<17x8xf32>
    %c0_54 = arith.constant 0 : index
    %c1_55 = arith.constant 1 : index
    %c0_56 = arith.constant 0 : index
    %c0_57 = arith.constant 0 : index
    %79 = vector.load %arg10[%c0_54, %c1_55, %c0_56, %c0_57] : memref<1x4x1x8xf32, #tpu.memory_space<vmem>>, vector<1x1x1x8xf32>
    %80 = vector.shape_cast %79 : vector<1x1x1x8xf32> to vector<1x8xf32>
    %81 = vector.broadcast %80 : vector<1x8xf32> to vector<17x8xf32>
    %82 = arith.addf %78, %81 : vector<17x8xf32>
    %c0_58 = arith.constant 0 : index
    %c1_59 = arith.constant 1 : index
    %c0_60 = arith.constant 0 : index
    %c0_61 = arith.constant 0 : index
    %83 = vector.load %arg8[%c0_58, %c1_59, %c0_60, %c0_61] : memref<1x4x32x8xbf16, #tpu.memory_space<vmem>>, vector<1x1x32x8xbf16>
    %84 = vector.shape_cast %83 : vector<1x1x32x8xbf16> to vector<32x8xbf16>
    %cst_62 = arith.constant dense<0.000000e+00> : vector<17x8xf32>
    %85 = tpu.matmul %30, %84, %cst_62 {dimension_numbers = #tpu.dot_dimension_numbers<[1], [0], [0], [1], [0, 0, 1, 1], [], []>} : vector<17x32xbf16>, vector<32x8xbf16>, vector<17x8xf32> -> vector<17x8xf32>
    %c0_63 = arith.constant 0 : index
    %c1_64 = arith.constant 1 : index
    %c0_65 = arith.constant 0 : index
    %c0_66 = arith.constant 0 : index
    %86 = vector.load %arg11[%c0_63, %c1_64, %c0_65, %c0_66] : memref<1x4x1x8xf32, #tpu.memory_space<vmem>>, vector<1x1x1x8xf32>
    %87 = vector.shape_cast %86 : vector<1x1x1x8xf32> to vector<1x8xf32>
    %88 = vector.broadcast %87 : vector<1x8xf32> to vector<17x8xf32>
    %89 = arith.addf %85, %88 : vector<17x8xf32>
    %c0_67 = arith.constant 0 : index
    %c1_68 = arith.constant 1 : index
    %c0_69 = arith.constant 0 : index
    %c0_70 = arith.constant 0 : index
    %90 = vector.load %arg9[%c0_67, %c1_68, %c0_69, %c0_70] : memref<1x4x32x8xbf16, #tpu.memory_space<vmem>>, vector<1x1x32x8xbf16>
    %91 = vector.shape_cast %90 : vector<1x1x32x8xbf16> to vector<32x8xbf16>
    %cst_71 = arith.constant dense<0.000000e+00> : vector<17x8xf32>
    %92 = tpu.matmul %30, %91, %cst_71 {dimension_numbers = #tpu.dot_dimension_numbers<[1], [0], [0], [1], [0, 0, 1, 1], [], []>} : vector<17x32xbf16>, vector<32x8xbf16>, vector<17x8xf32> -> vector<17x8xf32>
    %c0_72 = arith.constant 0 : index
    %c1_73 = arith.constant 1 : index
    %c0_74 = arith.constant 0 : index
    %c0_75 = arith.constant 0 : index
    %93 = vector.load %arg12[%c0_72, %c1_73, %c0_74, %c0_75] : memref<1x4x1x8xf32, #tpu.memory_space<vmem>>, vector<1x1x1x8xf32>
    %94 = vector.shape_cast %93 : vector<1x1x1x8xf32> to vector<1x8xf32>
    %95 = vector.broadcast %94 : vector<1x8xf32> to vector<17x8xf32>
    %96 = arith.addf %92, %95 : vector<17x8xf32>
    %cst_76 = arith.constant 0.353553385 : f32
    %97 = vector.broadcast %cst_76 : f32 to vector<17x8xf32>
    %98 = arith.mulf %82, %97 : vector<17x8xf32>
    %99 = arith.truncf %98 : vector<17x8xf32> to vector<17x8xbf16>
    %100 = arith.truncf %89 : vector<17x8xf32> to vector<17x8xbf16>
    %cst_77 = arith.constant dense<0.000000e+00> : vector<17x17xf32>
    %101 = tpu.matmul %99, %100, %cst_77 {dimension_numbers = #tpu.dot_dimension_numbers<[1], [1], [0], [0], [0, 0, 1, 0], [], []>} : vector<17x8xbf16>, vector<17x8xbf16>, vector<17x17xf32> -> vector<17x17xf32>
    %cst_78 = arith.constant dense<0xFF800000> : vector<17xf32>
    %102 = vector.multi_reduction <maximumf>, %101, %cst_78 [1] : vector<17x17xf32> to vector<17xf32>
    %103 = vector.shape_cast %102 : vector<17xf32> to vector<17x1xf32>
    %104 = vector.broadcast %103 : vector<17x1xf32> to vector<17x17xf32>
    %105 = arith.subf %101, %104 : vector<17x17xf32>
    %106 = math.exp %105 : vector<17x17xf32>
    %cst_79 = arith.constant dense<0.000000e+00> : vector<17xf32>
    %107 = vector.multi_reduction <add>, %106, %cst_79 [1] : vector<17x17xf32> to vector<17xf32>
    %108 = vector.shape_cast %107 : vector<17xf32> to vector<17x1xf32>
    %109 = tpu.reciprocal %108 {approx = true} : vector<17x1xf32> -> vector<17x1xf32>
    %110 = vector.broadcast %109 : vector<17x1xf32> to vector<17x17xf32>
    %111 = arith.mulf %106, %110 : vector<17x17xf32>
    %112 = arith.truncf %111 : vector<17x17xf32> to vector<17x17xbf16>
    %113 = arith.truncf %96 : vector<17x8xf32> to vector<17x8xbf16>
    %cst_80 = arith.constant dense<0.000000e+00> : vector<17x8xf32>
    %114 = tpu.matmul %112, %113, %cst_80 {dimension_numbers = #tpu.dot_dimension_numbers<[1], [0], [0], [1], [0, 0, 1, 1], [], []>} : vector<17x17xbf16>, vector<17x8xbf16>, vector<17x8xf32> -> vector<17x8xf32>
    %115 = arith.truncf %114 : vector<17x8xf32> to vector<17x8xbf16>
    %c0_81 = arith.constant 0 : index
    %c1_82 = arith.constant 1 : index
    %c0_83 = arith.constant 0 : index
    %c0_84 = arith.constant 0 : index
    %116 = vector.load %arg13[%c0_81, %c1_82, %c0_83, %c0_84] : memref<1x4x8x32xbf16, #tpu.memory_space<vmem>>, vector<1x1x8x32xbf16>
    %117 = vector.shape_cast %116 : vector<1x1x8x32xbf16> to vector<8x32xbf16>
    %cst_85 = arith.constant dense<0.000000e+00> : vector<17x32xf32>
    %118 = tpu.matmul %115, %117, %cst_85 {dimension_numbers = #tpu.dot_dimension_numbers<[1], [0], [0], [1], [0, 0, 1, 1], [], []>} : vector<17x8xbf16>, vector<8x32xbf16>, vector<17x32xf32> -> vector<17x32xf32>
    %119 = arith.addf %75, %118 : vector<17x32xf32>
    %c0_86 = arith.constant 0 : index
    %c2 = arith.constant 2 : index
    %c0_87 = arith.constant 0 : index
    %c0_88 = arith.constant 0 : index
    %120 = vector.load %arg7[%c0_86, %c2, %c0_87, %c0_88] : memref<1x4x32x8xbf16, #tpu.memory_space<vmem>>, vector<1x1x32x8xbf16>
    %121 = vector.shape_cast %120 : vector<1x1x32x8xbf16> to vector<32x8xbf16>
    %cst_89 = arith.constant dense<0.000000e+00> : vector<17x8xf32>
    %122 = tpu.matmul %30, %121, %cst_89 {dimension_numbers = #tpu.dot_dimension_numbers<[1], [0], [0], [1], [0, 0, 1, 1], [], []>} : vector<17x32xbf16>, vector<32x8xbf16>, vector<17x8xf32> -> vector<17x8xf32>
    %c0_90 = arith.constant 0 : index
    %c2_91 = arith.constant 2 : index
    %c0_92 = arith.constant 0 : index
    %c0_93 = arith.constant 0 : index
    %123 = vector.load %arg10[%c0_90, %c2_91, %c0_92, %c0_93] : memref<1x4x1x8xf32, #tpu.memory_space<vmem>>, vector<1x1x1x8xf32>
    %124 = vector.shape_cast %123 : vector<1x1x1x8xf32> to vector<1x8xf32>
    %125 = vector.broadcast %124 : vector<1x8xf32> to vector<17x8xf32>
    %126 = arith.addf %122, %125 : vector<17x8xf32>
    %c0_94 = arith.constant 0 : index
    %c2_95 = arith.constant 2 : index
    %c0_96 = arith.constant 0 : index
    %c0_97 = arith.constant 0 : index
    %127 = vector.load %arg8[%c0_94, %c2_95, %c0_96, %c0_97] : memref<1x4x32x8xbf16, #tpu.memory_space<vmem>>, vector<1x1x32x8xbf16>
    %128 = vector.shape_cast %127 : vector<1x1x32x8xbf16> to vector<32x8xbf16>
    %cst_98 = arith.constant dense<0.000000e+00> : vector<17x8xf32>
    %129 = tpu.matmul %30, %128, %cst_98 {dimension_numbers = #tpu.dot_dimension_numbers<[1], [0], [0], [1], [0, 0, 1, 1], [], []>} : vector<17x32xbf16>, vector<32x8xbf16>, vector<17x8xf32> -> vector<17x8xf32>
    %c0_99 = arith.constant 0 : index
    %c2_100 = arith.constant 2 : index
    %c0_101 = arith.constant 0 : index
    %c0_102 = arith.constant 0 : index
    %130 = vector.load %arg11[%c0_99, %c2_100, %c0_101, %c0_102] : memref<1x4x1x8xf32, #tpu.memory_space<vmem>>, vector<1x1x1x8xf32>
    %131 = vector.shape_cast %130 : vector<1x1x1x8xf32> to vector<1x8xf32>
    %132 = vector.broadcast %131 : vector<1x8xf32> to vector<17x8xf32>
    %133 = arith.addf %129, %132 : vector<17x8xf32>
    %c0_103 = arith.constant 0 : index
    %c2_104 = arith.constant 2 : index
    %c0_105 = arith.constant 0 : index
    %c0_106 = arith.constant 0 : index
    %134 = vector.load %arg9[%c0_103, %c2_104, %c0_105, %c0_106] : memref<1x4x32x8xbf16, #tpu.memory_space<vmem>>, vector<1x1x32x8xbf16>
    %135 = vector.shape_cast %134 : vector<1x1x32x8xbf16> to vector<32x8xbf16>
    %cst_107 = arith.constant dense<0.000000e+00> : vector<17x8xf32>
    %136 = tpu.matmul %30, %135, %cst_107 {dimension_numbers = #tpu.dot_dimension_numbers<[1], [0], [0], [1], [0, 0, 1, 1], [], []>} : vector<17x32xbf16>, vector<32x8xbf16>, vector<17x8xf32> -> vector<17x8xf32>
    %c0_108 = arith.constant 0 : index
    %c2_109 = arith.constant 2 : index
    %c0_110 = arith.constant 0 : index
    %c0_111 = arith.constant 0 : index
    %137 = vector.load %arg12[%c0_108, %c2_109, %c0_110, %c0_111] : memref<1x4x1x8xf32, #tpu.memory_space<vmem>>, vector<1x1x1x8xf32>
    %138 = vector.shape_cast %137 : vector<1x1x1x8xf32> to vector<1x8xf32>
    %139 = vector.broadcast %138 : vector<1x8xf32> to vector<17x8xf32>
    %140 = arith.addf %136, %139 : vector<17x8xf32>
    %cst_112 = arith.constant 0.353553385 : f32
    %141 = vector.broadcast %cst_112 : f32 to vector<17x8xf32>
    %142 = arith.mulf %126, %141 : vector<17x8xf32>
    %143 = arith.truncf %142 : vector<17x8xf32> to vector<17x8xbf16>
    %144 = arith.truncf %133 : vector<17x8xf32> to vector<17x8xbf16>
    %cst_113 = arith.constant dense<0.000000e+00> : vector<17x17xf32>
    %145 = tpu.matmul %143, %144, %cst_113 {dimension_numbers = #tpu.dot_dimension_numbers<[1], [1], [0], [0], [0, 0, 1, 0], [], []>} : vector<17x8xbf16>, vector<17x8xbf16>, vector<17x17xf32> -> vector<17x17xf32>
    %cst_114 = arith.constant dense<0xFF800000> : vector<17xf32>
    %146 = vector.multi_reduction <maximumf>, %145, %cst_114 [1] : vector<17x17xf32> to vector<17xf32>
    %147 = vector.shape_cast %146 : vector<17xf32> to vector<17x1xf32>
    %148 = vector.broadcast %147 : vector<17x1xf32> to vector<17x17xf32>
    %149 = arith.subf %145, %148 : vector<17x17xf32>
    %150 = math.exp %149 : vector<17x17xf32>
    %cst_115 = arith.constant dense<0.000000e+00> : vector<17xf32>
    %151 = vector.multi_reduction <add>, %150, %cst_115 [1] : vector<17x17xf32> to vector<17xf32>
    %152 = vector.shape_cast %151 : vector<17xf32> to vector<17x1xf32>
    %153 = tpu.reciprocal %152 {approx = true} : vector<17x1xf32> -> vector<17x1xf32>
    %154 = vector.broadcast %153 : vector<17x1xf32> to vector<17x17xf32>
    %155 = arith.mulf %150, %154 : vector<17x17xf32>
    %156 = arith.truncf %155 : vector<17x17xf32> to vector<17x17xbf16>
    %157 = arith.truncf %140 : vector<17x8xf32> to vector<17x8xbf16>
    %cst_116 = arith.constant dense<0.000000e+00> : vector<17x8xf32>
    %158 = tpu.matmul %156, %157, %cst_116 {dimension_numbers = #tpu.dot_dimension_numbers<[1], [0], [0], [1], [0, 0, 1, 1], [], []>} : vector<17x17xbf16>, vector<17x8xbf16>, vector<17x8xf32> -> vector<17x8xf32>
    %159 = arith.truncf %158 : vector<17x8xf32> to vector<17x8xbf16>
    %c0_117 = arith.constant 0 : index
    %c2_118 = arith.constant 2 : index
    %c0_119 = arith.constant 0 : index
    %c0_120 = arith.constant 0 : index
    %160 = vector.load %arg13[%c0_117, %c2_118, %c0_119, %c0_120] : memref<1x4x8x32xbf16, #tpu.memory_space<vmem>>, vector<1x1x8x32xbf16>
    %161 = vector.shape_cast %160 : vector<1x1x8x32xbf16> to vector<8x32xbf16>
    %cst_121 = arith.constant dense<0.000000e+00> : vector<17x32xf32>
    %162 = tpu.matmul %159, %161, %cst_121 {dimension_numbers = #tpu.dot_dimension_numbers<[1], [0], [0], [1], [0, 0, 1, 1], [], []>} : vector<17x8xbf16>, vector<8x32xbf16>, vector<17x32xf32> -> vector<17x32xf32>
    %163 = arith.addf %119, %162 : vector<17x32xf32>
    %c0_122 = arith.constant 0 : index
    %c3 = arith.constant 3 : index
    %c0_123 = arith.constant 0 : index
    %c0_124 = arith.constant 0 : index
    %164 = vector.load %arg7[%c0_122, %c3, %c0_123, %c0_124] : memref<1x4x32x8xbf16, #tpu.memory_space<vmem>>, vector<1x1x32x8xbf16>
    %165 = vector.shape_cast %164 : vector<1x1x32x8xbf16> to vector<32x8xbf16>
    %cst_125 = arith.constant dense<0.000000e+00> : vector<17x8xf32>
    %166 = tpu.matmul %30, %165, %cst_125 {dimension_numbers = #tpu.dot_dimension_numbers<[1], [0], [0], [1], [0, 0, 1, 1], [], []>} : vector<17x32xbf16>, vector<32x8xbf16>, vector<17x8xf32> -> vector<17x8xf32>
    %c0_126 = arith.constant 0 : index
    %c3_127 = arith.constant 3 : index
    %c0_128 = arith.constant 0 : index
    %c0_129 = arith.constant 0 : index
    %167 = vector.load %arg10[%c0_126, %c3_127, %c0_128, %c0_129] : memref<1x4x1x8xf32, #tpu.memory_space<vmem>>, vector<1x1x1x8xf32>
    %168 = vector.shape_cast %167 : vector<1x1x1x8xf32> to vector<1x8xf32>
    %169 = vector.broadcast %168 : vector<1x8xf32> to vector<17x8xf32>
    %170 = arith.addf %166, %169 : vector<17x8xf32>
    %c0_130 = arith.constant 0 : index
    %c3_131 = arith.constant 3 : index
    %c0_132 = arith.constant 0 : index
    %c0_133 = arith.constant 0 : index
    %171 = vector.load %arg8[%c0_130, %c3_131, %c0_132, %c0_133] : memref<1x4x32x8xbf16, #tpu.memory_space<vmem>>, vector<1x1x32x8xbf16>
    %172 = vector.shape_cast %171 : vector<1x1x32x8xbf16> to vector<32x8xbf16>
    %cst_134 = arith.constant dense<0.000000e+00> : vector<17x8xf32>
    %173 = tpu.matmul %30, %172, %cst_134 {dimension_numbers = #tpu.dot_dimension_numbers<[1], [0], [0], [1], [0, 0, 1, 1], [], []>} : vector<17x32xbf16>, vector<32x8xbf16>, vector<17x8xf32> -> vector<17x8xf32>
    %c0_135 = arith.constant 0 : index
    %c3_136 = arith.constant 3 : index
    %c0_137 = arith.constant 0 : index
    %c0_138 = arith.constant 0 : index
    %174 = vector.load %arg11[%c0_135, %c3_136, %c0_137, %c0_138] : memref<1x4x1x8xf32, #tpu.memory_space<vmem>>, vector<1x1x1x8xf32>
    %175 = vector.shape_cast %174 : vector<1x1x1x8xf32> to vector<1x8xf32>
    %176 = vector.broadcast %175 : vector<1x8xf32> to vector<17x8xf32>
    %177 = arith.addf %173, %176 : vector<17x8xf32>
    %c0_139 = arith.constant 0 : index
    %c3_140 = arith.constant 3 : index
    %c0_141 = arith.constant 0 : index
    %c0_142 = arith.constant 0 : index
    %178 = vector.load %arg9[%c0_139, %c3_140, %c0_141, %c0_142] : memref<1x4x32x8xbf16, #tpu.memory_space<vmem>>, vector<1x1x32x8xbf16>
    %179 = vector.shape_cast %178 : vector<1x1x32x8xbf16> to vector<32x8xbf16>
    %cst_143 = arith.constant dense<0.000000e+00> : vector<17x8xf32>
    %180 = tpu.matmul %30, %179, %cst_143 {dimension_numbers = #tpu.dot_dimension_numbers<[1], [0], [0], [1], [0, 0, 1, 1], [], []>} : vector<17x32xbf16>, vector<32x8xbf16>, vector<17x8xf32> -> vector<17x8xf32>
    %c0_144 = arith.constant 0 : index
    %c3_145 = arith.constant 3 : index
    %c0_146 = arith.constant 0 : index
    %c0_147 = arith.constant 0 : index
    %181 = vector.load %arg12[%c0_144, %c3_145, %c0_146, %c0_147] : memref<1x4x1x8xf32, #tpu.memory_space<vmem>>, vector<1x1x1x8xf32>
    %182 = vector.shape_cast %181 : vector<1x1x1x8xf32> to vector<1x8xf32>
    %183 = vector.broadcast %182 : vector<1x8xf32> to vector<17x8xf32>
    %184 = arith.addf %180, %183 : vector<17x8xf32>
    %cst_148 = arith.constant 0.353553385 : f32
    %185 = vector.broadcast %cst_148 : f32 to vector<17x8xf32>
    %186 = arith.mulf %170, %185 : vector<17x8xf32>
    %187 = arith.truncf %186 : vector<17x8xf32> to vector<17x8xbf16>
    %188 = arith.truncf %177 : vector<17x8xf32> to vector<17x8xbf16>
    %cst_149 = arith.constant dense<0.000000e+00> : vector<17x17xf32>
    %189 = tpu.matmul %187, %188, %cst_149 {dimension_numbers = #tpu.dot_dimension_numbers<[1], [1], [0], [0], [0, 0, 1, 0], [], []>} : vector<17x8xbf16>, vector<17x8xbf16>, vector<17x17xf32> -> vector<17x17xf32>
    %cst_150 = arith.constant dense<0xFF800000> : vector<17xf32>
    %190 = vector.multi_reduction <maximumf>, %189, %cst_150 [1] : vector<17x17xf32> to vector<17xf32>
    %191 = vector.shape_cast %190 : vector<17xf32> to vector<17x1xf32>
    %192 = vector.broadcast %191 : vector<17x1xf32> to vector<17x17xf32>
    %193 = arith.subf %189, %192 : vector<17x17xf32>
    %194 = math.exp %193 : vector<17x17xf32>
    %cst_151 = arith.constant dense<0.000000e+00> : vector<17xf32>
    %195 = vector.multi_reduction <add>, %194, %cst_151 [1] : vector<17x17xf32> to vector<17xf32>
    %196 = vector.shape_cast %195 : vector<17xf32> to vector<17x1xf32>
    %197 = tpu.reciprocal %196 {approx = true} : vector<17x1xf32> -> vector<17x1xf32>
    %198 = vector.broadcast %197 : vector<17x1xf32> to vector<17x17xf32>
    %199 = arith.mulf %194, %198 : vector<17x17xf32>
    %200 = arith.truncf %199 : vector<17x17xf32> to vector<17x17xbf16>
    %201 = arith.truncf %184 : vector<17x8xf32> to vector<17x8xbf16>
    %cst_152 = arith.constant dense<0.000000e+00> : vector<17x8xf32>
    %202 = tpu.matmul %200, %201, %cst_152 {dimension_numbers = #tpu.dot_dimension_numbers<[1], [0], [0], [1], [0, 0, 1, 1], [], []>} : vector<17x17xbf16>, vector<17x8xbf16>, vector<17x8xf32> -> vector<17x8xf32>
    %203 = arith.truncf %202 : vector<17x8xf32> to vector<17x8xbf16>
    %c0_153 = arith.constant 0 : index
    %c3_154 = arith.constant 3 : index
    %c0_155 = arith.constant 0 : index
    %c0_156 = arith.constant 0 : index
    %204 = vector.load %arg13[%c0_153, %c3_154, %c0_155, %c0_156] : memref<1x4x8x32xbf16, #tpu.memory_space<vmem>>, vector<1x1x8x32xbf16>
    %205 = vector.shape_cast %204 : vector<1x1x8x32xbf16> to vector<8x32xbf16>
    %cst_157 = arith.constant dense<0.000000e+00> : vector<17x32xf32>
    %206 = tpu.matmul %203, %205, %cst_157 {dimension_numbers = #tpu.dot_dimension_numbers<[1], [0], [0], [1], [0, 0, 1, 1], [], []>} : vector<17x8xbf16>, vector<8x32xbf16>, vector<17x32xf32> -> vector<17x32xf32>
    %207 = arith.addf %163, %206 : vector<17x32xf32>
    %c0_158 = arith.constant 0 : index
    %c0_159 = arith.constant 0 : index
    %c0_160 = arith.constant 0 : index
    %208 = vector.load %arg14[%c0_158, %c0_159, %c0_160] : memref<1x1x32xf32, #tpu.memory_space<vmem>>, vector<1x1x32xf32>
    %209 = vector.shape_cast %208 : vector<1x1x32xf32> to vector<1x32xf32>
    %210 = vector.broadcast %209 : vector<1x32xf32> to vector<17x32xf32>
    %211 = arith.addf %207, %210 : vector<17x32xf32>
    %c0_161 = arith.constant 0 : index
    %c0_162 = arith.constant 0 : index
    %c0_163 = arith.constant 0 : index
    %212 = vector.load %arg15[%c0_161, %c0_162, %c0_163] : memref<1x1x32xf32, #tpu.memory_space<vmem>>, vector<1x1x32xf32>
    %213 = vector.shape_cast %212 : vector<1x1x32xf32> to vector<1x32xf32>
    %c0_164 = arith.constant 0 : index
    %c0_165 = arith.constant 0 : index
    %c0_166 = arith.constant 0 : index
    %214 = vector.load %arg16[%c0_164, %c0_165, %c0_166] : memref<1x1x32xf32, #tpu.memory_space<vmem>>, vector<1x1x32xf32>
    %215 = vector.shape_cast %214 : vector<1x1x32xf32> to vector<1x32xf32>
    %cst_167 = arith.constant dense<0.000000e+00> : vector<17xf32>
    %216 = vector.multi_reduction <add>, %211, %cst_167 [1] : vector<17x32xf32> to vector<17xf32>
    %217 = vector.shape_cast %216 : vector<17xf32> to vector<17x1xf32>
    %cst_168 = arith.constant 3.200000e+01 : f32
    %218 = vector.broadcast %cst_168 : f32 to vector<17x1xf32>
    %219 = arith.divf %217, %218 : vector<17x1xf32>
    %220 = vector.broadcast %219 : vector<17x1xf32> to vector<17x32xf32>
    %221 = arith.subf %211, %220 : vector<17x32xf32>
    %222 = arith.mulf %221, %221 : vector<17x32xf32>
    %cst_169 = arith.constant dense<0.000000e+00> : vector<17xf32>
    %223 = vector.multi_reduction <add>, %222, %cst_169 [1] : vector<17x32xf32> to vector<17xf32>
    %224 = vector.shape_cast %223 : vector<17xf32> to vector<17x1xf32>
    %cst_170 = arith.constant 3.200000e+01 : f32
    %225 = vector.broadcast %cst_170 : f32 to vector<17x1xf32>
    %226 = arith.divf %224, %225 : vector<17x1xf32>
    %227 = vector.broadcast %219 : vector<17x1xf32> to vector<17x32xf32>
    %228 = arith.subf %211, %227 : vector<17x32xf32>
    %cst_171 = arith.constant 9.99999974E-6 : f32
    %229 = vector.broadcast %cst_171 : f32 to vector<17x1xf32>
    %230 = arith.addf %226, %229 : vector<17x1xf32>
    %231 = math.rsqrt %230 : vector<17x1xf32>
    %232 = vector.broadcast %231 : vector<17x1xf32> to vector<17x32xf32>
    %233 = arith.mulf %228, %232 : vector<17x32xf32>
    %234 = vector.broadcast %213 : vector<1x32xf32> to vector<17x32xf32>
    %235 = arith.mulf %233, %234 : vector<17x32xf32>
    %236 = vector.broadcast %215 : vector<1x32xf32> to vector<17x32xf32>
    %237 = arith.addf %235, %236 : vector<17x32xf32>
    %238 = arith.truncf %237 : vector<17x32xf32> to vector<17x32xbf16>
    %c0_172 = arith.constant 0 : index
    %c0_173 = arith.constant 0 : index
    %c0_174 = arith.constant 0 : index
    %239 = vector.load %arg17[%c0_172, %c0_173, %c0_174] : memref<1x32x64xbf16, #tpu.memory_space<vmem>>, vector<1x32x64xbf16>
    %240 = vector.shape_cast %239 : vector<1x32x64xbf16> to vector<32x64xbf16>
    %cst_175 = arith.constant dense<0.000000e+00> : vector<17x64xf32>
    %241 = tpu.matmul %238, %240, %cst_175 {dimension_numbers = #tpu.dot_dimension_numbers<[1], [0], [0], [1], [0, 0, 1, 1], [], []>} : vector<17x32xbf16>, vector<32x64xbf16>, vector<17x64xf32> -> vector<17x64xf32>
    %c0_176 = arith.constant 0 : index
    %c0_177 = arith.constant 0 : index
    %c0_178 = arith.constant 0 : index
    %242 = vector.load %arg18[%c0_176, %c0_177, %c0_178] : memref<1x1x64xf32, #tpu.memory_space<vmem>>, vector<1x1x64xf32>
    %243 = vector.shape_cast %242 : vector<1x1x64xf32> to vector<1x64xf32>
    %244 = vector.broadcast %243 : vector<1x64xf32> to vector<17x64xf32>
    %245 = arith.addf %241, %244 : vector<17x64xf32>
    %cst_179 = arith.constant 5.000000e-01 : f32
    %246 = vector.broadcast %cst_179 : f32 to vector<17x64xf32>
    %247 = arith.mulf %246, %245 : vector<17x64xf32>
    %cst_180 = arith.constant 4.471500e-02 : f32
    %248 = vector.broadcast %cst_180 : f32 to vector<17x64xf32>
    %249 = arith.mulf %248, %245 : vector<17x64xf32>
    %250 = arith.mulf %249, %245 : vector<17x64xf32>
    %251 = arith.mulf %250, %245 : vector<17x64xf32>
    %252 = arith.addf %245, %251 : vector<17x64xf32>
    %cst_181 = arith.constant 0.797884583 : f32
    %253 = vector.broadcast %cst_181 : f32 to vector<17x64xf32>
    %254 = arith.mulf %253, %252 : vector<17x64xf32>
    %255 = math.tanh %254 : vector<17x64xf32>
    %cst_182 = arith.constant 1.000000e+00 : f32
    %256 = vector.broadcast %cst_182 : f32 to vector<17x64xf32>
    %257 = arith.addf %256, %255 : vector<17x64xf32>
    %258 = arith.mulf %247, %257 : vector<17x64xf32>
    %259 = arith.truncf %258 : vector<17x64xf32> to vector<17x64xbf16>
    %c0_183 = arith.constant 0 : index
    %c0_184 = arith.constant 0 : index
    %c0_185 = arith.constant 0 : index
    %260 = vector.load %arg19[%c0_183, %c0_184, %c0_185] : memref<1x64x32xbf16, #tpu.memory_space<vmem>>, vector<1x64x32xbf16>
    %261 = vector.shape_cast %260 : vector<1x64x32xbf16> to vector<64x32xbf16>
    %cst_186 = arith.constant dense<0.000000e+00> : vector<17x32xf32>
    %262 = tpu.matmul %259, %261, %cst_186 {dimension_numbers = #tpu.dot_dimension_numbers<[1], [0], [0], [1], [0, 0, 1, 1], [], []>} : vector<17x64xbf16>, vector<64x32xbf16>, vector<17x32xf32> -> vector<17x32xf32>
    %c0_187 = arith.constant 0 : index
    %c0_188 = arith.constant 0 : index
    %c0_189 = arith.constant 0 : index
    %263 = vector.load %arg20[%c0_187, %c0_188, %c0_189] : memref<1x1x32xf32, #tpu.memory_space<vmem>>, vector<1x1x32xf32>
    %264 = vector.shape_cast %263 : vector<1x1x32xf32> to vector<1x32xf32>
    %265 = vector.broadcast %264 : vector<1x32xf32> to vector<17x32xf32>
    %266 = arith.addf %262, %265 : vector<17x32xf32>
    %c0_190 = arith.constant 0 : index
    %c0_191 = arith.constant 0 : index
    %267 = vector.load %arg26[%c0_190, %c0_191] : memref<17x32xf32, #tpu.memory_space<vmem>>, vector<17x32xf32>
    tpu.vector_store %arg26[%c0_190, %c0_191], %266 {strides = array<i32>} : memref<17x32xf32, #tpu.memory_space<vmem>>, vector<17x32xf32>,
    %c1_i32 = arith.constant 1 : i32
    %268 = arith.cmpi eq, %arg1, %c1_i32 : i32
    %269 = arith.extui %268 : i1 to i32
    %c0_i32_192 = arith.constant 0 : i32
    %270 = arith.cmpi ne, %269, %c0_i32_192 : i32
    scf.if %270 {
      %c0_193 = arith.constant 0 : index
      %c0_194 = arith.constant 0 : index
      %271 = vector.load %arg26[%c0_193, %c0_194] : memref<17x32xf32, #tpu.memory_space<vmem>>, vector<1x32xf32>
      %c0_195 = arith.constant 0 : index
      %c0_196 = arith.constant 0 : index
      %272 = vector.load %arg21[%c0_195, %c0_196] : memref<1x32xf32, #tpu.memory_space<vmem>>, vector<1x32xf32>
      %c0_197 = arith.constant 0 : index
      %c0_198 = arith.constant 0 : index
      %273 = vector.load %arg22[%c0_197, %c0_198] : memref<1x32xf32, #tpu.memory_space<vmem>>, vector<1x32xf32>
      %cst_199 = arith.constant dense<0.000000e+00> : vector<1xf32>
      %274 = vector.multi_reduction <add>, %271, %cst_199 [1] : vector<1x32xf32> to vector<1xf32>
      %275 = vector.shape_cast %274 : vector<1xf32> to vector<1x1xf32>
      %cst_200 = arith.constant 3.200000e+01 : f32
      %276 = vector.broadcast %cst_200 : f32 to vector<1x1xf32>
      %277 = arith.divf %275, %276 : vector<1x1xf32>
      %278 = vector.broadcast %277 : vector<1x1xf32> to vector<1x32xf32>
      %279 = arith.subf %271, %278 : vector<1x32xf32>
      %280 = arith.mulf %279, %279 : vector<1x32xf32>
      %cst_201 = arith.constant dense<0.000000e+00> : vector<1xf32>
      %281 = vector.multi_reduction <add>, %280, %cst_201 [1] : vector<1x32xf32> to vector<1xf32>
      %282 = vector.shape_cast %281 : vector<1xf32> to vector<1x1xf32>
      %cst_202 = arith.constant 3.200000e+01 : f32
      %283 = vector.broadcast %cst_202 : f32 to vector<1x1xf32>
      %284 = arith.divf %282, %283 : vector<1x1xf32>
      %285 = vector.broadcast %277 : vector<1x1xf32> to vector<1x32xf32>
      %286 = arith.subf %271, %285 : vector<1x32xf32>
      %cst_203 = arith.constant 9.99999974E-6 : f32
      %287 = vector.broadcast %cst_203 : f32 to vector<1x1xf32>
      %288 = arith.addf %284, %287 : vector<1x1xf32>
      %289 = math.rsqrt %288 : vector<1x1xf32>
      %290 = vector.broadcast %289 : vector<1x1xf32> to vector<1x32xf32>
      %291 = arith.mulf %286, %290 : vector<1x32xf32>
      %292 = arith.mulf %291, %272 : vector<1x32xf32>
      %293 = arith.addf %292, %273 : vector<1x32xf32>
      %294 = arith.truncf %293 : vector<1x32xf32> to vector<1x32xbf16>
      %c0_204 = arith.constant 0 : index
      %c0_205 = arith.constant 0 : index
      %295 = vector.load %arg23[%c0_204, %c0_205] : memref<32x10xbf16, #tpu.memory_space<vmem>>, vector<32x10xbf16>
      %cst_206 = arith.constant dense<0.000000e+00> : vector<1x10xf32>
      %296 = tpu.matmul %294, %295, %cst_206 {dimension_numbers = #tpu.dot_dimension_numbers<[1], [0], [0], [1], [0, 0, 1, 1], [], []>} : vector<1x32xbf16>, vector<32x10xbf16>, vector<1x10xf32> -> vector<1x10xf32>
      %c0_207 = arith.constant 0 : index
      %c0_208 = arith.constant 0 : index
      %297 = vector.load %arg24[%c0_207, %c0_208] : memref<1x10xf32, #tpu.memory_space<vmem>>, vector<1x10xf32>
      %298 = arith.addf %296, %297 : vector<1x10xf32>
      %c0_209 = arith.constant 0 : index
      %c0_210 = arith.constant 0 : index
      %c0_211 = arith.constant 0 : index
      %299 = vector.load %arg25[%c0_209, %c0_210, %c0_211] : memref<1x1x10xf32, #tpu.memory_space<vmem>>, vector<1x1x10xf32>
      %300 = vector.shape_cast %299 : vector<1x1x10xf32> to vector<1x10xf32>
      %301 = vector.shape_cast %298 : vector<1x10xf32> to vector<1x1x10xf32>
      tpu.vector_store %arg25[%c0_209, %c0_210, %c0_211], %301 {strides = array<i32>} : memref<1x1x10xf32, #tpu.memory_space<vmem>>, vector<1x1x10xf32>,
    } else {
    }
    return
  }
  func.func @transform_0(%arg0: i32, %arg1: i32) -> (i32, i32, i32) {
    %c0_i32 = arith.constant 0 : i32
    %c0_i32_0 = arith.constant 0 : i32
    %c0_i32_1 = arith.constant 0 : i32
    return %arg0, %c0_i32, %c0_i32_0 : i32, i32, i32
  }
  func.func @transform_1(%arg0: i32, %arg1: i32) -> (i32, i32) {
    %c0_i32 = arith.constant 0 : i32
    %c0_i32_0 = arith.constant 0 : i32
    %c0_i32_1 = arith.constant 0 : i32
    return %c0_i32, %c0_i32_0 : i32, i32
  }
  func.func @transform_2(%arg0: i32, %arg1: i32) -> (i32, i32) {
    %c0_i32 = arith.constant 0 : i32
    %c0_i32_0 = arith.constant 0 : i32
    %c0_i32_1 = arith.constant 0 : i32
    return %c0_i32, %c0_i32_0 : i32, i32
  }
  func.func @transform_3(%arg0: i32, %arg1: i32) -> (i32, i32, i32) {
    %c0_i32 = arith.constant 0 : i32
    %c0_i32_0 = arith.constant 0 : i32
    %c0_i32_1 = arith.constant 0 : i32
    return %arg1, %c0_i32, %c0_i32_0 : i32, i32, i32
  }
  func.func @transform_4(%arg0: i32, %arg1: i32) -> (i32, i32, i32) {
    %c0_i32 = arith.constant 0 : i32
    %c0_i32_0 = arith.constant 0 : i32
    %c0_i32_1 = arith.constant 0 : i32
    return %arg1, %c0_i32, %c0_i32_0 : i32, i32, i32
  }
  func.func @transform_5(%arg0: i32, %arg1: i32) -> (i32, i32, i32, i32) {
    %c0_i32 = arith.constant 0 : i32
    %c0_i32_0 = arith.constant 0 : i32
    %c0_i32_1 = arith.constant 0 : i32
    %c0_i32_2 = arith.constant 0 : i32
    return %arg1, %c0_i32, %c0_i32_0, %c0_i32_1 : i32, i32, i32, i32
  }
  func.func @transform_6(%arg0: i32, %arg1: i32) -> (i32, i32, i32, i32) {
    %c0_i32 = arith.constant 0 : i32
    %c0_i32_0 = arith.constant 0 : i32
    %c0_i32_1 = arith.constant 0 : i32
    %c0_i32_2 = arith.constant 0 : i32
    return %arg1, %c0_i32, %c0_i32_0, %c0_i32_1 : i32, i32, i32, i32
  }
  func.func @transform_7(%arg0: i32, %arg1: i32) -> (i32, i32, i32, i32) {
    %c0_i32 = arith.constant 0 : i32
    %c0_i32_0 = arith.constant 0 : i32
    %c0_i32_1 = arith.constant 0 : i32
    %c0_i32_2 = arith.constant 0 : i32
    return %arg1, %c0_i32, %c0_i32_0, %c0_i32_1 : i32, i32, i32, i32
  }
  func.func @transform_8(%arg0: i32, %arg1: i32) -> (i32, i32, i32, i32) {
    %c0_i32 = arith.constant 0 : i32
    %c0_i32_0 = arith.constant 0 : i32
    %c0_i32_1 = arith.constant 0 : i32
    %c0_i32_2 = arith.constant 0 : i32
    return %arg1, %c0_i32, %c0_i32_0, %c0_i32_1 : i32, i32, i32, i32
  }
  func.func @transform_9(%arg0: i32, %arg1: i32) -> (i32, i32, i32, i32) {
    %c0_i32 = arith.constant 0 : i32
    %c0_i32_0 = arith.constant 0 : i32
    %c0_i32_1 = arith.constant 0 : i32
    %c0_i32_2 = arith.constant 0 : i32
    return %arg1, %c0_i32, %c0_i32_0, %c0_i32_1 : i32, i32, i32, i32
  }
  func.func @transform_10(%arg0: i32, %arg1: i32) -> (i32, i32, i32, i32) {
    %c0_i32 = arith.constant 0 : i32
    %c0_i32_0 = arith.constant 0 : i32
    %c0_i32_1 = arith.constant 0 : i32
    %c0_i32_2 = arith.constant 0 : i32
    return %arg1, %c0_i32, %c0_i32_0, %c0_i32_1 : i32, i32, i32, i32
  }
  func.func @transform_11(%arg0: i32, %arg1: i32) -> (i32, i32, i32, i32) {
    %c0_i32 = arith.constant 0 : i32
    %c0_i32_0 = arith.constant 0 : i32
    %c0_i32_1 = arith.constant 0 : i32
    %c0_i32_2 = arith.constant 0 : i32
    return %arg1, %c0_i32, %c0_i32_0, %c0_i32_1 : i32, i32, i32, i32
  }
  func.func @transform_12(%arg0: i32, %arg1: i32) -> (i32, i32, i32) {
    %c0_i32 = arith.constant 0 : i32
    %c0_i32_0 = arith.constant 0 : i32
    %c0_i32_1 = arith.constant 0 : i32
    return %arg1, %c0_i32, %c0_i32_0 : i32, i32, i32
  }
  func.func @transform_13(%arg0: i32, %arg1: i32) -> (i32, i32, i32) {
    %c0_i32 = arith.constant 0 : i32
    %c0_i32_0 = arith.constant 0 : i32
    %c0_i32_1 = arith.constant 0 : i32
    return %arg1, %c0_i32, %c0_i32_0 : i32, i32, i32
  }
  func.func @transform_14(%arg0: i32, %arg1: i32) -> (i32, i32, i32) {
    %c0_i32 = arith.constant 0 : i32
    %c0_i32_0 = arith.constant 0 : i32
    %c0_i32_1 = arith.constant 0 : i32
    return %arg1, %c0_i32, %c0_i32_0 : i32, i32, i32
  }
  func.func @transform_15(%arg0: i32, %arg1: i32) -> (i32, i32, i32) {
    %c0_i32 = arith.constant 0 : i32
    %c0_i32_0 = arith.constant 0 : i32
    %c0_i32_1 = arith.constant 0 : i32
    return %arg1, %c0_i32, %c0_i32_0 : i32, i32, i32
  }
  func.func @transform_16(%arg0: i32, %arg1: i32) -> (i32, i32, i32) {
    %c0_i32 = arith.constant 0 : i32
    %c0_i32_0 = arith.constant 0 : i32
    %c0_i32_1 = arith.constant 0 : i32
    return %arg1, %c0_i32, %c0_i32_0 : i32, i32, i32
  }
  func.func @transform_17(%arg0: i32, %arg1: i32) -> (i32, i32, i32) {
    %c0_i32 = arith.constant 0 : i32
    %c0_i32_0 = arith.constant 0 : i32
    %c0_i32_1 = arith.constant 0 : i32
    return %arg1, %c0_i32, %c0_i32_0 : i32, i32, i32
  }
  func.func @transform_18(%arg0: i32, %arg1: i32) -> (i32, i32, i32) {
    %c0_i32 = arith.constant 0 : i32
    %c0_i32_0 = arith.constant 0 : i32
    %c0_i32_1 = arith.constant 0 : i32
    return %arg1, %c0_i32, %c0_i32_0 : i32, i32, i32
  }
  func.func @transform_19(%arg0: i32, %arg1: i32) -> (i32, i32) {
    %c0_i32 = arith.constant 0 : i32
    %c0_i32_0 = arith.constant 0 : i32
    %c0_i32_1 = arith.constant 0 : i32
    return %c0_i32, %c0_i32_0 : i32, i32
  }
  func.func @transform_20(%arg0: i32, %arg1: i32) -> (i32, i32) {
    %c0_i32 = arith.constant 0 : i32
    %c0_i32_0 = arith.constant 0 : i32
    %c0_i32_1 = arith.constant 0 : i32
    return %c0_i32, %c0_i32_0 : i32, i32
  }
  func.func @transform_21(%arg0: i32, %arg1: i32) -> (i32, i32) {
    %c0_i32 = arith.constant 0 : i32
    %c0_i32_0 = arith.constant 0 : i32
    %c0_i32_1 = arith.constant 0 : i32
    return %c0_i32, %c0_i32_0 : i32, i32
  }
  func.func @transform_22(%arg0: i32, %arg1: i32) -> (i32, i32) {
    %c0_i32 = arith.constant 0 : i32
    %c0_i32_0 = arith.constant 0 : i32
    %c0_i32_1 = arith.constant 0 : i32
    return %c0_i32, %c0_i32_0 : i32, i32
  }
  func.func @transform_23(%arg0: i32, %arg1: i32) -> (i32, i32, i32) {
    %c0_i32 = arith.constant 0 : i32
    %c0_i32_0 = arith.constant 0 : i32
    %c0_i32_1 = arith.constant 0 : i32
    return %arg0, %c0_i32, %c0_i32_0 : i32, i32, i32
  }
}

</mosaic_0001>

<llo_original>
// kernel: vit_forward.1
$region0: #{vit_forward.1}
  #allocation0 [shape = 'u32[]', space=smem, size = 0x4, offset = 0x4, fixed_abs, tag = 'smem constant byte address 0x4 - core index']
  #allocation1 [shape = 'u32[144,128]{1,0:T(1,128)}', space=vmem, size = 0x12000, scoped, tag = 'internal scratch']
  #allocation2 [shape = 'f32[17,32]{1,0:T(8,128)}', space=vmem, size = 0x3000, scoped, tag = 'scratch operand']
  %s0 = inlined_call_operand.vmem [shape: f32[2,17,48], index: 0, kind: input, shape index: {}]
  %s1 = inlined_call_operand.vmem [shape: bf16[48,32], index: 1, kind: input, shape index: {}]
  %s2 = inlined_call_operand.vmem [shape: f32[17,32], index: 2, kind: input, shape index: {}]
  %s3 = inlined_call_operand.vmem [shape: f32[2,1,32], index: 3, kind: input, shape index: {}]
  %s4 = inlined_call_operand.vmem [shape: f32[2,1,32], index: 4, kind: input, shape index: {}]
  %s5 = inlined_call_operand.vmem [shape: bf16[2,4,32,8], index: 5, kind: input, shape index: {}]
  %s6 = inlined_call_operand.vmem [shape: bf16[2,4,32,8], index: 6, kind: input, shape index: {}]
  %s7 = inlined_call_operand.vmem [shape: bf16[2,4,32,8], index: 7, kind: input, shape index: {}]
  %s8 = inlined_call_operand.vmem [shape: f32[2,4,1,8], index: 8, kind: input, shape index: {}]
  %s9 = inlined_call_operand.vmem [shape: f32[2,4,1,8], index: 9, kind: input, shape index: {}]
  %s10 = inlined_call_operand.vmem [shape: f32[2,4,1,8], index: 10, kind: input, shape index: {}]
  %s11 = inlined_call_operand.vmem [shape: bf16[2,4,8,32], index: 11, kind: input, shape index: {}]
  %s12 = inlined_call_operand.vmem [shape: f32[2,1,32], index: 12, kind: input, shape index: {}]
  %s13 = inlined_call_operand.vmem [shape: f32[2,1,32], index: 13, kind: input, shape index: {}]
  %s14 = inlined_call_operand.vmem [shape: f32[2,1,32], index: 14, kind: input, shape index: {}]
  %s15 = inlined_call_operand.vmem [shape: bf16[2,32,64], index: 15, kind: input, shape index: {}]
  %s16 = inlined_call_operand.vmem [shape: f32[2,1,64], index: 16, kind: input, shape index: {}]
  %s17 = inlined_call_operand.vmem [shape: bf16[2,64,32], index: 17, kind: input, shape index: {}]
  %s18 = inlined_call_operand.vmem [shape: f32[2,1,32], index: 18, kind: input, shape index: {}]
  %s19 = inlined_call_operand.vmem [shape: f32[1,32], index: 19, kind: input, shape index: {}]
  %s20 = inlined_call_operand.vmem [shape: f32[1,32], index: 20, kind: input, shape index: {}]
  %s21 = inlined_call_operand.vmem [shape: bf16[32,10], index: 21, kind: input, shape index: {}]
  %s22 = inlined_call_operand.vmem [shape: f32[1,10], index: 22, kind: input, shape index: {}]
  %s23 = inlined_call_operand.hbm [shape: f32[2,1,10], index: 23, kind: output, shape index: {}]
  %s24 = sld [smem:[#allocation0]]
  $region133: #{vit_forward.1} parent=0
    _
  %s26 = ssub.s32 1, %s24
  %s27 = scalar_select 0, %s26, %s24
  $region1: #{vit_forward.1} parent=0
    #allocation3 [shape = 'u8[1024]{0}', space=vmem, size = 0x400, scoped, tag = 'output window, operand 0']
    #allocation4 [shape = 's32[2]{0}', space=sflag, size = 0x8, scoped, tag = 'scoped memory for vit_forward.1']
    %28 = vsyncpa [#allocation4], 0
    %s29 = scalar_lea.sflag [#allocation4], 1
    %30 = vsyncpa %s29, 0
    loop: start=0, step=1, limit=6
    $region2: #{vit_forward.1} parent=1 // loop_pre_header
      _
    $region3: #{vit_forward.1} parent=1 // loop_header
      %s32 = sphi 0, %s36
      %p33 = scmp.ge.s32.totalorder %s32, 6
      %s39 = sphi 0, %s51
      %s40 = sphi 0, %s47
      %s41 = sphi 0, %s39
      %s42 = sphi 0, %s40
      %s43 = sphi 0, %s41
      %s44 = sphi 0, %s42
      %s54 = sphi 0, %s56
      %s57 = sphi 0, %s54
      %s58 = sphi 0, %s57
      %s74 = sphi 0, %s58
      %s78 = sphi 0, %s78
      %s80 = sphi 0, %s78
      %s81 = sphi 0, %s80
      %s95 = sphi 0, %s81
      %s99 = sphi 0, %s99
      %s101 = sphi 0, %s99
      %s102 = sphi 0, %s101
      %s116 = sphi 0, %s102
      %s122 = sphi 0, %s124
      %s125 = sphi 0, %s122
      %s126 = sphi 0, %s125
      %s142 = sphi 0, %s126
      %s148 = sphi 0, %s150
      %s151 = sphi 0, %s148
      %s152 = sphi 0, %s151
      %s168 = sphi 0, %s152
      %s174 = sphi 0, %s176
      %s177 = sphi 0, %s174
      %s178 = sphi 0, %s177
      %s194 = sphi 0, %s178
      %s200 = sphi 0, %s202
      %s203 = sphi 0, %s200
      %s204 = sphi 0, %s203
      %s220 = sphi 0, %s204
      %s226 = sphi 0, %s228
      %s229 = sphi 0, %s226
      %s230 = sphi 0, %s229
      %s246 = sphi 0, %s230
      %s252 = sphi 0, %s254
      %s255 = sphi 0, %s252
      %s256 = sphi 0, %s255
      %s272 = sphi 0, %s256
      %s278 = sphi 0, %s280
      %s281 = sphi 0, %s278
      %s282 = sphi 0, %s281
      %s298 = sphi 0, %s282
      %s304 = sphi 0, %s306
      %s307 = sphi 0, %s304
      %s308 = sphi 0, %s307
      %s324 = sphi 0, %s308
      %s330 = sphi 0, %s332
      %s333 = sphi 0, %s330
      %s334 = sphi 0, %s333
      %s350 = sphi 0, %s334
      %s356 = sphi 0, %s358
      %s359 = sphi 0, %s356
      %s360 = sphi 0, %s359
      %s376 = sphi 0, %s360
      %s382 = sphi 0, %s384
      %s385 = sphi 0, %s382
      %s386 = sphi 0, %s385
      %s402 = sphi 0, %s386
      %s408 = sphi 0, %s410
      %s411 = sphi 0, %s408
      %s412 = sphi 0, %s411
      %s428 = sphi 0, %s412
      %s434 = sphi 0, %s436
      %s437 = sphi 0, %s434
      %s438 = sphi 0, %s437
      %s454 = sphi 0, %s438
      %s460 = sphi 0, %s462
      %s463 = sphi 0, %s460
      %s464 = sphi 0, %s463
      %s480 = sphi 0, %s464
      %s486 = sphi 0, %s488
      %s489 = sphi 0, %s486
      %s490 = sphi 0, %s489
      %s506 = sphi 0, %s490
      %s512 = sphi 0, %s514
      %s515 = sphi 0, %s512
      %s516 = sphi 0, %s515
      %s532 = sphi 0, %s516
      %s536 = sphi 0, %s536
      %s538 = sphi 0, %s536
      %s539 = sphi 0, %s538
      %s553 = sphi 0, %s539
      %s557 = sphi 0, %s557
      %s559 = sphi 0, %s557
      %s560 = sphi 0, %s559
      %s574 = sphi 0, %s560
      %s578 = sphi 0, %s578
      %s580 = sphi 0, %s578
      %s581 = sphi 0, %s580
      %s595 = sphi 0, %s581
      %s599 = sphi 0, %s599
      %s601 = sphi 0, %s599
      %s602 = sphi 0, %s601
      %s616 = sphi 0, %s602
      %s622 = sphi 0, %s624
      %s625 = sphi 0, %s622
      %s626 = sphi 0, %s625
      %s642 = sphi 0, %s626
    $region4: #{vit_forward.1} parent=1 // loop_header_branch
      %35 = sbr.rel (%p33) target = $region8
    $region5: #{vit_forward.1} parent=1 // loop_body
      %s37 = ssub.s32 %s32, 1
      %s38 = ssub.s32 %s32, 2
      %s45 = sadd.s32 1, %s40
      %p46 = scmp.ge.s32.totalorder %s45, 2
      %s47 = scalar_select %p46, 0, %s45
      %s48 = sadd.s32 1, %s39
      %s49 = scalar_select %p46, %s48, %s39
      %p50 = scmp.ge.s32.totalorder %s49, 2
      %s51 = scalar_select %p50, 0, %s49
      %s52 = ssub.s32 %s39, %s51
      %p53 = scmp.eq.s32.totalorder %s52, 0
      %s55 = sadd.s32 %s54, 1
      %s56 = scalar_select %p53, %s54, %s55
      %p59 = pneg %p53
      %p60 = scmp.eq.s32.totalorder %s32, 3
      %p61 = por %p59, %p60
      %p62 = scmp.ne.s32.totalorder %s54, %s57
      %p63 = scmp.eq.s32.totalorder %s32, 0
      %p64 = por %p62, %p63
      %p65 = scmp.ne.s32.totalorder %s54, %s57
      %p66 = scmp.eq.s32.totalorder %s37, 3
      %p67 = por %p65, %p66
      %p68 = scmp.ne.s32.totalorder %s57, %s58
      %p69 = scmp.eq.s32.totalorder %s37, 0
      %p70 = por %p68, %p69
      %p71 = scmp.ne.s32.totalorder %s57, %s58
      %p72 = scmp.eq.s32.totalorder %s38, 3
      %p73 = por %p71, %p72
      %p75 = scmp.ne.s32.totalorder %s58, %s74
      %p76 = scmp.eq.s32.totalorder %s38, 0
      %p77 = por %p75, %p76
      %s79 = sadd.s32 %s78, 1
      %p82 = scmp.eq.s32.totalorder %s32, 3
      %p83 = scmp.ne.s32.totalorder %s78, %s80
      %p84 = scmp.eq.s32.totalorder %s32, 0
      %p85 = por %p83, %p84
      %p86 = scmp.ne.s32.totalorder %s78, %s80
      %p87 = scmp.eq.s32.totalorder %s37, 3
      %p88 = por %p86, %p87
      %p89 = scmp.ne.s32.totalorder %s80, %s81
      %p90 = scmp.eq.s32.totalorder %s37, 0
      %p91 = por %p89, %p90
      %p92 = scmp.ne.s32.totalorder %s80, %s81
      %p93 = scmp.eq.s32.totalorder %s38, 3
      %p94 = por %p92, %p93
      %p96 = scmp.ne.s32.totalorder %s81, %s95
      %p97 = scmp.eq.s32.totalorder %s38, 0
      %p98 = por %p96, %p97
      %s100 = sadd.s32 %s99, 1
      %p103 = scmp.eq.s32.totalorder %s32, 3
      %p104 = scmp.ne.s32.totalorder %s99, %s101
      %p105 = scmp.eq.s32.totalorder %s32, 0
      %p106 = por %p104, %p105
      %p107 = scmp.ne.s32.totalorder %s99, %s101
      %p108 = scmp.eq.s32.totalorder %s37, 3
      %p109 = por %p107, %p108
      %p110 = scmp.ne.s32.totalorder %s101, %s102
      %p111 = scmp.eq.s32.totalorder %s37, 0
      %p112 = por %p110, %p111
      %p113 = scmp.ne.s32.totalorder %s101, %s102
      %p114 = scmp.eq.s32.totalorder %s38, 3
      %p115 = por %p113, %p114
      %p117 = scmp.ne.s32.totalorder %s102, %s116
      %p118 = scmp.eq.s32.totalorder %s38, 0
      %p119 = por %p117, %p118
      %s120 = ssub.s32 %s40, %s47
      %p121 = scmp.eq.s32.totalorder %s120, 0
      %s123 = sadd.s32 %s122, 1
      %s124 = scalar_select %p121, %s122, %s123
      %p127 = pneg %p121
      %p128 = scmp.eq.s32.totalorder %s32, 3
      %p129 = por %p127, %p128
      %p130 = scmp.ne.s32.totalorder %s122, %s125
      %p131 = scmp.eq.s32.totalorder %s32, 0
      %p132 = por %p130, %p131
      %p133 = scmp.ne.s32.totalorder %s122, %s125
      %p134 = scmp.eq.s32.totalorder %s37, 3
      %p135 = por %p133, %p134
      %p136 = scmp.ne.s32.totalorder %s125, %s126
      %p137 = scmp.eq.s32.totalorder %s37, 0
      %p138 = por %p136, %p137
      %p139 = scmp.ne.s32.totalorder %s125, %s126
      %p140 = scmp.eq.s32.totalorder %s38, 3
      %p141 = por %p139, %p140
      %p143 = scmp.ne.s32.totalorder %s126, %s142
      %p144 = scmp.eq.s32.totalorder %s38, 0
      %p145 = por %p143, %p144
      %s146 = ssub.s32 %s40, %s47
      %p147 = scmp.eq.s32.totalorder %s146, 0
      %s149 = sadd.s32 %s148, 1
      %s150 = scalar_select %p147, %s148, %s149
      %p153 = pneg %p147
      %p154 = scmp.eq.s32.totalorder %s32, 3
      %p155 = por %p153, %p154
      %p156 = scmp.ne.s32.totalorder %s148, %s151
      %p157 = scmp.eq.s32.totalorder %s32, 0
      %p158 = por %p156, %p157
      %p159 = scmp.ne.s32.totalorder %s148, %s151
      %p160 = scmp.eq.s32.totalorder %s37, 3
      %p161 = por %p159, %p160
      %p162 = scmp.ne.s32.totalorder %s151, %s152
      %p163 = scmp.eq.s32.totalorder %s37, 0
      %p164 = por %p162, %p163
      %p165 = scmp.ne.s32.totalorder %s151, %s152
      %p166 = scmp.eq.s32.totalorder %s38, 3
      %p167 = por %p165, %p166
      %p169 = scmp.ne.s32.totalorder %s152, %s168
      %p170 = scmp.eq.s32.totalorder %s38, 0
      %p171 = por %p169, %p170
      %s172 = ssub.s32 %s40, %s47
      %p173 = scmp.eq.s32.totalorder %s172, 0
      %s175 = sadd.s32 %s174, 1
      %s176 = scalar_select %p173, %s174, %s175
      %p179 = pneg %p173
      %p180 = scmp.eq.s32.totalorder %s32, 3
      %p181 = por %p179, %p180
      %p182 = scmp.ne.s32.totalorder %s174, %s177
      %p183 = scmp.eq.s32.totalorder %s32, 0
      %p184 = por %p182, %p183
      %p185 = scmp.ne.s32.totalorder %s174, %s177
      %p186 = scmp.eq.s32.totalorder %s37, 3
      %p187 = por %p185, %p186
      %p188 = scmp.ne.s32.totalorder %s177, %s178
      %p189 = scmp.eq.s32.totalorder %s37, 0
      %p190 = por %p188, %p189
      %p191 = scmp.ne.s32.totalorder %s177, %s178
      %p192 = scmp.eq.s32.totalorder %s38, 3
      %p193 = por %p191, %p192
      %p195 = scmp.ne.s32.totalorder %s178, %s194
      %p196 = scmp.eq.s32.totalorder %s38, 0
      %p197 = por %p195, %p196
      %s198 = ssub.s32 %s40, %s47
      %p199 = scmp.eq.s32.totalorder %s198, 0
      %s201 = sadd.s32 %s200, 1
      %s202 = scalar_select %p199, %s200, %s201
      %p205 = pneg %p199
      %p206 = scmp.eq.s32.totalorder %s32, 3
      %p207 = por %p205, %p206
      %p208 = scmp.ne.s32.totalorder %s200, %s203
      %p209 = scmp.eq.s32.totalorder %s32, 0
      %p210 = por %p208, %p209
      %p211 = scmp.ne.s32.totalorder %s200, %s203
      %p212 = scmp.eq.s32.totalorder %s37, 3
      %p213 = por %p211, %p212
      %p214 = scmp.ne.s32.totalorder %s203, %s204
      %p215 = scmp.eq.s32.totalorder %s37, 0
      %p216 = por %p214, %p215
      %p217 = scmp.ne.s32.totalorder %s203, %s204
      %p218 = scmp.eq.s32.totalorder %s38, 3
      %p219 = por %p217, %p218
      %p221 = scmp.ne.s32.totalorder %s204, %s220
      %p222 = scmp.eq.s32.totalorder %s38, 0
      %p223 = por %p221, %p222
      %s224 = ssub.s32 %s40, %s47
      %p225 = scmp.eq.s32.totalorder %s224, 0
      %s227 = sadd.s32 %s226, 1
      %s228 = scalar_select %p225, %s226, %s227
      %p231 = pneg %p225
      %p232 = scmp.eq.s32.totalorder %s32, 3
      %p233 = por %p231, %p232
      %p234 = scmp.ne.s32.totalorder %s226, %s229
      %p235 = scmp.eq.s32.totalorder %s32, 0
      %p236 = por %p234, %p235
      %p237 = scmp.ne.s32.totalorder %s226, %s229
      %p238 = scmp.eq.s32.totalorder %s37, 3
      %p239 = por %p237, %p238
      %p240 = scmp.ne.s32.totalorder %s229, %s230
      %p241 = scmp.eq.s32.totalorder %s37, 0
      %p242 = por %p240, %p241
      %p243 = scmp.ne.s32.totalorder %s229, %s230
      %p244 = scmp.eq.s32.totalorder %s38, 3
      %p245 = por %p243, %p244
      %p247 = scmp.ne.s32.totalorder %s230, %s246
      %p248 = scmp.eq.s32.totalorder %s38, 0
      %p249 = por %p247, %p248
      %s250 = ssub.s32 %s40, %s47
      %p251 = scmp.eq.s32.totalorder %s250, 0
      %s253 = sadd.s32 %s252, 1
      %s254 = scalar_select %p251, %s252, %s253
      %p257 = pneg %p251
      %p258 = scmp.eq.s32.totalorder %s32, 3
      %p259 = por %p257, %p258
      %p260 = scmp.ne.s32.totalorder %s252, %s255
      %p261 = scmp.eq.s32.totalorder %s32, 0
      %p262 = por %p260, %p261
      %p263 = scmp.ne.s32.totalorder %s252, %s255
      %p264 = scmp.eq.s32.totalorder %s37, 3
      %p265 = por %p263, %p264
      %p266 = scmp.ne.s32.totalorder %s255, %s256
      %p267 = scmp.eq.s32.totalorder %s37, 0
      %p268 = por %p266, %p267
      %p269 = scmp.ne.s32.totalorder %s255, %s256
      %p270 = scmp.eq.s32.totalorder %s38, 3
      %p271 = por %p269, %p270
      %p273 = scmp.ne.s32.totalorder %s256, %s272
      %p274 = scmp.eq.s32.totalorder %s38, 0
      %p275 = por %p273, %p274
      %s276 = ssub.s32 %s40, %s47
      %p277 = scmp.eq.s32.totalorder %s276, 0
      %s279 = sadd.s32 %s278, 1
      %s280 = scalar_select %p277, %s278, %s279
      %p283 = pneg %p277
      %p284 = scmp.eq.s32.totalorder %s32, 3
      %p285 = por %p283, %p284
      %p286 = scmp.ne.s32.totalorder %s278, %s281
      %p287 = scmp.eq.s32.totalorder %s32, 0
      %p288 = por %p286, %p287
      %p289 = scmp.ne.s32.totalorder %s278, %s281
      %p290 = scmp.eq.s32.totalorder %s37, 3
      %p291 = por %p289, %p290
      %p292 = scmp.ne.s32.totalorder %s281, %s282
      %p293 = scmp.eq.s32.totalorder %s37, 0
      %p294 = por %p292, %p293
      %p295 = scmp.ne.s32.totalorder %s281, %s282
      %p296 = scmp.eq.s32.totalorder %s38, 3
      %p297 = por %p295, %p296
      %p299 = scmp.ne.s32.totalorder %s282, %s298
      %p300 = scmp.eq.s32.totalorder %s38, 0
      %p301 = por %p299, %p300
      %s302 = ssub.s32 %s40, %s47
      %p303 = scmp.eq.s32.totalorder %s302, 0
      %s305 = sadd.s32 %s304, 1
      %s306 = scalar_select %p303, %s304, %s305
      %p309 = pneg %p303
      %p310 = scmp.eq.s32.totalorder %s32, 3
      %p311 = por %p309, %p310
      %p312 = scmp.ne.s32.totalorder %s304, %s307
      %p313 = scmp.eq.s32.totalorder %s32, 0
      %p314 = por %p312, %p313
      %p315 = scmp.ne.s32.totalorder %s304, %s307
      %p316 = scmp.eq.s32.totalorder %s37, 3
      %p317 = por %p315, %p316
      %p318 = scmp.ne.s32.totalorder %s307, %s308
      %p319 = scmp.eq.s32.totalorder %s37, 0
      %p320 = por %p318, %p319
      %p321 = scmp.ne.s32.totalorder %s307, %s308
      %p322 = scmp.eq.s32.totalorder %s38, 3
      %p323 = por %p321, %p322
      %p325 = scmp.ne.s32.totalorder %s308, %s324
      %p326 = scmp.eq.s32.totalorder %s38, 0
      %p327 = por %p325, %p326
      %s328 = ssub.s32 %s40, %s47
      %p329 = scmp.eq.s32.totalorder %s328, 0
      %s331 = sadd.s32 %s330, 1
      %s332 = scalar_select %p329, %s330, %s331
      %p335 = pneg %p329
      %p336 = scmp.eq.s32.totalorder %s32, 3
      %p337 = por %p335, %p336
      %p338 = scmp.ne.s32.totalorder %s330, %s333
      %p339 = scmp.eq.s32.totalorder %s32, 0
      %p340 = por %p338, %p339
      %p341 = scmp.ne.s32.totalorder %s330, %s333
      %p342 = scmp.eq.s32.totalorder %s37, 3
      %p343 = por %p341, %p342
      %p344 = scmp.ne.s32.totalorder %s333, %s334
      %p345 = scmp.eq.s32.totalorder %s37, 0
      %p346 = por %p344, %p345
      %p347 = scmp.ne.s32.totalorder %s333, %s334
      %p348 = scmp.eq.s32.totalorder %s38, 3
      %p349 = por %p347, %p348
      %p351 = scmp.ne.s32.totalorder %s334, %s350
      %p352 = scmp.eq.s32.totalorder %s38, 0
      %p353 = por %p351, %p352
      %s354 = ssub.s32 %s40, %s47
      %p355 = scmp.eq.s32.totalorder %s354, 0
      %s357 = sadd.s32 %s356, 1
      %s358 = scalar_select %p355, %s356, %s357
      %p361 = pneg %p355
      %p362 = scmp.eq.s32.totalorder %s32, 3
      %p363 = por %p361, %p362
      %p364 = scmp.ne.s32.totalorder %s356, %s359
      %p365 = scmp.eq.s32.totalorder %s32, 0
      %p366 = por %p364, %p365
      %p367 = scmp.ne.s32.totalorder %s356, %s359
      %p368 = scmp.eq.s32.totalorder %s37, 3
      %p369 = por %p367, %p368
      %p370 = scmp.ne.s32.totalorder %s359, %s360
      %p371 = scmp.eq.s32.totalorder %s37, 0
      %p372 = por %p370, %p371
      %p373 = scmp.ne.s32.totalorder %s359, %s360
      %p374 = scmp.eq.s32.totalorder %s38, 3
      %p375 = por %p373, %p374
      %p377 = scmp.ne.s32.totalorder %s360, %s376
      %p378 = scmp.eq.s32.totalorder %s38, 0
      %p379 = por %p377, %p378
      %s380 = ssub.s32 %s40, %s47
      %p381 = scmp.eq.s32.totalorder %s380, 0
      %s383 = sadd.s32 %s382, 1
      %s384 = scalar_select %p381, %s382, %s383
      %p387 = pneg %p381
      %p388 = scmp.eq.s32.totalorder %s32, 3
      %p389 = por %p387, %p388
      %p390 = scmp.ne.s32.totalorder %s382, %s385
      %p391 = scmp.eq.s32.totalorder %s32, 0
      %p392 = por %p390, %p391
      %p393 = scmp.ne.s32.totalorder %s382, %s385
      %p394 = scmp.eq.s32.totalorder %s37, 3
      %p395 = por %p393, %p394
      %p396 = scmp.ne.s32.totalorder %s385, %s386
      %p397 = scmp.eq.s32.totalorder %s37, 0
      %p398 = por %p396, %p397
      %p399 = scmp.ne.s32.totalorder %s385, %s386
      %p400 = scmp.eq.s32.totalorder %s38, 3
      %p401 = por %p399, %p400
      %p403 = scmp.ne.s32.totalorder %s386, %s402
      %p404 = scmp.eq.s32.totalorder %s38, 0
      %p405 = por %p403, %p404
      %s406 = ssub.s32 %s40, %s47
      %p407 = scmp.eq.s32.totalorder %s406, 0
      %s409 = sadd.s32 %s408, 1
      %s410 = scalar_select %p407, %s408, %s409
      %p413 = pneg %p407
      %p414 = scmp.eq.s32.totalorder %s32, 3
      %p415 = por %p413, %p414
      %p416 = scmp.ne.s32.totalorder %s408, %s411
      %p417 = scmp.eq.s32.totalorder %s32, 0
      %p418 = por %p416, %p417
      %p419 = scmp.ne.s32.totalorder %s408, %s411
      %p420 = scmp.eq.s32.totalorder %s37, 3
      %p421 = por %p419, %p420
      %p422 = scmp.ne.s32.totalorder %s411, %s412
      %p423 = scmp.eq.s32.totalorder %s37, 0
      %p424 = por %p422, %p423
      %p425 = scmp.ne.s32.totalorder %s411, %s412
      %p426 = scmp.eq.s32.totalorder %s38, 3
      %p427 = por %p425, %p426
      %p429 = scmp.ne.s32.totalorder %s412, %s428
      %p430 = scmp.eq.s32.totalorder %s38, 0
      %p431 = por %p429, %p430
      %s432 = ssub.s32 %s40, %s47
      %p433 = scmp.eq.s32.totalorder %s432, 0
      %s435 = sadd.s32 %s434, 1
      %s436 = scalar_select %p433, %s434, %s435
      %p439 = pneg %p433
      %p440 = scmp.eq.s32.totalorder %s32, 3
      %p441 = por %p439, %p440
      %p442 = scmp.ne.s32.totalorder %s434, %s437
      %p443 = scmp.eq.s32.totalorder %s32, 0
      %p444 = por %p442, %p443
      %p445 = scmp.ne.s32.totalorder %s434, %s437
      %p446 = scmp.eq.s32.totalorder %s37, 3
      %p447 = por %p445, %p446
      %p448 = scmp.ne.s32.totalorder %s437, %s438
      %p449 = scmp.eq.s32.totalorder %s37, 0
      %p450 = por %p448, %p449
      %p451 = scmp.ne.s32.totalorder %s437, %s438
      %p452 = scmp.eq.s32.totalorder %s38, 3
      %p453 = por %p451, %p452
      %p455 = scmp.ne.s32.totalorder %s438, %s454
      %p456 = scmp.eq.s32.totalorder %s38, 0
      %p457 = por %p455, %p456
      %s458 = ssub.s32 %s40, %s47
      %p459 = scmp.eq.s32.totalorder %s458, 0
      %s461 = sadd.s32 %s460, 1
      %s462 = scalar_select %p459, %s460, %s461
      %p465 = pneg %p459
      %p466 = scmp.eq.s32.totalorder %s32, 3
      %p467 = por %p465, %p466
      %p468 = scmp.ne.s32.totalorder %s460, %s463
      %p469 = scmp.eq.s32.totalorder %s32, 0
      %p470 = por %p468, %p469
      %p471 = scmp.ne.s32.totalorder %s460, %s463
      %p472 = scmp.eq.s32.totalorder %s37, 3
      %p473 = por %p471, %p472
      %p474 = scmp.ne.s32.totalorder %s463, %s464
      %p475 = scmp.eq.s32.totalorder %s37, 0
      %p476 = por %p474, %p475
      %p477 = scmp.ne.s32.totalorder %s463, %s464
      %p478 = scmp.eq.s32.totalorder %s38, 3
      %p479 = por %p477, %p478
      %p481 = scmp.ne.s32.totalorder %s464, %s480
      %p482 = scmp.eq.s32.totalorder %s38, 0
      %p483 = por %p481, %p482
      %s484 = ssub.s32 %s40, %s47
      %p485 = scmp.eq.s32.totalorder %s484, 0
      %s487 = sadd.s32 %s486, 1
      %s488 = scalar_select %p485, %s486, %s487
      %p491 = pneg %p485
      %p492 = scmp.eq.s32.totalorder %s32, 3
      %p493 = por %p491, %p492
      %p494 = scmp.ne.s32.totalorder %s486, %s489
      %p495 = scmp.eq.s32.totalorder %s32, 0
      %p496 = por %p494, %p495
      %p497 = scmp.ne.s32.totalorder %s486, %s489
      %p498 = scmp.eq.s32.totalorder %s37, 3
      %p499 = por %p497, %p498
      %p500 = scmp.ne.s32.totalorder %s489, %s490
      %p501 = scmp.eq.s32.totalorder %s37, 0
      %p502 = por %p500, %p501
      %p503 = scmp.ne.s32.totalorder %s489, %s490
      %p504 = scmp.eq.s32.totalorder %s38, 3
      %p505 = por %p503, %p504
      %p507 = scmp.ne.s32.totalorder %s490, %s506
      %p508 = scmp.eq.s32.totalorder %s38, 0
      %p509 = por %p507, %p508
      %s510 = ssub.s32 %s40, %s47
      %p511 = scmp.eq.s32.totalorder %s510, 0
      %s513 = sadd.s32 %s512, 1
      %s514 = scalar_select %p511, %s512, %s513
      %p517 = pneg %p511
      %p518 = scmp.eq.s32.totalorder %s32, 3
      %p519 = por %p517, %p518
      %p520 = scmp.ne.s32.totalorder %s512, %s515
      %p521 = scmp.eq.s32.totalorder %s32, 0
      %p522 = por %p520, %p521
      %p523 = scmp.ne.s32.totalorder %s512, %s515
      %p524 = scmp.eq.s32.totalorder %s37, 3
      %p525 = por %p523, %p524
      %p526 = scmp.ne.s32.totalorder %s515, %s516
      %p527 = scmp.eq.s32.totalorder %s37, 0
      %p528 = por %p526, %p527
      %p529 = scmp.ne.s32.totalorder %s515, %s516
      %p530 = scmp.eq.s32.totalorder %s38, 3
      %p531 = por %p529, %p530
      %p533 = scmp.ne.s32.totalorder %s516, %s532
      %p534 = scmp.eq.s32.totalorder %s38, 0
      %p535 = por %p533, %p534
      %s537 = sadd.s32 %s536, 1
      %p540 = scmp.eq.s32.totalorder %s32, 3
      %p541 = scmp.ne.s32.totalorder %s536, %s538
      %p542 = scmp.eq.s32.totalorder %s32, 0
      %p543 = por %p541, %p542
      %p544 = scmp.ne.s32.totalorder %s536, %s538
      %p545 = scmp.eq.s32.totalorder %s37, 3
      %p546 = por %p544, %p545
      %p547 = scmp.ne.s32.totalorder %s538, %s539
      %p548 = scmp.eq.s32.totalorder %s37, 0
      %p549 = por %p547, %p548
      %p550 = scmp.ne.s32.totalorder %s538, %s539
      %p551 = scmp.eq.s32.totalorder %s38, 3
      %p552 = por %p550, %p551
      %p554 = scmp.ne.s32.totalorder %s539, %s553
      %p555 = scmp.eq.s32.totalorder %s38, 0
      %p556 = por %p554, %p555
      %s558 = sadd.s32 %s557, 1
      %p561 = scmp.eq.s32.totalorder %s32, 3
      %p562 = scmp.ne.s32.totalorder %s557, %s559
      %p563 = scmp.eq.s32.totalorder %s32, 0
      %p564 = por %p562, %p563
      %p565 = scmp.ne.s32.totalorder %s557, %s559
      %p566 = scmp.eq.s32.totalorder %s37, 3
      %p567 = por %p565, %p566
      %p568 = scmp.ne.s32.totalorder %s559, %s560
      %p569 = scmp.eq.s32.totalorder %s37, 0
      %p570 = por %p568, %p569
      %p571 = scmp.ne.s32.totalorder %s559, %s560
      %p572 = scmp.eq.s32.totalorder %s38, 3
      %p573 = por %p571, %p572
      %p575 = scmp.ne.s32.totalorder %s560, %s574
      %p576 = scmp.eq.s32.totalorder %s38, 0
      %p577 = por %p575, %p576
      %s579 = sadd.s32 %s578, 1
      %p582 = scmp.eq.s32.totalorder %s32, 3
      %p583 = scmp.ne.s32.totalorder %s578, %s580
      %p584 = scmp.eq.s32.totalorder %s32, 0
      %p585 = por %p583, %p584
      %p586 = scmp.ne.s32.totalorder %s578, %s580
      %p587 = scmp.eq.s32.totalorder %s37, 3
      %p588 = por %p586, %p587
      %p589 = scmp.ne.s32.totalorder %s580, %s581
      %p590 = scmp.eq.s32.totalorder %s37, 0
      %p591 = por %p589, %p590
      %p592 = scmp.ne.s32.totalorder %s580, %s581
      %p593 = scmp.eq.s32.totalorder %s38, 3
      %p594 = por %p592, %p593
      %p596 = scmp.ne.s32.totalorder %s581, %s595
      %p597 = scmp.eq.s32.totalorder %s38, 0
      %p598 = por %p596, %p597
      %s600 = sadd.s32 %s599, 1
      %p603 = scmp.eq.s32.totalorder %s32, 3
      %p604 = scmp.ne.s32.totalorder %s599, %s601
      %p605 = scmp.eq.s32.totalorder %s32, 0
      %p606 = por %p604, %p605
      %p607 = scmp.ne.s32.totalorder %s599, %s601
      %p608 = scmp.eq.s32.totalorder %s37, 3
      %p609 = por %p607, %p608
      %p610 = scmp.ne.s32.totalorder %s601, %s602
      %p611 = scmp.eq.s32.totalorder %s37, 0
      %p612 = por %p610, %p611
      %p613 = scmp.ne.s32.totalorder %s601, %s602
      %p614 = scmp.eq.s32.totalorder %s38, 3
      %p615 = por %p613, %p614
      %p617 = scmp.ne.s32.totalorder %s602, %s616
      %p618 = scmp.eq.s32.totalorder %s38, 0
      %p619 = por %p617, %p618
      %s620 = ssub.s32 %s39, %s51
      %p621 = scmp.eq.s32.totalorder %s620, 0
      %s623 = sadd.s32 %s622, 1
      %s624 = scalar_select %p621, %s622, %s623
      %p627 = pneg %p621
      %p628 = scmp.eq.s32.totalorder %s32, 3
      %p629 = por %p627, %p628
      %p630 = scmp.ne.s32.totalorder %s622, %s625
      %p631 = scmp.eq.s32.totalorder %s32, 0
      %p632 = por %p630, %p631
      %p633 = scmp.ne.s32.totalorder %s622, %s625
      %p634 = scmp.eq.s32.totalorder %s37, 3
      %p635 = por %p633, %p634
      %p636 = scmp.ne.s32.totalorder %s625, %s626
      %p637 = scmp.eq.s32.totalorder %s37, 0
      %p638 = por %p636, %p637
      %p639 = scmp.ne.s32.totalorder %s625, %s626
      %p640 = scmp.eq.s32.totalorder %s38, 3
      %p641 = por %p639, %p640
      %p643 = scmp.ne.s32.totalorder %s626, %s642
      %p644 = scmp.eq.s32.totalorder %s38, 0
      %p645 = por %p643, %p644
      %p646 = scmp.le.s32.totalorder 1, %s32
      %p647 = scmp.lt.s32.totalorder %s32, 5
      %p648 = pnand %p646, %p647
      %p649 = pneg %p648
      // Predicated region
      $region9: #{vit_forward.1} parent=5 // pred_check
        _
      $region10: #{vit_forward.1} parent=5 // pred_check_branch
        %651 = sbr.rel (%p648) target = $region12
      $region11: #{vit_forward.1} parent=5 // pred_region
        %s652 = ssub.s32 %s32, 1
        // Predicated region
        $region13: #{vit_forward.1} parent=11 // pred_check
          %p653 = pneg %p91
        $region14: #{vit_forward.1} parent=11 // pred_check_branch
          %655 = sbr.rel (%p653) target = $region16
        $region15: #{vit_forward.1} parent=11 // pred_region
          _
        $region16: #{vit_forward.1} parent=11 // pred_fallthru
          _
        // Predicated region
        $region17: #{vit_forward.1} parent=11 // pred_check
          %p656 = pneg %p112
        $region18: #{vit_forward.1} parent=11 // pred_check_branch
          %658 = sbr.rel (%p656) target = $region20
        $region19: #{vit_forward.1} parent=11 // pred_region
          _
        $region20: #{vit_forward.1} parent=11 // pred_fallthru
          _
        // Predicated region
        $region21: #{vit_forward.1} parent=11 // pred_check
          %p659 = pneg %p549
        $region22: #{vit_forward.1} parent=11 // pred_check_branch
          %661 = sbr.rel (%p659) target = $region24
        $region23: #{vit_forward.1} parent=11 // pred_region
          _
        $region24: #{vit_forward.1} parent=11 // pred_fallthru
          _
        // Predicated region
        $region25: #{vit_forward.1} parent=11 // pred_check
          %p662 = pneg %p570
        $region26: #{vit_forward.1} parent=11 // pred_check_branch
          %664 = sbr.rel (%p662) target = $region28
        $region27: #{vit_forward.1} parent=11 // pred_region
          _
        $region28: #{vit_forward.1} parent=11 // pred_fallthru
          _
        // Predicated region
        $region29: #{vit_forward.1} parent=11 // pred_check
          %p665 = pneg %p591
        $region30: #{vit_forward.1} parent=11 // pred_check_branch
          %667 = sbr.rel (%p665) target = $region32
        $region31: #{vit_forward.1} parent=11 // pred_region
          _
        $region32: #{vit_forward.1} parent=11 // pred_fallthru
          _
        // Predicated region
        $region33: #{vit_forward.1} parent=11 // pred_check
          %p668 = pneg %p612
        $region34: #{vit_forward.1} parent=11 // pred_check_branch
          %670 = sbr.rel (%p668) target = $region36
        $region35: #{vit_forward.1} parent=11 // pred_region
          _
        $region36: #{vit_forward.1} parent=11 // pred_fallthru
          _
      $region12: #{vit_forward.1} parent=5 // pred_fallthru
        _
      %p671 = scmp.lt.s32.totalorder %s32, 4
      // Predicated region
      $region37: #{vit_forward.1} parent=5 // pred_check
        %p672 = pneg %p671
      $region38: #{vit_forward.1} parent=5 // pred_check_branch
        %674 = sbr.rel (%p672) target = $region40
      $region39: #{vit_forward.1} parent=5 // pred_region
        // Predicated region
        $region41: #{vit_forward.1} parent=39 // pred_check
          %p675 = pneg %p64
        $region42: #{vit_forward.1} parent=39 // pred_check_branch
          %677 = sbr.rel (%p675) target = $region44
        $region43: #{vit_forward.1} parent=39 // pred_region
          %p678 = scmp.lt.s32.totalorder %s39, 1
          %s679 = scalar_select %p678, %s39, 1
          %s680 = smul.addr %s679, 3
          %s681 = smul.addr %s680, 8
          %s682 = scalar_lea.vmem %s0, %s681
        $region44: #{vit_forward.1} parent=39 // pred_fallthru
          _
        // Predicated region
        $region45: #{vit_forward.1} parent=39 // pred_check
          %p683 = pneg %p132
        $region46: #{vit_forward.1} parent=39 // pred_check_branch
          %685 = sbr.rel (%p683) target = $region48
        $region47: #{vit_forward.1} parent=39 // pred_region
          %p686 = scmp.lt.s32.totalorder %s40, 1
          %s687 = scalar_select %p686, %s40, 1
          %s688 = scalar_lea.vmem %s3, %s687
        $region48: #{vit_forward.1} parent=39 // pred_fallthru
          _
        // Predicated region
        $region49: #{vit_forward.1} parent=39 // pred_check
          %p689 = pneg %p158
        $region50: #{vit_forward.1} parent=39 // pred_check_branch
          %691 = sbr.rel (%p689) target = $region52
        $region51: #{vit_forward.1} parent=39 // pred_region
          %p692 = scmp.lt.s32.totalorder %s40, 1
          %s693 = scalar_select %p692, %s40, 1
          %s694 = scalar_lea.vmem %s4, %s693
        $region52: #{vit_forward.1} parent=39 // pred_fallthru
          _
        // Predicated region
        $region53: #{vit_forward.1} parent=39 // pred_check
          %p695 = pneg %p184
        $region54: #{vit_forward.1} parent=39 // pred_check_branch
          %697 = sbr.rel (%p695) target = $region56
        $region55: #{vit_forward.1} parent=39 // pred_region
          %p698 = scmp.lt.s32.totalorder %s40, 1
          %s699 = scalar_select %p698, %s40, 1
          %s700 = smul.addr %s699, 16
          %s701 = smul.addr %s700, 4
          %s702 = scalar_lea.vmem %s5, %s701
        $region56: #{vit_forward.1} parent=39 // pred_fallthru
          _
        // Predicated region
        $region57: #{vit_forward.1} parent=39 // pred_check
          %p703 = pneg %p210
        $region58: #{vit_forward.1} parent=39 // pred_check_branch
          %705 = sbr.rel (%p703) target = $region60
        $region59: #{vit_forward.1} parent=39 // pred_region
          %p706 = scmp.lt.s32.totalorder %s40, 1
          %s707 = scalar_select %p706, %s40, 1
          %s708 = smul.addr %s707, 16
          %s709 = smul.addr %s708, 4
          %s710 = scalar_lea.vmem %s6, %s709
        $region60: #{vit_forward.1} parent=39 // pred_fallthru
          _
        // Predicated region
        $region61: #{vit_forward.1} parent=39 // pred_check
          %p711 = pneg %p236
        $region62: #{vit_forward.1} parent=39 // pred_check_branch
          %713 = sbr.rel (%p711) target = $region64
        $region63: #{vit_forward.1} parent=39 // pred_region
          %p714 = scmp.lt.s32.totalorder %s40, 1
          %s715 = scalar_select %p714, %s40, 1
          %s716 = smul.addr %s715, 16
          %s717 = smul.addr %s716, 4
          %s718 = scalar_lea.vmem %s7, %s717
        $region64: #{vit_forward.1} parent=39 // pred_fallthru
          _
        // Predicated region
        $region65: #{vit_forward.1} parent=39 // pred_check
          %p719 = pneg %p262
        $region66: #{vit_forward.1} parent=39 // pred_check_branch
          %721 = sbr.rel (%p719) target = $region68
        $region67: #{vit_forward.1} parent=39 // pred_region
          %p722 = scmp.lt.s32.totalorder %s40, 1
          %s723 = scalar_select %p722, %s40, 1
          %s724 = smul.addr %s723, 4
          %s725 = scalar_lea.vmem %s8, %s724
        $region68: #{vit_forward.1} parent=39 // pred_fallthru
          _
        // Predicated region
        $region69: #{vit_forward.1} parent=39 // pred_check
          %p726 = pneg %p288
        $region70: #{vit_forward.1} parent=39 // pred_check_branch
          %728 = sbr.rel (%p726) target = $region72
        $region71: #{vit_forward.1} parent=39 // pred_region
          %p729 = scmp.lt.s32.totalorder %s40, 1
          %s730 = scalar_select %p729, %s40, 1
          %s731 = smul.addr %s730, 4
          %s732 = scalar_lea.vmem %s9, %s731
        $region72: #{vit_forward.1} parent=39 // pred_fallthru
          _
        // Predicated region
        $region73: #{vit_forward.1} parent=39 // pred_check
          %p733 = pneg %p314
        $region74: #{vit_forward.1} parent=39 // pred_check_branch
          %735 = sbr.rel (%p733) target = $region76
        $region75: #{vit_forward.1} parent=39 // pred_region
          %p736 = scmp.lt.s32.totalorder %s40, 1
          %s737 = scalar_select %p736, %s40, 1
          %s738 = smul.addr %s737, 4
          %s739 = scalar_lea.vmem %s10, %s738
        $region76: #{vit_forward.1} parent=39 // pred_fallthru
          _
        // Predicated region
        $region77: #{vit_forward.1} parent=39 // pred_check
          %p740 = pneg %p340
        $region78: #{vit_forward.1} parent=39 // pred_check_branch
          %742 = sbr.rel (%p740) target = $region80
        $region79: #{vit_forward.1} parent=39 // pred_region
          %p743 = scmp.lt.s32.totalorder %s40, 1
          %s744 = scalar_select %p743, %s40, 1
          %s745 = smul.addr %s744, 4
          %s746 = smul.addr %s745, 4
          %s747 = scalar_lea.vmem %s11, %s746
        $region80: #{vit_forward.1} parent=39 // pred_fallthru
          _
        // Predicated region
        $region81: #{vit_forward.1} parent=39 // pred_check
          %p748 = pneg %p366
        $region82: #{vit_forward.1} parent=39 // pred_check_branch
          %750 = sbr.rel (%p748) target = $region84
        $region83: #{vit_forward.1} parent=39 // pred_region
          %p751 = scmp.lt.s32.totalorder %s40, 1
          %s752 = scalar_select %p751, %s40, 1
          %s753 = scalar_lea.vmem %s12, %s752
        $region84: #{vit_forward.1} parent=39 // pred_fallthru
          _
        // Predicated region
        $region85: #{vit_forward.1} parent=39 // pred_check
          %p754 = pneg %p392
        $region86: #{vit_forward.1} parent=39 // pred_check_branch
          %756 = sbr.rel (%p754) target = $region88
        $region87: #{vit_forward.1} parent=39 // pred_region
          %p757 = scmp.lt.s32.totalorder %s40, 1
          %s758 = scalar_select %p757, %s40, 1
          %s759 = scalar_lea.vmem %s13, %s758
        $region88: #{vit_forward.1} parent=39 // pred_fallthru
          _
        // Predicated region
        $region89: #{vit_forward.1} parent=39 // pred_check
          %p760 = pneg %p418
        $region90: #{vit_forward.1} parent=39 // pred_check_branch
          %762 = sbr.rel (%p760) target = $region92
        $region91: #{vit_forward.1} parent=39 // pred_region
          %p763 = scmp.lt.s32.totalorder %s40, 1
          %s764 = scalar_select %p763, %s40, 1
          %s765 = scalar_lea.vmem %s14, %s764
        $region92: #{vit_forward.1} parent=39 // pred_fallthru
          _
        // Predicated region
        $region93: #{vit_forward.1} parent=39 // pred_check
          %p766 = pneg %p444
        $region94: #{vit_forward.1} parent=39 // pred_check_branch
          %768 = sbr.rel (%p766) target = $region96
        $region95: #{vit_forward.1} parent=39 // pred_region
          %p769 = scmp.lt.s32.totalorder %s40, 1
          %s770 = scalar_select %p769, %s40, 1
          %s771 = smul.addr %s770, 4
          %s772 = smul.addr %s771, 4
          %s773 = scalar_lea.vmem %s15, %s772
        $region96: #{vit_forward.1} parent=39 // pred_fallthru
          _
        // Predicated region
        $region97: #{vit_forward.1} parent=39 // pred_check
          %p774 = pneg %p470
        $region98: #{vit_forward.1} parent=39 // pred_check_branch
          %776 = sbr.rel (%p774) target = $region100
        $region99: #{vit_forward.1} parent=39 // pred_region
          %p777 = scmp.lt.s32.totalorder %s40, 1
          %s778 = scalar_select %p777, %s40, 1
          %s779 = scalar_lea.vmem %s16, %s778
        $region100: #{vit_forward.1} parent=39 // pred_fallthru
          _
        // Predicated region
        $region101: #{vit_forward.1} parent=39 // pred_check
          %p780 = pneg %p496
        $region102: #{vit_forward.1} parent=39 // pred_check_branch
          %782 = sbr.rel (%p780) target = $region104
        $region103: #{vit_forward.1} parent=39 // pred_region
          %p783 = scmp.lt.s32.totalorder %s40, 1
          %s784 = scalar_select %p783, %s40, 1
          %s785 = smul.addr %s784, 8
          %s786 = smul.addr %s785, 4
          %s787 = scalar_lea.vmem %s17, %s786
        $region104: #{vit_forward.1} parent=39 // pred_fallthru
          _
        // Predicated region
        $region105: #{vit_forward.1} parent=39 // pred_check
          %p788 = pneg %p522
        $region106: #{vit_forward.1} parent=39 // pred_check_branch
          %790 = sbr.rel (%p788) target = $region108
        $region107: #{vit_forward.1} parent=39 // pred_region
          %p791 = scmp.lt.s32.totalorder %s40, 1
          %s792 = scalar_select %p791, %s40, 1
          %s793 = scalar_lea.vmem %s18, %s792
        $region108: #{vit_forward.1} parent=39 // pred_fallthru
          _
      $region40: #{vit_forward.1} parent=5 // pred_fallthru
        _
      %p794 = scmp.le.s32.totalorder 1, %s32
      %p795 = scmp.lt.s32.totalorder %s32, 5
      %p796 = pnand %p794, %p795
      %p797 = pneg %p796
      // Predicated region
      $region109: #{vit_forward.1} parent=5 // pred_check
        _
      $region110: #{vit_forward.1} parent=5 // pred_check_branch
        %799 = sbr.rel (%p796) target = $region112
      $region111: #{vit_forward.1} parent=5 // pred_region
        %s800 = ssub.s32 %s32, 1
        %p801 = scmp.lt.s32.totalorder %s41, 1
        %s802 = scalar_select %p801, %s41, 1
        %s803 = smul.addr %s802, 3
        %s804 = smul.addr %s803, 8
        %s805 = scalar_lea.vmem %s0, %s804
        %p806 = pneg %p70
        %p807 = pneg %p67
        %p808 = pneg %p91
        %p809 = pneg %p88
        %p810 = pneg %p112
        %p811 = pneg %p109
        %p812 = scmp.lt.s32.totalorder %s42, 1
        %s813 = scalar_select %p812, %s42, 1
        %s814 = scalar_lea.vmem %s3, %s813
        %p815 = pneg %p138
        %p816 = pneg %p135
        %p817 = scmp.lt.s32.totalorder %s42, 1
        %s818 = scalar_select %p817, %s42, 1
        %s819 = scalar_lea.vmem %s4, %s818
        %p820 = pneg %p164
        %p821 = pneg %p161
        %p822 = scmp.lt.s32.totalorder %s42, 1
        %s823 = scalar_select %p822, %s42, 1
        %s824 = smul.addr %s823, 16
        %s825 = smul.addr %s824, 4
        %s826 = scalar_lea.vmem %s5, %s825
        %p827 = pneg %p190
        %p828 = pneg %p187
        %p829 = scmp.lt.s32.totalorder %s42, 1
        %s830 = scalar_select %p829, %s42, 1
        %s831 = smul.addr %s830, 16
        %s832 = smul.addr %s831, 4
        %s833 = scalar_lea.vmem %s6, %s832
        %p834 = pneg %p216
        %p835 = pneg %p213
        %p836 = scmp.lt.s32.totalorder %s42, 1
        %s837 = scalar_select %p836, %s42, 1
        %s838 = smul.addr %s837, 16
        %s839 = smul.addr %s838, 4
        %s840 = scalar_lea.vmem %s7, %s839
        %p841 = pneg %p242
        %p842 = pneg %p239
        %p843 = scmp.lt.s32.totalorder %s42, 1
        %s844 = scalar_select %p843, %s42, 1
        %s845 = smul.addr %s844, 4
        %s846 = scalar_lea.vmem %s8, %s845
        %p847 = pneg %p268
        %p848 = pneg %p265
        %p849 = scmp.lt.s32.totalorder %s42, 1
        %s850 = scalar_select %p849, %s42, 1
        %s851 = smul.addr %s850, 4
        %s852 = scalar_lea.vmem %s9, %s851
        %p853 = pneg %p294
        %p854 = pneg %p291
        %p855 = scmp.lt.s32.totalorder %s42, 1
        %s856 = scalar_select %p855, %s42, 1
        %s857 = smul.addr %s856, 4
        %s858 = scalar_lea.vmem %s10, %s857
        %p859 = pneg %p320
        %p860 = pneg %p317
        %p861 = scmp.lt.s32.totalorder %s42, 1
        %s862 = scalar_select %p861, %s42, 1
        %s863 = smul.addr %s862, 4
        %s864 = smul.addr %s863, 4
        %s865 = scalar_lea.vmem %s11, %s864
        %p866 = pneg %p346
        %p867 = pneg %p343
        %p868 = scmp.lt.s32.totalorder %s42, 1
        %s869 = scalar_select %p868, %s42, 1
        %s870 = scalar_lea.vmem %s12, %s869
        %p871 = pneg %p372
        %p872 = pneg %p369
        %p873 = scmp.lt.s32.totalorder %s42, 1
        %s874 = scalar_select %p873, %s42, 1
        %s875 = scalar_lea.vmem %s13, %s874
        %p876 = pneg %p398
        %p877 = pneg %p395
        %p878 = scmp.lt.s32.totalorder %s42, 1
        %s879 = scalar_select %p878, %s42, 1
        %s880 = scalar_lea.vmem %s14, %s879
        %p881 = pneg %p424
        %p882 = pneg %p421
        %p883 = scmp.lt.s32.totalorder %s42, 1
        %s884 = scalar_select %p883, %s42, 1
        %s885 = smul.addr %s884, 4
        %s886 = smul.addr %s885, 4
        %s887 = scalar_lea.vmem %s15, %s886
        %p888 = pneg %p450
        %p889 = pneg %p447
        %p890 = scmp.lt.s32.totalorder %s42, 1
        %s891 = scalar_select %p890, %s42, 1
        %s892 = scalar_lea.vmem %s16, %s891
        %p893 = pneg %p476
        %p894 = pneg %p473
        %p895 = scmp.lt.s32.totalorder %s42, 1
        %s896 = scalar_select %p895, %s42, 1
        %s897 = smul.addr %s896, 8
        %s898 = smul.addr %s897, 4
        %s899 = scalar_lea.vmem %s17, %s898
        %p900 = pneg %p502
        %p901 = pneg %p499
        %p902 = scmp.lt.s32.totalorder %s42, 1
        %s903 = scalar_select %p902, %s42, 1
        %s904 = scalar_lea.vmem %s18, %s903
        %p905 = pneg %p528
        %p906 = pneg %p525
        %p907 = pneg %p549
        %p908 = pneg %p546
        %p909 = pneg %p570
        %p910 = pneg %p567
        %p911 = pneg %p591
        %p912 = pneg %p588
        %p913 = pneg %p612
        %p914 = pneg %p609
        %p915 = pneg %p638
        %p916 = pneg %p635
        %s917 = sand.u32 %s625, 1
        %s918 = scalar_lea.sflag [#allocation4], %s917
        %s919 = sand.u32 %s625, 1
        %s920 = scalar_lea.vmem [#allocation3], %s919
        %p921 = scmp.lt.s32.totalorder %s41, 1
        %s922 = scalar_select %p921, %s41, 1
        %s923 = smul.addr %s922, 3
        %s924 = smul.addr %s923, 8
        %s925 = scalar_lea.vmem %s0, %s924
        %p926 = scmp.lt.s32.totalorder %s42, 1
        %s927 = scalar_select %p926, %s42, 1
        %s928 = scalar_lea.vmem %s3, %s927
        %p929 = scmp.lt.s32.totalorder %s42, 1
        %s930 = scalar_select %p929, %s42, 1
        %s931 = scalar_lea.vmem %s4, %s930
        %p932 = scmp.lt.s32.totalorder %s42, 1
        %s933 = scalar_select %p932, %s42, 1
        %s934 = smul.addr %s933, 16
        %s935 = smul.addr %s934, 4
        %s936 = scalar_lea.vmem %s5, %s935
        %p937 = scmp.lt.s32.totalorder %s42, 1
        %s938 = scalar_select %p937, %s42, 1
        %s939 = smul.addr %s938, 16
        %s940 = smul.addr %s939, 4
        %s941 = scalar_lea.vmem %s6, %s940
        %p942 = scmp.lt.s32.totalorder %s42, 1
        %s943 = scalar_select %p942, %s42, 1
        %s944 = smul.addr %s943, 16
        %s945 = smul.addr %s944, 4
        %s946 = scalar_lea.vmem %s7, %s945
        %p947 = scmp.lt.s32.totalorder %s42, 1
        %s948 = scalar_select %p947, %s42, 1
        %s949 = smul.addr %s948, 4
        %s950 = scalar_lea.vmem %s8, %s949
        %p951 = scmp.lt.s32.totalorder %s42, 1
        %s952 = scalar_select %p951, %s42, 1
        %s953 = smul.addr %s952, 4
        %s954 = scalar_lea.vmem %s9, %s953
        %p955 = scmp.lt.s32.totalorder %s42, 1
        %s956 = scalar_select %p955, %s42, 1
        %s957 = smul.addr %s956, 4
        %s958 = scalar_lea.vmem %s10, %s957
        %p959 = scmp.lt.s32.totalorder %s42, 1
        %s960 = scalar_select %p959, %s42, 1
        %s961 = smul.addr %s960, 4
        %s962 = smul.addr %s961, 4
        %s963 = scalar_lea.vmem %s11, %s962
        %p964 = scmp.lt.s32.totalorder %s42, 1
        %s965 = scalar_select %p964, %s42, 1
        %s966 = scalar_lea.vmem %s12, %s965
        %p967 = scmp.lt.s32.totalorder %s42, 1
        %s968 = scalar_select %p967, %s42, 1
        %s969 = scalar_lea.vmem %s13, %s968
        %p970 = scmp.lt.s32.totalorder %s42, 1
        %s971 = scalar_select %p970, %s42, 1
        %s972 = scalar_lea.vmem %s14, %s971
        %p973 = scmp.lt.s32.totalorder %s42, 1
        %s974 = scalar_select %p973, %s42, 1
        %s975 = smul.addr %s974, 4
        %s976 = smul.addr %s975, 4
        %s977 = scalar_lea.vmem %s15, %s976
        %p978 = scmp.lt.s32.totalorder %s42, 1
        %s979 = scalar_select %p978, %s42, 1
        %s980 = scalar_lea.vmem %s16, %s979
        %p981 = scmp.lt.s32.totalorder %s42, 1
        %s982 = scalar_select %p981, %s42, 1
        %s983 = smul.addr %s982, 8
        %s984 = smul.addr %s983, 4
        %s985 = scalar_lea.vmem %s17, %s984
        %p986 = scmp.lt.s32.totalorder %s42, 1
        %s987 = scalar_select %p986, %s42, 1
        %s988 = scalar_lea.vmem %s18, %s987
        %p990 = scmp.eq.s32.totalorder %s42, 0
        // Predicated region
        $region113: #{vit_forward.1} parent=111 // pred_check
          %p991 = pneg %p990
        $region114: #{vit_forward.1} parent=111 // pred_check_branch
          %993 = sbr.rel (%p991) target = $region116
        $region115: #{vit_forward.1} parent=111 // pred_region
          %v994 = vld [vmem:[%s925] sm:$0xff]
          %v995 = vld [vmem:[%s925 + $0x8] sm:$0xff]
          %v996 = vld [vmem:[%s925 + $0x10] sm:$0x1]
          %v997 = vpack.c.bf16 %v995, %v994
          %v998 = vpack.c.bf16 %v996, %v996
          %v999 = vld [vmem:[%s1] sm:$0xf]
          %v1000 = vld [vmem:[%s1 + $0x4] sm:$0xf]
          %v1001 = vld [vmem:[%s1 + $0x8] sm:$0xf]
          %v1002 = vld [vmem:[%s1 + $0xc] sm:$0xf]
          %v1003 = vld [vmem:[%s1 + $0x10] sm:$0xf]
          %v1004 = vld [vmem:[%s1 + $0x14] sm:$0xf]
          %v1005 = vld [vmem:[%s2] sm:$0xff]
          %v1006 = vld [vmem:[%s2 + $0x8] sm:$0xff]
          %v1007 = vld [vmem:[%s2 + $0x10] sm:$0x1]
          %v1014 = vunpack.c.l.b16 %v999
          %v1015 = vunpack.c.l.b16 %v1000
          %v1016 = vunpack.c.l.b16 %v1001
          %v1017 = vunpack.c.l.b16 %v1002
          %v1018 = vunpack.c.l.b16 %v1003
          %v1019 = vunpack.c.l.b16 %v1004
          %v1020 = vpack.c.b16 %v1015, %v1014
          %v1021 = vpack.c.b16 %v1017, %v1016
          %v1022 = vpack.c.b16 %v1019, %v1018
          %vm1026 = vcmask 392192
          %v1028 = vsel %vm1026, %v997, 0
          %v1031 = vsel %vm1026, %v998, 0
          %1033 = vmatprep.subr.bf16.mxu0 0
          %1034 = vmatpush1.bf16.msra.mxu0 0
          %1035 = vmatprep.subr.bf16.mxu0 0
          %1036 = vmatpush1.bf16.msra.mxu0 0
          %1037 = vmatprep.subr.bf16.mxu0 0
          %1038 = vmatpush1.bf16.msra.mxu0 0
          %1039 = vmatprep.subr.bf16.mxu0 0
          %1040 = vmatpush1.bf16.msra.mxu0 0
          %1041 = vmatprep.subr.bf16.mxu0 0
          %1042 = vmatpush1.bf16.msra.mxu0 0
          %1043 = vmatprep.subr.bf16.mxu0 0
          %1044 = vmatpush1.bf16.msra.mxu0 %v1022
          %1045 = vmatprep.subr.bf16.mxu0 0
          %1046 = vmatpush1.bf16.msra.mxu0 %v1021
          %1047 = vmatprep.subr.bf16.mxu0 0
          %1048 = vmatpush1.bf16.msra.mxu0 %v1020
          %1049 = vmatprep.subr.bf16.mxu0 0
          %1050 = vmatpush2.bf16.msra.mxu0 0
          %1051 = vmatprep.subr.bf16.mxu0 0
          %1052 = vmatpush2.bf16.msra.mxu0 0
          %1053 = vmatprep.subr.bf16.mxu0 0
          %1054 = vmatpush2.bf16.msra.mxu0 0
          %1055 = vmatprep.subr.bf16.mxu0 0
          %1056 = vmatpush2.bf16.msra.mxu0 0
          %1057 = vmatprep.subr.bf16.mxu0 0
          %1058 = vmatpush2.bf16.msra.mxu0 0
          %1059 = vmatprep.subr.bf16.mxu0 0
          %1060 = vmatpush2.bf16.msra.mxu0 0
          %1061 = vmatprep.subr.bf16.mxu0 0
          %1062 = vmatpush2.bf16.msra.mxu0 0
          %1063 = vmatprep.subr.bf16.mxu0 0
          %1064 = vmatpush2.bf16.msra.mxu0 0
          %1065 = vmatprep.mubr.bf16.mxu0 0
          %1066 = vmatmul.mubr.bf16.gmra.mxu0 %v1028
          %v1067 = vpop.f32.mrf.mxu0
          %v1068 = vadd.f32 %v1005, %v1067
          %v1069 = vpop.f32.mrf.mxu0
          %v1070 = vpop.f32.mrf.mxu0
          %v1071 = vadd.f32 %v1006, %v1070
          %v1072 = vpop.f32.mrf.mxu0
          %1073 = vmatprep.mubr.bf16.mxu0 0
          %1074 = vmatmul.mubr.bf16.gmra.mxu0 %v1031
          %v1075 = vpop.f32.mrf.mxu0
          %v1076 = vadd.f32 %v1007, %v1075
          %v1077 = vpop.f32.mrf.mxu0
          %v1078 = vpop.f32.mrf.mxu0
          %v1079 = vpop.f32.mrf.mxu0
          %1080 = vdwg.mxu0
          %vm1081 = vcmask 261120
          %1082 = vst.msk [vmem:[#allocation2] sm:$0xff] %vm1081, %v1068
          %1083 = vst.msk [vmem:[#allocation2 + $0x8] sm:$0xff] %vm1081, %v1071
          %vm1084 = vcmask 253952
          %1085 = vst.msk [vmem:[#allocation2 + $0x10] sm:$0x1] %vm1084, %v1076
        $region116: #{vit_forward.1} parent=111 // pred_fallthru
          _
        %v1086 = vld [vmem:[#allocation2] sm:$0xff]
        %v1087 = vld [vmem:[#allocation2 + $0x8] sm:$0xff]
        %v1088 = vld [vmem:[#allocation2 + $0x10] sm:$0x1]
        %v1089 = vld [vmem:[%s928] sm:$0x1]
        %v1090 = vld [vmem:[%s931] sm:$0x1]
        %vm1091 = vcmask 261120
        %v1092 = vsel %vm1091, %v1086, 0.0
        %1093 = vadd.xlane.f32.xlu0 %v1092
        %v1094 = vpop.xlane.xlu0 %1093
        %v1095 = vsel %vm1091, %v1087, 0.0
        %1096 = vadd.xlane.f32.xlu0 %v1095
        %v1097 = vpop.xlane.xlu0 %1096
        %vm1098 = vcmask 253952
        %v1099 = vsel %vm1098, %v1088, 0.0
        %1100 = vadd.xlane.f32.xlu0 %v1099
        %v1101 = vpop.xlane.xlu0 %1100
        %v1102 = vrcp.pop 32.0
        %v1103 = vmul.f32 %v1094, %v1102
        %v1104 = vmul.f32 %v1097, %v1102
        %v1105 = vmul.f32 %v1101, %v1102
        %v1106 = vsub.f32 %v1086, %v1103
        %v1107 = vsub.f32 %v1087, %v1104
        %v1108 = vsub.f32 %v1088, %v1105
        %v1109 = vmul.f32 %v1106, %v1106
        %v1110 = vmul.f32 %v1107, %v1107
        %v1111 = vmul.f32 %v1108, %v1108
        %v1112 = vsel %vm1091, %v1109, 0.0
        %1113 = vadd.xlane.f32.xlu0 %v1112
        %v1114 = vpop.xlane.xlu0 %1113
        %v1115 = vsel %vm1091, %v1110, 0.0
        %1116 = vadd.xlane.f32.xlu0 %v1115
        %v1117 = vpop.xlane.xlu0 %1116
        %v1118 = vsel %vm1098, %v1111, 0.0
        %1119 = vadd.xlane.f32.xlu0 %v1118
        %v1120 = vpop.xlane.xlu0 %1119
        %v1121 = vmul.f32 %v1114, %v1102
        %v1122 = vmul.f32 %v1117, %v1102
        %v1123 = vmul.f32 %v1120, %v1102
        %v1124 = vadd.f32 %v1121, 1e-05
        %v1125 = vadd.f32 %v1122, 1e-05
        %v1126 = vadd.f32 %v1123, 1e-05
        %v1127 = vrsqrt.pop %v1124
        %v1128 = vrsqrt.pop %v1125
        %v1129 = vrsqrt.pop %v1126
        %v1130 = vmul.f32 %v1106, %v1127
        %v1131 = vmul.f32 %v1107, %v1128
        %v1132 = vmul.f32 %v1108, %v1129
        %v1134 = vlaneseq
        %v1135 = vshrl.u32 %v1134, 7
        %v1136 = vsub.s32 0, %v1135
        %v1137 = vrot.slane %v1089, %v1136
        %v1139 = vmul.f32 %v1130, %v1137
        %v1140 = vmul.f32 %v1131, %v1137
        %v1141 = vmul.f32 %v1132, %v1137
        %v1143 = vlaneseq
        %v1144 = vshrl.u32 %v1143, 7
        %v1145 = vsub.s32 0, %v1144
        %v1146 = vrot.slane %v1090, %v1145
        %v1148 = vadd.f32 %v1139, %v1146
        %v1149 = vadd.f32 %v1140, %v1146
        %v1150 = vadd.f32 %v1141, %v1146
        %v1151 = vpack.c.bf16 %v1149, %v1148
        %v1152 = vpack.c.bf16 %v1150, %v1150
        %v1153 = vld [vmem:[%s936] sm:$0xf]
        %v1154 = vld [vmem:[%s936 + $0x4] sm:$0xf]
        %v1155 = vld [vmem:[%s936 + $0x8] sm:$0xf]
        %v1156 = vld [vmem:[%s936 + $0xc] sm:$0xf]
        %v1157 = vld [vmem:[%s950] sm:$0x1]
        %v1159 = vlaneseq
        %v1160 = vshrl.u32 %v1159, 7
        %v1161 = vsub.s32 0, %v1160
        %v1162 = vrot.slane %v1157, %v1161
        %v1168 = vunpack.c.l.b16 %v1153
        %v1169 = vunpack.c.l.b16 %v1154
        %v1170 = vunpack.c.l.b16 %v1155
        %v1171 = vunpack.c.l.b16 %v1156
        %v1172 = vpack.c.b16 %v1169, %v1168
        %v1173 = vpack.c.b16 %v1171, %v1170
        %v1177 = vsel %vm1091, %v1151, 0
        %v1180 = vsel %vm1091, %v1152, 0
        %1182 = vmatprep.subr.bf16.mxu0 0
        %1183 = vmatpush1.bf16.msra.mxu0 0
        %1184 = vmatprep.subr.bf16.mxu0 0
        %1185 = vmatpush1.bf16.msra.mxu0 0
        %1186 = vmatprep.subr.bf16.mxu0 0
        %1187 = vmatpush1.bf16.msra.mxu0 0
        %1188 = vmatprep.subr.bf16.mxu0 0
        %1189 = vmatpush1.bf16.msra.mxu0 0
        %1190 = vmatprep.subr.bf16.mxu0 0
        %1191 = vmatpush1.bf16.msra.mxu0 0
        %1192 = vmatprep.subr.bf16.mxu0 0
        %1193 = vmatpush1.bf16.msra.mxu0 0
        %1194 = vmatprep.subr.bf16.mxu0 0
        %1195 = vmatpush1.bf16.msra.mxu0 %v1173
        %1196 = vmatprep.subr.bf16.mxu0 0
        %1197 = vmatpush1.bf16.msra.mxu0 %v1172
        %1198 = vmatprep.subr.bf16.mxu0 0
        %1199 = vmatpush2.bf16.msra.mxu0 0
        %1200 = vmatprep.subr.bf16.mxu0 0
        %1201 = vmatpush2.bf16.msra.mxu0 0
        %1202 = vmatprep.subr.bf16.mxu0 0
        %1203 = vmatpush2.bf16.msra.mxu0 0
        %1204 = vmatprep.subr.bf16.mxu0 0
        %1205 = vmatpush2.bf16.msra.mxu0 0
        %1206 = vmatprep.subr.bf16.mxu0 0
        %1207 = vmatpush2.bf16.msra.mxu0 0
        %1208 = vmatprep.subr.bf16.mxu0 0
        %1209 = vmatpush2.bf16.msra.mxu0 0
        %1210 = vmatprep.subr.bf16.mxu0 0
        %1211 = vmatpush2.bf16.msra.mxu0 0
        %1212 = vmatprep.subr.bf16.mxu0 0
        %1213 = vmatpush2.bf16.msra.mxu0 0
        %1214 = vmatprep.mubr.bf16.mxu0 0
        %1215 = vmatmul.mubr.bf16.gmra.mxu0 %v1177
        %v1216 = vpop.f32.mrf.mxu0
        %v1217 = vadd.f32 %v1162, %v1216
        %v1218 = vpop.f32.mrf.mxu0
        %v1219 = vpop.f32.mrf.mxu0
        %v1220 = vadd.f32 %v1162, %v1219
        %v1221 = vpop.f32.mrf.mxu0
        %1222 = vmatprep.mubr.bf16.mxu0 0
        %1223 = vmatmul.mubr.bf16.gmra.mxu0 %v1180
        %v1224 = vpop.f32.mrf.mxu0
        %v1225 = vadd.f32 %v1162, %v1224
        %v1226 = vpop.f32.mrf.mxu0
        %v1227 = vpop.f32.mrf.mxu0
        %v1228 = vpop.f32.mrf.mxu0
        %1229 = vdwg.mxu0
        %v1230 = vld [vmem:[%s941] sm:$0xf]
        %v1231 = vld [vmem:[%s941 + $0x4] sm:$0xf]
        %v1232 = vld [vmem:[%s941 + $0x8] sm:$0xf]
        %v1233 = vld [vmem:[%s941 + $0xc] sm:$0xf]
        %v1234 = vld [vmem:[%s954] sm:$0x1]
        %v1236 = vlaneseq
        %v1237 = vshrl.u32 %v1236, 7
        %v1238 = vsub.s32 0, %v1237
        %v1239 = vrot.slane %v1234, %v1238
        %v1245 = vunpack.c.l.b16 %v1230
        %v1246 = vunpack.c.l.b16 %v1231
        %v1247 = vunpack.c.l.b16 %v1232
        %v1248 = vunpack.c.l.b16 %v1233
        %v1249 = vpack.c.b16 %v1246, %v1245
        %v1250 = vpack.c.b16 %v1248, %v1247
        %1253 = vmatprep.subr.bf16.mxu0 0
        %1254 = vmatpush1.bf16.msra.mxu0 0
        %1255 = vmatprep.subr.bf16.mxu0 0
        %1256 = vmatpush1.bf16.msra.mxu0 0
        %1257 = vmatprep.subr.bf16.mxu0 0
        %1258 = vmatpush1.bf16.msra.mxu0 0
        %1259 = vmatprep.subr.bf16.mxu0 0
        %1260 = vmatpush1.bf16.msra.mxu0 0
        %1261 = vmatprep.subr.bf16.mxu0 0
        %1262 = vmatpush1.bf16.msra.mxu0 0
        %1263 = vmatprep.subr.bf16.mxu0 0
        %1264 = vmatpush1.bf16.msra.mxu0 0
        %1265 = vmatprep.subr.bf16.mxu0 0
        %1266 = vmatpush1.bf16.msra.mxu0 %v1250
        %1267 = vmatprep.subr.bf16.mxu0 0
        %1268 = vmatpush1.bf16.msra.mxu0 %v1249
        %1269 = vmatprep.subr.bf16.mxu0 0
        %1270 = vmatpush2.bf16.msra.mxu0 0
        %1271 = vmatprep.subr.bf16.mxu0 0
        %1272 = vmatpush2.bf16.msra.mxu0 0
        %1273 = vmatprep.subr.bf16.mxu0 0
        %1274 = vmatpush2.bf16.msra.mxu0 0
        %1275 = vmatprep.subr.bf16.mxu0 0
        %1276 = vmatpush2.bf16.msra.mxu0 0
        %1277 = vmatprep.subr.bf16.mxu0 0
        %1278 = vmatpush2.bf16.msra.mxu0 0
        %1279 = vmatprep.subr.bf16.mxu0 0
        %1280 = vmatpush2.bf16.msra.mxu0 0
        %1281 = vmatprep.subr.bf16.mxu0 0
        %1282 = vmatpush2.bf16.msra.mxu0 0
        %1283 = vmatprep.subr.bf16.mxu0 0
        %1284 = vmatpush2.bf16.msra.mxu0 0
        %1285 = vmatprep.mubr.bf16.mxu0 0
        %1286 = vmatmul.mubr.bf16.gmra.mxu0 %v1177
        %v1287 = vpop.f32.mrf.mxu0
        %v1288 = vadd.f32 %v1239, %v1287
        %v1289 = vpop.f32.mrf.mxu0
        %v1290 = vpop.f32.mrf.mxu0
        %v1291 = vadd.f32 %v1239, %v1290
        %v1292 = vpop.f32.mrf.mxu0
        %1293 = vmatprep.mubr.bf16.mxu0 0
        %1294 = vmatmul.mubr.bf16.gmra.mxu0 %v1180
        %v1295 = vpop.f32.mrf.mxu0
        %v1296 = vadd.f32 %v1239, %v1295
        %v1297 = vpop.f32.mrf.mxu0
        %v1298 = vpop.f32.mrf.mxu0
        %v1299 = vpop.f32.mrf.mxu0
        %1300 = vdwg.mxu0
        %v1301 = vld [vmem:[%s946] sm:$0xf]
        %v1302 = vld [vmem:[%s946 + $0x4] sm:$0xf]
        %v1303 = vld [vmem:[%s946 + $0x8] sm:$0xf]
        %v1304 = vld [vmem:[%s946 + $0xc] sm:$0xf]
        %v1305 = vld [vmem:[%s958] sm:$0x1]
        %v1307 = vlaneseq
        %v1308 = vshrl.u32 %v1307, 7
        %v1309 = vsub.s32 0, %v1308
        %v1310 = vrot.slane %v1305, %v1309
        %v1316 = vunpack.c.l.b16 %v1301
        %v1317 = vunpack.c.l.b16 %v1302
        %v1318 = vunpack.c.l.b16 %v1303
        %v1319 = vunpack.c.l.b16 %v1304
        %v1320 = vpack.c.b16 %v1317, %v1316
        %v1321 = vpack.c.b16 %v1319, %v1318
        %1324 = vmatprep.subr.bf16.mxu0 0
        %1325 = vmatpush1.bf16.msra.mxu0 0
        %1326 = vmatprep.subr.bf16.mxu0 0
        %1327 = vmatpush1.bf16.msra.mxu0 0
        %1328 = vmatprep.subr.bf16.mxu0 0
        %1329 = vmatpush1.bf16.msra.mxu0 0
        %1330 = vmatprep.subr.bf16.mxu0 0
        %1331 = vmatpush1.bf16.msra.mxu0 0
        %1332 = vmatprep.subr.bf16.mxu0 0
        %1333 = vmatpush1.bf16.msra.mxu0 0
        %1334 = vmatprep.subr.bf16.mxu0 0
        %1335 = vmatpush1.bf16.msra.mxu0 0
        %1336 = vmatprep.subr.bf16.mxu0 0
        %1337 = vmatpush1.bf16.msra.mxu0 %v1321
        %1338 = vmatprep.subr.bf16.mxu0 0
        %1339 = vmatpush1.bf16.msra.mxu0 %v1320
        %1340 = vmatprep.subr.bf16.mxu0 0
        %1341 = vmatpush2.bf16.msra.mxu0 0
        %1342 = vmatprep.subr.bf16.mxu0 0
        %1343 = vmatpush2.bf16.msra.mxu0 0
        %1344 = vmatprep.subr.bf16.mxu0 0
        %1345 = vmatpush2.bf16.msra.mxu0 0
        %1346 = vmatprep.subr.bf16.mxu0 0
        %1347 = vmatpush2.bf16.msra.mxu0 0
        %1348 = vmatprep.subr.bf16.mxu0 0
        %1349 = vmatpush2.bf16.msra.mxu0 0
        %1350 = vmatprep.subr.bf16.mxu0 0
        %1351 = vmatpush2.bf16.msra.mxu0 0
        %1352 = vmatprep.subr.bf16.mxu0 0
        %1353 = vmatpush2.bf16.msra.mxu0 0
        %1354 = vmatprep.subr.bf16.mxu0 0
        %1355 = vmatpush2.bf16.msra.mxu0 0
        %1356 = vmatprep.mubr.bf16.mxu0 0
        %1357 = vmatmul.mubr.bf16.gmra.mxu0 %v1177
        %v1358 = vpop.f32.mrf.mxu0
        %v1359 = vadd.f32 %v1310, %v1358
        %v1360 = vpop.f32.mrf.mxu0
        %v1361 = vpop.f32.mrf.mxu0
        %v1362 = vadd.f32 %v1310, %v1361
        %v1363 = vpop.f32.mrf.mxu0
        %1364 = vmatprep.mubr.bf16.mxu0 0
        %1365 = vmatmul.mubr.bf16.gmra.mxu0 %v1180
        %v1366 = vpop.f32.mrf.mxu0
        %v1367 = vadd.f32 %v1310, %v1366
        %v1368 = vpop.f32.mrf.mxu0
        %v1369 = vpop.f32.mrf.mxu0
        %v1370 = vpop.f32.mrf.mxu0
        %1371 = vdwg.mxu0
        %v1372 = vmul.f32 %v1217, 0.35355338
        %v1373 = vmul.f32 %v1220, 0.35355338
        %v1374 = vmul.f32 %v1225, 0.35355338
        %v1375 = vpack.c.bf16 %v1373, %v1372
        %v1376 = vpack.c.bf16 %v1374, %v1374
        %v1377 = vpack.c.bf16 %v1291, %v1288
        %v1378 = vpack.c.bf16 %v1296, %v1296
        %vm1379 = vcmask 64512
        %v1381 = vsel %vm1379, %v1375, 0
        %v1384 = vsel %vm1379, %v1376, 0
        %v1387 = vsel %vm1379, %v1377, 0
        %v1390 = vsel %vm1379, %v1378, 0
        %1392 = vmatprep.subr.bf16.mxu0 0
        %1393 = vmatpush1.bf16.xpose.msra.mxu0 0
        %1394 = vmatprep.subr.bf16.mxu0 0
        %1395 = vmatpush1.bf16.xpose.msra.mxu0 0
        %1396 = vmatprep.subr.bf16.mxu0 0
        %1397 = vmatpush1.bf16.xpose.msra.mxu0 0
        %1398 = vmatprep.subr.bf16.mxu0 0
        %1399 = vmatpush1.bf16.xpose.msra.mxu0 0
        %1400 = vmatprep.subr.bf16.mxu0 0
        %1401 = vmatpush1.bf16.xpose.msra.mxu0 0
        %1402 = vmatprep.subr.bf16.mxu0 0
        %1403 = vmatpush1.bf16.xpose.msra.mxu0 0
        %1404 = vmatprep.subr.bf16.mxu0 0
        %1405 = vmatpush1.bf16.xpose.msra.mxu0 %v1390
        %1406 = vmatprep.subr.bf16.mxu0 0
        %1407 = vmatpush1.bf16.xpose.msra.mxu0 %v1387
        %1408 = vmatprep.subr.bf16.mxu0 0
        %1409 = vmatpush2.bf16.xpose.msra.mxu0 0
        %1410 = vmatprep.subr.bf16.mxu0 0
        %1411 = vmatpush2.bf16.xpose.msra.mxu0 0
        %1412 = vmatprep.subr.bf16.mxu0 0
        %1413 = vmatpush2.bf16.xpose.msra.mxu0 0
        %1414 = vmatprep.subr.bf16.mxu0 0
        %1415 = vmatpush2.bf16.xpose.msra.mxu0 0
        %1416 = vmatprep.subr.bf16.mxu0 0
        %1417 = vmatpush2.bf16.xpose.msra.mxu0 0
        %1418 = vmatprep.subr.bf16.mxu0 0
        %1419 = vmatpush2.bf16.xpose.msra.mxu0 0
        %1420 = vmatprep.subr.bf16.mxu0 0
        %1421 = vmatpush2.bf16.xpose.msra.mxu0 0
        %1422 = vmatprep.subr.bf16.mxu0 0
        %1423 = vmatpush2.bf16.xpose.msra.mxu0 0
        %1424 = vmatprep.mubr.bf16.mxu0 0
        %1425 = vmatmul.mubr.bf16.gmra.mxu0 %v1381
        %v1426 = vpop.f32.mrf.mxu0
        %v1427 = vadd.f32 0.0, %v1426
        %v1428 = vpop.f32.mrf.mxu0
        %v1429 = vpop.f32.mrf.mxu0
        %v1430 = vadd.f32 0.0, %v1429
        %v1431 = vpop.f32.mrf.mxu0
        %1432 = vmatprep.mubr.bf16.mxu0 0
        %1433 = vmatmul.mubr.bf16.gmra.mxu0 %v1384
        %v1434 = vpop.f32.mrf.mxu0
        %v1435 = vadd.f32 0.0, %v1434
        %v1436 = vpop.f32.mrf.mxu0
        %v1437 = vpop.f32.mrf.mxu0
        %v1438 = vpop.f32.mrf.mxu0
        %1439 = vdwg.mxu0
        %vm1440 = vcmask 138240
        %v1441 = vsel %vm1440, %v1427, -inf
        %1442 = vmax.xlane.f32.xlu0 %v1441
        %v1443 = vpop.xlane.xlu0 %1442
        %v1444 = vsel %vm1440, %v1430, -inf
        %1445 = vmax.xlane.f32.xlu0 %v1444
        %v1446 = vpop.xlane.xlu0 %1445
        %vm1447 = vcmask 131072
        %v1448 = vsel %vm1447, %v1435, -inf
        %1449 = vmax.xlane.f32.xlu0 %v1448
        %v1450 = vpop.xlane.xlu0 %1449
        %v1451 = vsub.f32 %v1427, %v1443
        %v1452 = vsub.f32 %v1430, %v1446
        %v1453 = vsub.f32 %v1435, %v1450
        %v1454 = vmul.f32 %v1451, 1.442695
        %v1455 = vpow.pop %v1454
        %v1456 = vmul.f32 %v1452, 1.442695
        %v1457 = vpow.pop %v1456
        %v1458 = vmul.f32 %v1453, 1.442695
        %v1459 = vpow.pop %v1458
        %v1460 = vsel %vm1440, %v1455, 0.0
        %1461 = vadd.xlane.f32.xlu0 %v1460
        %v1462 = vpop.xlane.xlu0 %1461
        %v1463 = vsel %vm1440, %v1457, 0.0
        %1464 = vadd.xlane.f32.xlu0 %v1463
        %v1465 = vpop.xlane.xlu0 %1464
        %v1466 = vsel %vm1447, %v1459, 0.0
        %1467 = vadd.xlane.f32.xlu0 %v1466
        %v1468 = vpop.xlane.xlu0 %1467
        %v1469 = vrcp.pop %v1462
        %v1470 = vrcp.pop %v1465
        %v1471 = vrcp.pop %v1468
        %v1472 = vmul.f32 %v1455, %v1469
        %v1473 = vmul.f32 %v1457, %v1470
        %v1474 = vmul.f32 %v1459, %v1471
        %v1475 = vpack.c.bf16 %v1473, %v1472
        %v1476 = vpack.c.bf16 %v1474, %v1474
        %v1477 = vpack.c.bf16 %v1362, %v1359
        %v1478 = vpack.c.bf16 %v1367, %v1367
        %v1480 = vsel %vm1440, %v1475, 0
        %v1483 = vsel %vm1440, %v1476, 0
        %vm1485 = vcmask 1040384
        %v1486 = vsel 0, 4294967295, 65535
        %v1487 = vsel %vm1485, %v1486, 0
        %v1489 = vand.u32 %v1478, %v1487
        %1491 = vmatprep.subr.bf16.mxu0 0
        %1492 = vmatpush1.bf16.msra.mxu0 0
        %1493 = vmatprep.subr.bf16.mxu0 0
        %1494 = vmatpush1.bf16.msra.mxu0 0
        %1495 = vmatprep.subr.bf16.mxu0 0
        %1496 = vmatpush1.bf16.msra.mxu0 0
        %1497 = vmatprep.subr.bf16.mxu0 0
        %1498 = vmatpush1.bf16.msra.mxu0 0
        %1499 = vmatprep.subr.bf16.mxu0 0
        %1500 = vmatpush1.bf16.msra.mxu0 0
        %1501 = vmatprep.subr.bf16.mxu0 0
        %1502 = vmatpush1.bf16.msra.mxu0 0
        %1503 = vmatprep.subr.bf16.mxu0 0
        %1504 = vmatpush1.bf16.msra.mxu0 %v1489
        %1505 = vmatprep.subr.bf16.mxu0 0
        %1506 = vmatpush1.bf16.msra.mxu0 %v1477
        %1507 = vmatprep.subr.bf16.mxu0 0
        %1508 = vmatpush2.bf16.msra.mxu0 0
        %1509 = vmatprep.subr.bf16.mxu0 0
        %1510 = vmatpush2.bf16.msra.mxu0 0
        %1511 = vmatprep.subr.bf16.mxu0 0
        %1512 = vmatpush2.bf16.msra.mxu0 0
        %1513 = vmatprep.subr.bf16.mxu0 0
        %1514 = vmatpush2.bf16.msra.mxu0 0
        %1515 = vmatprep.subr.bf16.mxu0 0
        %1516 = vmatpush2.bf16.msra.mxu0 0
        %1517 = vmatprep.subr.bf16.mxu0 0
        %1518 = vmatpush2.bf16.msra.mxu0 0
        %1519 = vmatprep.subr.bf16.mxu0 0
        %1520 = vmatpush2.bf16.msra.mxu0 0
        %1521 = vmatprep.subr.bf16.mxu0 0
        %1522 = vmatpush2.bf16.msra.mxu0 0
        %1523 = vmatprep.mubr.bf16.mxu0 0
        %1524 = vmatmul.mubr.bf16.gmra.mxu0 %v1480
        %v1525 = vpop.f32.mrf.mxu0
        %v1526 = vadd.f32 0.0, %v1525
        %v1527 = vpop.f32.mrf.mxu0
        %v1528 = vpop.f32.mrf.mxu0
        %v1529 = vadd.f32 0.0, %v1528
        %v1530 = vpop.f32.mrf.mxu0
        %1531 = vmatprep.mubr.bf16.mxu0 0
        %1532 = vmatmul.mubr.bf16.gmra.mxu0 %v1483
        %v1533 = vpop.f32.mrf.mxu0
        %v1534 = vadd.f32 0.0, %v1533
        %v1535 = vpop.f32.mrf.mxu0
        %v1536 = vpop.f32.mrf.mxu0
        %v1537 = vpop.f32.mrf.mxu0
        %1538 = vdwg.mxu0
        %v1539 = vpack.c.bf16 %v1529, %v1526
        %v1540 = vpack.c.bf16 %v1534, %v1534
        %v1541 = vld [vmem:[%s963] sm:$0xf]
        %s1542 = scalar_lea.vmem %s936, 16
        %v1543 = vld [vmem:[%s1542] sm:$0xf]
        %v1544 = vld [vmem:[%s1542 + $0x4] sm:$0xf]
        %v1545 = vld [vmem:[%s1542 + $0x8] sm:$0xf]
        %v1546 = vld [vmem:[%s1542 + $0xc] sm:$0xf]
        %s1547 = scalar_lea.vmem %s950, 1
        %v1548 = vld [vmem:[%s1547] sm:$0x1]
        %v1550 = vlaneseq
        %v1551 = vshrl.u32 %v1550, 7
        %v1552 = vsub.s32 0, %v1551
        %v1553 = vrot.slane %v1548, %v1552
        %v1559 = vunpack.c.l.b16 %v1543
        %v1560 = vunpack.c.l.b16 %v1544
        %v1561 = vunpack.c.l.b16 %v1545
        %v1562 = vunpack.c.l.b16 %v1546
        %v1563 = vpack.c.b16 %v1560, %v1559
        %v1564 = vpack.c.b16 %v1562, %v1561
        %1567 = vmatprep.subr.bf16.mxu0 0
        %1568 = vmatpush1.bf16.msra.mxu0 0
        %1569 = vmatprep.subr.bf16.mxu0 0
        %1570 = vmatpush1.bf16.msra.mxu0 0
        %1571 = vmatprep.subr.bf16.mxu0 0
        %1572 = vmatpush1.bf16.msra.mxu0 0
        %1573 = vmatprep.subr.bf16.mxu0 0
        %1574 = vmatpush1.bf16.msra.mxu0 0
        %1575 = vmatprep.subr.bf16.mxu0 0
        %1576 = vmatpush1.bf16.msra.mxu0 0
        %1577 = vmatprep.subr.bf16.mxu0 0
        %1578 = vmatpush1.bf16.msra.mxu0 0
        %1579 = vmatprep.subr.bf16.mxu0 0
        %1580 = vmatpush1.bf16.msra.mxu0 %v1564
        %1581 = vmatprep.subr.bf16.mxu0 0
        %1582 = vmatpush1.bf16.msra.mxu0 %v1563
        %1583 = vmatprep.subr.bf16.mxu0 0
        %1584 = vmatpush2.bf16.msra.mxu0 0
        %1585 = vmatprep.subr.bf16.mxu0 0
        %1586 = vmatpush2.bf16.msra.mxu0 0
        %1587 = vmatprep.subr.bf16.mxu0 0
        %1588 = vmatpush2.bf16.msra.mxu0 0
        %1589 = vmatprep.subr.bf16.mxu0 0
        %1590 = vmatpush2.bf16.msra.mxu0 0
        %1591 = vmatprep.subr.bf16.mxu0 0
        %1592 = vmatpush2.bf16.msra.mxu0 0
        %1593 = vmatprep.subr.bf16.mxu0 0
        %1594 = vmatpush2.bf16.msra.mxu0 0
        %1595 = vmatprep.subr.bf16.mxu0 0
        %1596 = vmatpush2.bf16.msra.mxu0 0
        %1597 = vmatprep.subr.bf16.mxu0 0
        %1598 = vmatpush2.bf16.msra.mxu0 0
        %1599 = vmatprep.mubr.bf16.mxu0 0
        %1600 = vmatmul.mubr.bf16.gmra.mxu0 %v1177
        %v1601 = vpop.f32.mrf.mxu0
        %v1602 = vadd.f32 %v1553, %v1601
        %v1603 = vpop.f32.mrf.mxu0
        %v1604 = vpop.f32.mrf.mxu0
        %v1605 = vadd.f32 %v1553, %v1604
        %v1606 = vpop.f32.mrf.mxu0
        %1607 = vmatprep.mubr.bf16.mxu0 0
        %1608 = vmatmul.mubr.bf16.gmra.mxu0 %v1180
        %v1609 = vpop.f32.mrf.mxu0
        %v1610 = vadd.f32 %v1553, %v1609
        %v1611 = vpop.f32.mrf.mxu0
        %v1612 = vpop.f32.mrf.mxu0
        %v1613 = vpop.f32.mrf.mxu0
        %1614 = vdwg.mxu0
        %s1615 = scalar_lea.vmem %s941, 16
        %v1616 = vld [vmem:[%s1615] sm:$0xf]
        %v1617 = vld [vmem:[%s1615 + $0x4] sm:$0xf]
        %v1618 = vld [vmem:[%s1615 + $0x8] sm:$0xf]
        %v1619 = vld [vmem:[%s1615 + $0xc] sm:$0xf]
        %s1620 = scalar_lea.vmem %s954, 1
        %v1621 = vld [vmem:[%s1620] sm:$0x1]
        %v1623 = vlaneseq
        %v1624 = vshrl.u32 %v1623, 7
        %v1625 = vsub.s32 0, %v1624
        %v1626 = vrot.slane %v1621, %v1625
        %v1632 = vunpack.c.l.b16 %v1616
        %v1633 = vunpack.c.l.b16 %v1617
        %v1634 = vunpack.c.l.b16 %v1618
        %v1635 = vunpack.c.l.b16 %v1619
        %v1636 = vpack.c.b16 %v1633, %v1632
        %v1637 = vpack.c.b16 %v1635, %v1634
        %1640 = vmatprep.subr.bf16.mxu0 0
        %1641 = vmatpush1.bf16.msra.mxu0 0
        %1642 = vmatprep.subr.bf16.mxu0 0
        %1643 = vmatpush1.bf16.msra.mxu0 0
        %1644 = vmatprep.subr.bf16.mxu0 0
        %1645 = vmatpush1.bf16.msra.mxu0 0
        %1646 = vmatprep.subr.bf16.mxu0 0
        %1647 = vmatpush1.bf16.msra.mxu0 0
        %1648 = vmatprep.subr.bf16.mxu0 0
        %1649 = vmatpush1.bf16.msra.mxu0 0
        %1650 = vmatprep.subr.bf16.mxu0 0
        %1651 = vmatpush1.bf16.msra.mxu0 0
        %1652 = vmatprep.subr.bf16.mxu0 0
        %1653 = vmatpush1.bf16.msra.mxu0 %v1637
        %1654 = vmatprep.subr.bf16.mxu0 0
        %1655 = vmatpush1.bf16.msra.mxu0 %v1636
        %1656 = vmatprep.subr.bf16.mxu0 0
        %1657 = vmatpush2.bf16.msra.mxu0 0
        %1658 = vmatprep.subr.bf16.mxu0 0
        %1659 = vmatpush2.bf16.msra.mxu0 0
        %1660 = vmatprep.subr.bf16.mxu0 0
        %1661 = vmatpush2.bf16.msra.mxu0 0
        %1662 = vmatprep.subr.bf16.mxu0 0
        %1663 = vmatpush2.bf16.msra.mxu0 0
        %1664 = vmatprep.subr.bf16.mxu0 0
        %1665 = vmatpush2.bf16.msra.mxu0 0
        %1666 = vmatprep.subr.bf16.mxu0 0
        %1667 = vmatpush2.bf16.msra.mxu0 0
        %1668 = vmatprep.subr.bf16.mxu0 0
        %1669 = vmatpush2.bf16.msra.mxu0 0
        %1670 = vmatprep.subr.bf16.mxu0 0
        %1671 = vmatpush2.bf16.msra.mxu0 0
        %1672 = vmatprep.mubr.bf16.mxu0 0
        %1673 = vmatmul.mubr.bf16.gmra.mxu0 %v1177
        %v1674 = vpop.f32.mrf.mxu0
        %v1675 = vadd.f32 %v1626, %v1674
        %v1676 = vpop.f32.mrf.mxu0
        %v1677 = vpop.f32.mrf.mxu0
        %v1678 = vadd.f32 %v1626, %v1677
        %v1679 = vpop.f32.mrf.mxu0
        %1680 = vmatprep.mubr.bf16.mxu0 0
        %1681 = vmatmul.mubr.bf16.gmra.mxu0 %v1180
        %v1682 = vpop.f32.mrf.mxu0
        %v1683 = vadd.f32 %v1626, %v1682
        %v1684 = vpop.f32.mrf.mxu0
        %v1685 = vpop.f32.mrf.mxu0
        %v1686 = vpop.f32.mrf.mxu0
        %1687 = vdwg.mxu0
        %s1688 = scalar_lea.vmem %s946, 16
        %v1689 = vld [vmem:[%s1688] sm:$0xf]
        %v1690 = vld [vmem:[%s1688 + $0x4] sm:$0xf]
        %v1691 = vld [vmem:[%s1688 + $0x8] sm:$0xf]
        %v1692 = vld [vmem:[%s1688 + $0xc] sm:$0xf]
        %s1693 = scalar_lea.vmem %s958, 1
        %v1694 = vld [vmem:[%s1693] sm:$0x1]
        %v1696 = vlaneseq
        %v1697 = vshrl.u32 %v1696, 7
        %v1698 = vsub.s32 0, %v1697
        %v1699 = vrot.slane %v1694, %v1698
        %v1705 = vunpack.c.l.b16 %v1689
        %v1706 = vunpack.c.l.b16 %v1690
        %v1707 = vunpack.c.l.b16 %v1691
        %v1708 = vunpack.c.l.b16 %v1692
        %v1709 = vpack.c.b16 %v1706, %v1705
        %v1710 = vpack.c.b16 %v1708, %v1707
        %1713 = vmatprep.subr.bf16.mxu0 0
        %1714 = vmatpush1.bf16.msra.mxu0 0
        %1715 = vmatprep.subr.bf16.mxu0 0
        %1716 = vmatpush1.bf16.msra.mxu0 0
        %1717 = vmatprep.subr.bf16.mxu0 0
        %1718 = vmatpush1.bf16.msra.mxu0 0
        %1719 = vmatprep.subr.bf16.mxu0 0
        %1720 = vmatpush1.bf16.msra.mxu0 0
        %1721 = vmatprep.subr.bf16.mxu0 0
        %1722 = vmatpush1.bf16.msra.mxu0 0
        %1723 = vmatprep.subr.bf16.mxu0 0
        %1724 = vmatpush1.bf16.msra.mxu0 0
        %1725 = vmatprep.subr.bf16.mxu0 0
        %1726 = vmatpush1.bf16.msra.mxu0 %v1710
        %1727 = vmatprep.subr.bf16.mxu0 0
        %1728 = vmatpush1.bf16.msra.mxu0 %v1709
        %1729 = vmatprep.subr.bf16.mxu0 0
        %1730 = vmatpush2.bf16.msra.mxu0 0
        %1731 = vmatprep.subr.bf16.mxu0 0
        %1732 = vmatpush2.bf16.msra.mxu0 0
        %1733 = vmatprep.subr.bf16.mxu0 0
        %1734 = vmatpush2.bf16.msra.mxu0 0
        %1735 = vmatprep.subr.bf16.mxu0 0
        %1736 = vmatpush2.bf16.msra.mxu0 0
        %1737 = vmatprep.subr.bf16.mxu0 0
        %1738 = vmatpush2.bf16.msra.mxu0 0
        %1739 = vmatprep.subr.bf16.mxu0 0
        %1740 = vmatpush2.bf16.msra.mxu0 0
        %1741 = vmatprep.subr.bf16.mxu0 0
        %1742 = vmatpush2.bf16.msra.mxu0 0
        %1743 = vmatprep.subr.bf16.mxu0 0
        %1744 = vmatpush2.bf16.msra.mxu0 0
        %1745 = vmatprep.mubr.bf16.mxu0 0
        %1746 = vmatmul.mubr.bf16.gmra.mxu0 %v1177
        %v1747 = vpop.f32.mrf.mxu0
        %v1748 = vadd.f32 %v1699, %v1747
        %v1749 = vpop.f32.mrf.mxu0
        %v1750 = vpop.f32.mrf.mxu0
        %v1751 = vadd.f32 %v1699, %v1750
        %v1752 = vpop.f32.mrf.mxu0
        %1753 = vmatprep.mubr.bf16.mxu0 0
        %1754 = vmatmul.mubr.bf16.gmra.mxu0 %v1180
        %v1755 = vpop.f32.mrf.mxu0
        %v1756 = vadd.f32 %v1699, %v1755
        %v1757 = vpop.f32.mrf.mxu0
        %v1758 = vpop.f32.mrf.mxu0
        %v1759 = vpop.f32.mrf.mxu0
        %1760 = vdwg.mxu0
        %v1761 = vmul.f32 %v1602, 0.35355338
        %v1762 = vmul.f32 %v1605, 0.35355338
        %v1763 = vmul.f32 %v1610, 0.35355338
        %v1764 = vpack.c.bf16 %v1762, %v1761
        %v1765 = vpack.c.bf16 %v1763, %v1763
        %v1766 = vpack.c.bf16 %v1678, %v1675
        %v1767 = vpack.c.bf16 %v1683, %v1683
        %v1769 = vsel %vm1379, %v1764, 0
        %v1772 = vsel %vm1379, %v1765, 0
        %v1775 = vsel %vm1379, %v1766, 0
        %v1778 = vsel %vm1379, %v1767, 0
        %1780 = vmatprep.subr.bf16.mxu0 0
        %1781 = vmatpush1.bf16.xpose.msra.mxu0 0
        %1782 = vmatprep.subr.bf16.mxu0 0
        %1783 = vmatpush1.bf16.xpose.msra.mxu0 0
        %1784 = vmatprep.subr.bf16.mxu0 0
        %1785 = vmatpush1.bf16.xpose.msra.mxu0 0
        %1786 = vmatprep.subr.bf16.mxu0 0
        %1787 = vmatpush1.bf16.xpose.msra.mxu0 0
        %1788 = vmatprep.subr.bf16.mxu0 0
        %1789 = vmatpush1.bf16.xpose.msra.mxu0 0
        %1790 = vmatprep.subr.bf16.mxu0 0
        %1791 = vmatpush1.bf16.xpose.msra.mxu0 0
        %1792 = vmatprep.subr.bf16.mxu0 0
        %1793 = vmatpush1.bf16.xpose.msra.mxu0 %v1778
        %1794 = vmatprep.subr.bf16.mxu0 0
        %1795 = vmatpush1.bf16.xpose.msra.mxu0 %v1775
        %1796 = vmatprep.subr.bf16.mxu0 0
        %1797 = vmatpush2.bf16.xpose.msra.mxu0 0
        %1798 = vmatprep.subr.bf16.mxu0 0
        %1799 = vmatpush2.bf16.xpose.msra.mxu0 0
        %1800 = vmatprep.subr.bf16.mxu0 0
        %1801 = vmatpush2.bf16.xpose.msra.mxu0 0
        %1802 = vmatprep.subr.bf16.mxu0 0
        %1803 = vmatpush2.bf16.xpose.msra.mxu0 0
        %1804 = vmatprep.subr.bf16.mxu0 0
        %1805 = vmatpush2.bf16.xpose.msra.mxu0 0
        %1806 = vmatprep.subr.bf16.mxu0 0
        %1807 = vmatpush2.bf16.xpose.msra.mxu0 0
        %1808 = vmatprep.subr.bf16.mxu0 0
        %1809 = vmatpush2.bf16.xpose.msra.mxu0 0
        %1810 = vmatprep.subr.bf16.mxu0 0
        %1811 = vmatpush2.bf16.xpose.msra.mxu0 0
        %1812 = vmatprep.mubr.bf16.mxu0 0
        %1813 = vmatmul.mubr.bf16.gmra.mxu0 %v1769
        %v1814 = vpop.f32.mrf.mxu0
        %v1815 = vadd.f32 0.0, %v1814
        %v1816 = vpop.f32.mrf.mxu0
        %v1817 = vpop.f32.mrf.mxu0
        %v1818 = vadd.f32 0.0, %v1817
        %v1819 = vpop.f32.mrf.mxu0
        %1820 = vmatprep.mubr.bf16.mxu0 0
        %1821 = vmatmul.mubr.bf16.gmra.mxu0 %v1772
        %v1822 = vpop.f32.mrf.mxu0
        %v1823 = vadd.f32 0.0, %v1822
        %v1824 = vpop.f32.mrf.mxu0
        %v1825 = vpop.f32.mrf.mxu0
        %v1826 = vpop.f32.mrf.mxu0
        %1827 = vdwg.mxu0
        %v1828 = vsel %vm1440, %v1815, -inf
        %1829 = vmax.xlane.f32.xlu0 %v1828
        %v1830 = vpop.xlane.xlu0 %1829
        %v1831 = vsel %vm1440, %v1818, -inf
        %1832 = vmax.xlane.f32.xlu0 %v1831
        %v1833 = vpop.xlane.xlu0 %1832
        %v1834 = vsel %vm1447, %v1823, -inf
        %1835 = vmax.xlane.f32.xlu0 %v1834
        %v1836 = vpop.xlane.xlu0 %1835
        %v1837 = vsub.f32 %v1815, %v1830
        %v1838 = vsub.f32 %v1818, %v1833
        %v1839 = vsub.f32 %v1823, %v1836
        %v1840 = vmul.f32 %v1837, 1.442695
        %v1841 = vpow.pop %v1840
        %v1842 = vmul.f32 %v1838, 1.442695
        %v1843 = vpow.pop %v1842
        %v1844 = vmul.f32 %v1839, 1.442695
        %v1845 = vpow.pop %v1844
        %v1846 = vsel %vm1440, %v1841, 0.0
        %1847 = vadd.xlane.f32.xlu0 %v1846
        %v1848 = vpop.xlane.xlu0 %1847
        %v1849 = vsel %vm1440, %v1843, 0.0
        %1850 = vadd.xlane.f32.xlu0 %v1849
        %v1851 = vpop.xlane.xlu0 %1850
        %v1852 = vsel %vm1447, %v1845, 0.0
        %1853 = vadd.xlane.f32.xlu0 %v1852
        %v1854 = vpop.xlane.xlu0 %1853
        %v1855 = vrcp.pop %v1848
        %v1856 = vrcp.pop %v1851
        %v1857 = vrcp.pop %v1854
        %v1858 = vmul.f32 %v1841, %v1855
        %v1859 = vmul.f32 %v1843, %v1856
        %v1860 = vmul.f32 %v1845, %v1857
        %v1861 = vpack.c.bf16 %v1859, %v1858
        %v1862 = vpack.c.bf16 %v1860, %v1860
        %v1863 = vpack.c.bf16 %v1751, %v1748
        %v1864 = vpack.c.bf16 %v1756, %v1756
        %v1866 = vsel %vm1440, %v1861, 0
        %v1869 = vsel %vm1440, %v1862, 0
        %v1872 = vand.u32 %v1864, %v1487
        %1874 = vmatprep.subr.bf16.mxu0 0
        %1875 = vmatpush1.bf16.msra.mxu0 0
        %1876 = vmatprep.subr.bf16.mxu0 0
        %1877 = vmatpush1.bf16.msra.mxu0 0
        %1878 = vmatprep.subr.bf16.mxu0 0
        %1879 = vmatpush1.bf16.msra.mxu0 0
        %1880 = vmatprep.subr.bf16.mxu0 0
        %1881 = vmatpush1.bf16.msra.mxu0 0
        %1882 = vmatprep.subr.bf16.mxu0 0
        %1883 = vmatpush1.bf16.msra.mxu0 0
        %1884 = vmatprep.subr.bf16.mxu0 0
        %1885 = vmatpush1.bf16.msra.mxu0 0
        %1886 = vmatprep.subr.bf16.mxu0 0
        %1887 = vmatpush1.bf16.msra.mxu0 %v1872
        %1888 = vmatprep.subr.bf16.mxu0 0
        %1889 = vmatpush1.bf16.msra.mxu0 %v1863
        %1890 = vmatprep.subr.bf16.mxu0 0
        %1891 = vmatpush2.bf16.msra.mxu0 0
        %1892 = vmatprep.subr.bf16.mxu0 0
        %1893 = vmatpush2.bf16.msra.mxu0 0
        %1894 = vmatprep.subr.bf16.mxu0 0
        %1895 = vmatpush2.bf16.msra.mxu0 0
        %1896 = vmatprep.subr.bf16.mxu0 0
        %1897 = vmatpush2.bf16.msra.mxu0 0
        %1898 = vmatprep.subr.bf16.mxu0 0
        %1899 = vmatpush2.bf16.msra.mxu0 0
        %1900 = vmatprep.subr.bf16.mxu0 0
        %1901 = vmatpush2.bf16.msra.mxu0 0
        %1902 = vmatprep.subr.bf16.mxu0 0
        %1903 = vmatpush2.bf16.msra.mxu0 0
        %1904 = vmatprep.subr.bf16.mxu0 0
        %1905 = vmatpush2.bf16.msra.mxu0 0
        %1906 = vmatprep.mubr.bf16.mxu0 0
        %1907 = vmatmul.mubr.bf16.gmra.mxu0 %v1866
        %v1908 = vpop.f32.mrf.mxu0
        %v1909 = vadd.f32 0.0, %v1908
        %v1910 = vpop.f32.mrf.mxu0
        %v1911 = vpop.f32.mrf.mxu0
        %v1912 = vadd.f32 0.0, %v1911
        %v1913 = vpop.f32.mrf.mxu0
        %1914 = vmatprep.mubr.bf16.mxu0 0
        %1915 = vmatmul.mubr.bf16.gmra.mxu0 %v1869
        %v1916 = vpop.f32.mrf.mxu0
        %v1917 = vadd.f32 0.0, %v1916
        %v1918 = vpop.f32.mrf.mxu0
        %v1919 = vpop.f32.mrf.mxu0
        %v1920 = vpop.f32.mrf.mxu0
        %1921 = vdwg.mxu0
        %v1922 = vpack.c.bf16 %v1912, %v1909
        %v1923 = vpack.c.bf16 %v1917, %v1917
        %s1924 = scalar_lea.vmem %s963, 4
        %v1925 = vld [vmem:[%s1924] sm:$0xf]
        %v1927 = vsel %vm1379, %v1922, 0
        %v1930 = vsel %vm1379, %v1923, 0
        %vm1932 = vcmask 1043456
        %v1934 = vsel %vm1932, %v1925, 0
        %1936 = vmatprep.subr.bf16.mxu0 0
        %1937 = vmatpush1.bf16.msra.mxu0 0
        %1938 = vmatprep.subr.bf16.mxu0 0
        %1939 = vmatpush1.bf16.msra.mxu0 0
        %1940 = vmatprep.subr.bf16.mxu0 0
        %1941 = vmatpush1.bf16.msra.mxu0 0
        %1942 = vmatprep.subr.bf16.mxu0 0
        %1943 = vmatpush1.bf16.msra.mxu0 0
        %1944 = vmatprep.subr.bf16.mxu0 0
        %1945 = vmatpush1.bf16.msra.mxu0 0
        %1946 = vmatprep.subr.bf16.mxu0 0
        %1947 = vmatpush1.bf16.msra.mxu0 0
        %1948 = vmatprep.subr.bf16.mxu0 0
        %1949 = vmatpush1.bf16.msra.mxu0 0
        %1950 = vmatprep.subr.bf16.mxu0 0
        %1951 = vmatpush1.bf16.msra.mxu0 %v1934
        %1952 = vmatprep.subr.bf16.mxu0 0
        %1953 = vmatpush2.bf16.msra.mxu0 0
        %1954 = vmatprep.subr.bf16.mxu0 0
        %1955 = vmatpush2.bf16.msra.mxu0 0
        %1956 = vmatprep.subr.bf16.mxu0 0
        %1957 = vmatpush2.bf16.msra.mxu0 0
        %1958 = vmatprep.subr.bf16.mxu0 0
        %1959 = vmatpush2.bf16.msra.mxu0 0
        %1960 = vmatprep.subr.bf16.mxu0 0
        %1961 = vmatpush2.bf16.msra.mxu0 0
        %1962 = vmatprep.subr.bf16.mxu0 0
        %1963 = vmatpush2.bf16.msra.mxu0 0
        %1964 = vmatprep.subr.bf16.mxu0 0
        %1965 = vmatpush2.bf16.msra.mxu0 0
        %1966 = vmatprep.subr.bf16.mxu0 0
        %1967 = vmatpush2.bf16.msra.mxu0 0
        %1968 = vmatprep.mubr.bf16.mxu0 0
        %1969 = vmatmul.mubr.bf16.gmra.mxu0 %v1927
        %v1970 = vpop.f32.mrf.mxu0
        %v1971 = vadd.f32 0.0, %v1970
        %v1972 = vpop.f32.mrf.mxu0
        %v1973 = vpop.f32.mrf.mxu0
        %v1974 = vadd.f32 0.0, %v1973
        %v1975 = vpop.f32.mrf.mxu0
        %1976 = vmatprep.mubr.bf16.mxu0 0
        %1977 = vmatmul.mubr.bf16.gmra.mxu0 %v1930
        %v1978 = vpop.f32.mrf.mxu0
        %v1979 = vadd.f32 0.0, %v1978
        %v1980 = vpop.f32.mrf.mxu0
        %v1981 = vpop.f32.mrf.mxu0
        %v1982 = vpop.f32.mrf.mxu0
        %1983 = vdwg.mxu0
        %v1985 = vsel %vm1379, %v1539, 0
        %v1988 = vsel %vm1379, %v1540, 0
        %v1991 = vsel %vm1932, %v1541, 0
        %1993 = vmatprep.subr.bf16.mxu0 0
        %1994 = vmatpush1.bf16.msra.mxu0 0
        %1995 = vmatprep.subr.bf16.mxu0 0
        %1996 = vmatpush1.bf16.msra.mxu0 0
        %1997 = vmatprep.subr.bf16.mxu0 0
        %1998 = vmatpush1.bf16.msra.mxu0 0
        %1999 = vmatprep.subr.bf16.mxu0 0
        %2000 = vmatpush1.bf16.msra.mxu0 0
        %2001 = vmatprep.subr.bf16.mxu0 0
        %2002 = vmatpush1.bf16.msra.mxu0 0
        %2003 = vmatprep.subr.bf16.mxu0 0
        %2004 = vmatpush1.bf16.msra.mxu0 0
        %2005 = vmatprep.subr.bf16.mxu0 0
        %2006 = vmatpush1.bf16.msra.mxu0 0
        %2007 = vmatprep.subr.bf16.mxu0 0
        %2008 = vmatpush1.bf16.msra.mxu0 %v1991
        %2009 = vmatprep.subr.bf16.mxu0 0
        %2010 = vmatpush2.bf16.msra.mxu0 0
        %2011 = vmatprep.subr.bf16.mxu0 0
        %2012 = vmatpush2.bf16.msra.mxu0 0
        %2013 = vmatprep.subr.bf16.mxu0 0
        %2014 = vmatpush2.bf16.msra.mxu0 0
        %2015 = vmatprep.subr.bf16.mxu0 0
        %2016 = vmatpush2.bf16.msra.mxu0 0
        %2017 = vmatprep.subr.bf16.mxu0 0
        %2018 = vmatpush2.bf16.msra.mxu0 0
        %2019 = vmatprep.subr.bf16.mxu0 0
        %2020 = vmatpush2.bf16.msra.mxu0 0
        %2021 = vmatprep.subr.bf16.mxu0 0
        %2022 = vmatpush2.bf16.msra.mxu0 0
        %2023 = vmatprep.subr.bf16.mxu0 0
        %2024 = vmatpush2.bf16.msra.mxu0 0
        %2025 = vmatprep.mubr.bf16.mxu0 0
        %2026 = vmatmul.mubr.bf16.gmra.mxu0 %v1985
        %v2027 = vpop.f32.mrf.mxu0
        %v2028 = vadd.f32 %v1971, %v2027
        %v2029 = vpop.f32.mrf.mxu0
        %v2030 = vpop.f32.mrf.mxu0
        %v2031 = vadd.f32 %v1974, %v2030
        %v2032 = vpop.f32.mrf.mxu0
        %2033 = vmatprep.mubr.bf16.mxu0 0
        %2034 = vmatmul.mubr.bf16.gmra.mxu0 %v1988
        %v2035 = vpop.f32.mrf.mxu0
        %v2036 = vadd.f32 %v1979, %v2035
        %v2037 = vpop.f32.mrf.mxu0
        %v2038 = vpop.f32.mrf.mxu0
        %v2039 = vpop.f32.mrf.mxu0
        %2040 = vdwg.mxu0
        %s2041 = scalar_lea.vmem %s936, 32
        %v2042 = vld [vmem:[%s2041] sm:$0xf]
        %v2043 = vld [vmem:[%s2041 + $0x4] sm:$0xf]
        %v2044 = vld [vmem:[%s2041 + $0x8] sm:$0xf]
        %v2045 = vld [vmem:[%s2041 + $0xc] sm:$0xf]
        %s2046 = scalar_lea.vmem %s950, 2
        %v2047 = vld [vmem:[%s2046] sm:$0x1]
        %v2049 = vlaneseq
        %v2050 = vshrl.u32 %v2049, 7
        %v2051 = vsub.s32 0, %v2050
        %v2052 = vrot.slane %v2047, %v2051
        %v2058 = vunpack.c.l.b16 %v2042
        %v2059 = vunpack.c.l.b16 %v2043
        %v2060 = vunpack.c.l.b16 %v2044
        %v2061 = vunpack.c.l.b16 %v2045
        %v2062 = vpack.c.b16 %v2059, %v2058
        %v2063 = vpack.c.b16 %v2061, %v2060
        %2066 = vmatprep.subr.bf16.mxu0 0
        %2067 = vmatpush1.bf16.msra.mxu0 0
        %2068 = vmatprep.subr.bf16.mxu0 0
        %2069 = vmatpush1.bf16.msra.mxu0 0
        %2070 = vmatprep.subr.bf16.mxu0 0
        %2071 = vmatpush1.bf16.msra.mxu0 0
        %2072 = vmatprep.subr.bf16.mxu0 0
        %2073 = vmatpush1.bf16.msra.mxu0 0
        %2074 = vmatprep.subr.bf16.mxu0 0
        %2075 = vmatpush1.bf16.msra.mxu0 0
        %2076 = vmatprep.subr.bf16.mxu0 0
        %2077 = vmatpush1.bf16.msra.mxu0 0
        %2078 = vmatprep.subr.bf16.mxu0 0
        %2079 = vmatpush1.bf16.msra.mxu0 %v2063
        %2080 = vmatprep.subr.bf16.mxu0 0
        %2081 = vmatpush1.bf16.msra.mxu0 %v2062
        %2082 = vmatprep.subr.bf16.mxu0 0
        %2083 = vmatpush2.bf16.msra.mxu0 0
        %2084 = vmatprep.subr.bf16.mxu0 0
        %2085 = vmatpush2.bf16.msra.mxu0 0
        %2086 = vmatprep.subr.bf16.mxu0 0
        %2087 = vmatpush2.bf16.msra.mxu0 0
        %2088 = vmatprep.subr.bf16.mxu0 0
        %2089 = vmatpush2.bf16.msra.mxu0 0
        %2090 = vmatprep.subr.bf16.mxu0 0
        %2091 = vmatpush2.bf16.msra.mxu0 0
        %2092 = vmatprep.subr.bf16.mxu0 0
        %2093 = vmatpush2.bf16.msra.mxu0 0
        %2094 = vmatprep.subr.bf16.mxu0 0
        %2095 = vmatpush2.bf16.msra.mxu0 0
        %2096 = vmatprep.subr.bf16.mxu0 0
        %2097 = vmatpush2.bf16.msra.mxu0 0
        %2098 = vmatprep.mubr.bf16.mxu0 0
        %2099 = vmatmul.mubr.bf16.gmra.mxu0 %v1177
        %v2100 = vpop.f32.mrf.mxu0
        %v2101 = vadd.f32 %v2052, %v2100
        %v2102 = vpop.f32.mrf.mxu0
        %v2103 = vpop.f32.mrf.mxu0
        %v2104 = vadd.f32 %v2052, %v2103
        %v2105 = vpop.f32.mrf.mxu0
        %2106 = vmatprep.mubr.bf16.mxu0 0
        %2107 = vmatmul.mubr.bf16.gmra.mxu0 %v1180
        %v2108 = vpop.f32.mrf.mxu0
        %v2109 = vadd.f32 %v2052, %v2108
        %v2110 = vpop.f32.mrf.mxu0
        %v2111 = vpop.f32.mrf.mxu0
        %v2112 = vpop.f32.mrf.mxu0
        %2113 = vdwg.mxu0
        %s2114 = scalar_lea.vmem %s941, 32
        %v2115 = vld [vmem:[%s2114] sm:$0xf]
        %v2116 = vld [vmem:[%s2114 + $0x4] sm:$0xf]
        %v2117 = vld [vmem:[%s2114 + $0x8] sm:$0xf]
        %v2118 = vld [vmem:[%s2114 + $0xc] sm:$0xf]
        %s2119 = scalar_lea.vmem %s954, 2
        %v2120 = vld [vmem:[%s2119] sm:$0x1]
        %v2122 = vlaneseq
        %v2123 = vshrl.u32 %v2122, 7
        %v2124 = vsub.s32 0, %v2123
        %v2125 = vrot.slane %v2120, %v2124
        %v2131 = vunpack.c.l.b16 %v2115
        %v2132 = vunpack.c.l.b16 %v2116
        %v2133 = vunpack.c.l.b16 %v2117
        %v2134 = vunpack.c.l.b16 %v2118
        %v2135 = vpack.c.b16 %v2132, %v2131
        %v2136 = vpack.c.b16 %v2134, %v2133
        %2139 = vmatprep.subr.bf16.mxu0 0
        %2140 = vmatpush1.bf16.msra.mxu0 0
        %2141 = vmatprep.subr.bf16.mxu0 0
        %2142 = vmatpush1.bf16.msra.mxu0 0
        %2143 = vmatprep.subr.bf16.mxu0 0
        %2144 = vmatpush1.bf16.msra.mxu0 0
        %2145 = vmatprep.subr.bf16.mxu0 0
        %2146 = vmatpush1.bf16.msra.mxu0 0
        %2147 = vmatprep.subr.bf16.mxu0 0
        %2148 = vmatpush1.bf16.msra.mxu0 0
        %2149 = vmatprep.subr.bf16.mxu0 0
        %2150 = vmatpush1.bf16.msra.mxu0 0
        %2151 = vmatprep.subr.bf16.mxu0 0
        %2152 = vmatpush1.bf16.msra.mxu0 %v2136
        %2153 = vmatprep.subr.bf16.mxu0 0
        %2154 = vmatpush1.bf16.msra.mxu0 %v2135
        %2155 = vmatprep.subr.bf16.mxu0 0
        %2156 = vmatpush2.bf16.msra.mxu0 0
        %2157 = vmatprep.subr.bf16.mxu0 0
        %2158 = vmatpush2.bf16.msra.mxu0 0
        %2159 = vmatprep.subr.bf16.mxu0 0
        %2160 = vmatpush2.bf16.msra.mxu0 0
        %2161 = vmatprep.subr.bf16.mxu0 0
        %2162 = vmatpush2.bf16.msra.mxu0 0
        %2163 = vmatprep.subr.bf16.mxu0 0
        %2164 = vmatpush2.bf16.msra.mxu0 0
        %2165 = vmatprep.subr.bf16.mxu0 0
        %2166 = vmatpush2.bf16.msra.mxu0 0
        %2167 = vmatprep.subr.bf16.mxu0 0
        %2168 = vmatpush2.bf16.msra.mxu0 0
        %2169 = vmatprep.subr.bf16.mxu0 0
        %2170 = vmatpush2.bf16.msra.mxu0 0
        %2171 = vmatprep.mubr.bf16.mxu0 0
        %2172 = vmatmul.mubr.bf16.gmra.mxu0 %v1177
        %v2173 = vpop.f32.mrf.mxu0
        %v2174 = vadd.f32 %v2125, %v2173
        %v2175 = vpop.f32.mrf.mxu0
        %v2176 = vpop.f32.mrf.mxu0
        %v2177 = vadd.f32 %v2125, %v2176
        %v2178 = vpop.f32.mrf.mxu0
        %2179 = vmatprep.mubr.bf16.mxu0 0
        %2180 = vmatmul.mubr.bf16.gmra.mxu0 %v1180
        %v2181 = vpop.f32.mrf.mxu0
        %v2182 = vadd.f32 %v2125, %v2181
        %v2183 = vpop.f32.mrf.mxu0
        %v2184 = vpop.f32.mrf.mxu0
        %v2185 = vpop.f32.mrf.mxu0
        %2186 = vdwg.mxu0
        %s2187 = scalar_lea.vmem %s946, 32
        %v2188 = vld [vmem:[%s2187] sm:$0xf]
        %v2189 = vld [vmem:[%s2187 + $0x4] sm:$0xf]
        %v2190 = vld [vmem:[%s2187 + $0x8] sm:$0xf]
        %v2191 = vld [vmem:[%s2187 + $0xc] sm:$0xf]
        %s2192 = scalar_lea.vmem %s958, 2
        %v2193 = vld [vmem:[%s2192] sm:$0x1]
        %v2195 = vlaneseq
        %v2196 = vshrl.u32 %v2195, 7
        %v2197 = vsub.s32 0, %v2196
        %v2198 = vrot.slane %v2193, %v2197
        %v2204 = vunpack.c.l.b16 %v2188
        %v2205 = vunpack.c.l.b16 %v2189
        %v2206 = vunpack.c.l.b16 %v2190
        %v2207 = vunpack.c.l.b16 %v2191
        %v2208 = vpack.c.b16 %v2205, %v2204
        %v2209 = vpack.c.b16 %v2207, %v2206
        %2212 = vmatprep.subr.bf16.mxu0 0
        %2213 = vmatpush1.bf16.msra.mxu0 0
        %2214 = vmatprep.subr.bf16.mxu0 0
        %2215 = vmatpush1.bf16.msra.mxu0 0
        %2216 = vmatprep.subr.bf16.mxu0 0
        %2217 = vmatpush1.bf16.msra.mxu0 0
        %2218 = vmatprep.subr.bf16.mxu0 0
        %2219 = vmatpush1.bf16.msra.mxu0 0
        %2220 = vmatprep.subr.bf16.mxu0 0
        %2221 = vmatpush1.bf16.msra.mxu0 0
        %2222 = vmatprep.subr.bf16.mxu0 0
        %2223 = vmatpush1.bf16.msra.mxu0 0
        %2224 = vmatprep.subr.bf16.mxu0 0
        %2225 = vmatpush1.bf16.msra.mxu0 %v2209
        %2226 = vmatprep.subr.bf16.mxu0 0
        %2227 = vmatpush1.bf16.msra.mxu0 %v2208
        %2228 = vmatprep.subr.bf16.mxu0 0
        %2229 = vmatpush2.bf16.msra.mxu0 0
        %2230 = vmatprep.subr.bf16.mxu0 0
        %2231 = vmatpush2.bf16.msra.mxu0 0
        %2232 = vmatprep.subr.bf16.mxu0 0
        %2233 = vmatpush2.bf16.msra.mxu0 0
        %2234 = vmatprep.subr.bf16.mxu0 0
        %2235 = vmatpush2.bf16.msra.mxu0 0
        %2236 = vmatprep.subr.bf16.mxu0 0
        %2237 = vmatpush2.bf16.msra.mxu0 0
        %2238 = vmatprep.subr.bf16.mxu0 0
        %2239 = vmatpush2.bf16.msra.mxu0 0
        %2240 = vmatprep.subr.bf16.mxu0 0
        %2241 = vmatpush2.bf16.msra.mxu0 0
        %2242 = vmatprep.subr.bf16.mxu0 0
        %2243 = vmatpush2.bf16.msra.mxu0 0
        %2244 = vmatprep.mubr.bf16.mxu0 0
        %2245 = vmatmul.mubr.bf16.gmra.mxu0 %v1177
        %v2246 = vpop.f32.mrf.mxu0
        %v2247 = vadd.f32 %v2198, %v2246
        %v2248 = vpop.f32.mrf.mxu0
        %v2249 = vpop.f32.mrf.mxu0
        %v2250 = vadd.f32 %v2198, %v2249
        %v2251 = vpop.f32.mrf.mxu0
        %2252 = vmatprep.mubr.bf16.mxu0 0
        %2253 = vmatmul.mubr.bf16.gmra.mxu0 %v1180
        %v2254 = vpop.f32.mrf.mxu0
        %v2255 = vadd.f32 %v2198, %v2254
        %v2256 = vpop.f32.mrf.mxu0
        %v2257 = vpop.f32.mrf.mxu0
        %v2258 = vpop.f32.mrf.mxu0
        %2259 = vdwg.mxu0
        %v2260 = vmul.f32 %v2101, 0.35355338
        %v2261 = vmul.f32 %v2104, 0.35355338
        %v2262 = vmul.f32 %v2109, 0.35355338
        %v2263 = vpack.c.bf16 %v2261, %v2260
        %v2264 = vpack.c.bf16 %v2262, %v2262
        %v2265 = vpack.c.bf16 %v2177, %v2174
        %v2266 = vpack.c.bf16 %v2182, %v2182
        %v2268 = vsel %vm1379, %v2263, 0
        %v2271 = vsel %vm1379, %v2264, 0
        %v2274 = vsel %vm1379, %v2265, 0
        %v2277 = vsel %vm1379, %v2266, 0
        %2279 = vmatprep.subr.bf16.mxu0 0
        %2280 = vmatpush1.bf16.xpose.msra.mxu0 0
        %2281 = vmatprep.subr.bf16.mxu0 0
        %2282 = vmatpush1.bf16.xpose.msra.mxu0 0
        %2283 = vmatprep.subr.bf16.mxu0 0
        %2284 = vmatpush1.bf16.xpose.msra.mxu0 0
        %2285 = vmatprep.subr.bf16.mxu0 0
        %2286 = vmatpush1.bf16.xpose.msra.mxu0 0
        %2287 = vmatprep.subr.bf16.mxu0 0
        %2288 = vmatpush1.bf16.xpose.msra.mxu0 0
        %2289 = vmatprep.subr.bf16.mxu0 0
        %2290 = vmatpush1.bf16.xpose.msra.mxu0 0
        %2291 = vmatprep.subr.bf16.mxu0 0
        %2292 = vmatpush1.bf16.xpose.msra.mxu0 %v2277
        %2293 = vmatprep.subr.bf16.mxu0 0
        %2294 = vmatpush1.bf16.xpose.msra.mxu0 %v2274
        %2295 = vmatprep.subr.bf16.mxu0 0
        %2296 = vmatpush2.bf16.xpose.msra.mxu0 0
        %2297 = vmatprep.subr.bf16.mxu0 0
        %2298 = vmatpush2.bf16.xpose.msra.mxu0 0
        %2299 = vmatprep.subr.bf16.mxu0 0
        %2300 = vmatpush2.bf16.xpose.msra.mxu0 0
        %2301 = vmatprep.subr.bf16.mxu0 0
        %2302 = vmatpush2.bf16.xpose.msra.mxu0 0
        %2303 = vmatprep.subr.bf16.mxu0 0
        %2304 = vmatpush2.bf16.xpose.msra.mxu0 0
        %2305 = vmatprep.subr.bf16.mxu0 0
        %2306 = vmatpush2.bf16.xpose.msra.mxu0 0
        %2307 = vmatprep.subr.bf16.mxu0 0
        %2308 = vmatpush2.bf16.xpose.msra.mxu0 0
        %2309 = vmatprep.subr.bf16.mxu0 0
        %2310 = vmatpush2.bf16.xpose.msra.mxu0 0
        %2311 = vmatprep.mubr.bf16.mxu0 0
        %2312 = vmatmul.mubr.bf16.gmra.mxu0 %v2268
        %v2313 = vpop.f32.mrf.mxu0
        %v2314 = vadd.f32 0.0, %v2313
        %v2315 = vpop.f32.mrf.mxu0
        %v2316 = vpop.f32.mrf.mxu0
        %v2317 = vadd.f32 0.0, %v2316
        %v2318 = vpop.f32.mrf.mxu0
        %2319 = vmatprep.mubr.bf16.mxu0 0
        %2320 = vmatmul.mubr.bf16.gmra.mxu0 %v2271
        %v2321 = vpop.f32.mrf.mxu0
        %v2322 = vadd.f32 0.0, %v2321
        %v2323 = vpop.f32.mrf.mxu0
        %v2324 = vpop.f32.mrf.mxu0
        %v2325 = vpop.f32.mrf.mxu0
        %2326 = vdwg.mxu0
        %v2327 = vsel %vm1440, %v2314, -inf
        %2328 = vmax.xlane.f32.xlu0 %v2327
        %v2329 = vpop.xlane.xlu0 %2328
        %v2330 = vsel %vm1440, %v2317, -inf
        %2331 = vmax.xlane.f32.xlu0 %v2330
        %v2332 = vpop.xlane.xlu0 %2331
        %v2333 = vsel %vm1447, %v2322, -inf
        %2334 = vmax.xlane.f32.xlu0 %v2333
        %v2335 = vpop.xlane.xlu0 %2334
        %v2336 = vsub.f32 %v2314, %v2329
        %v2337 = vsub.f32 %v2317, %v2332
        %v2338 = vsub.f32 %v2322, %v2335
        %v2339 = vmul.f32 %v2336, 1.442695
        %v2340 = vpow.pop %v2339
        %v2341 = vmul.f32 %v2337, 1.442695
        %v2342 = vpow.pop %v2341
        %v2343 = vmul.f32 %v2338, 1.442695
        %v2344 = vpow.pop %v2343
        %v2345 = vsel %vm1440, %v2340, 0.0
        %2346 = vadd.xlane.f32.xlu0 %v2345
        %v2347 = vpop.xlane.xlu0 %2346
        %v2348 = vsel %vm1440, %v2342, 0.0
        %2349 = vadd.xlane.f32.xlu0 %v2348
        %v2350 = vpop.xlane.xlu0 %2349
        %v2351 = vsel %vm1447, %v2344, 0.0
        %2352 = vadd.xlane.f32.xlu0 %v2351
        %v2353 = vpop.xlane.xlu0 %2352
        %v2354 = vrcp.pop %v2347
        %v2355 = vrcp.pop %v2350
        %v2356 = vrcp.pop %v2353
        %v2357 = vmul.f32 %v2340, %v2354
        %v2358 = vmul.f32 %v2342, %v2355
        %v2359 = vmul.f32 %v2344, %v2356
        %v2360 = vpack.c.bf16 %v2358, %v2357
        %v2361 = vpack.c.bf16 %v2359, %v2359
        %v2362 = vpack.c.bf16 %v2250, %v2247
        %v2363 = vpack.c.bf16 %v2255, %v2255
        %v2365 = vsel %vm1440, %v2360, 0
        %v2368 = vsel %vm1440, %v2361, 0
        %v2371 = vand.u32 %v2363, %v1487
        %2373 = vmatprep.subr.bf16.mxu0 0
        %2374 = vmatpush1.bf16.msra.mxu0 0
        %2375 = vmatprep.subr.bf16.mxu0 0
        %2376 = vmatpush1.bf16.msra.mxu0 0
        %2377 = vmatprep.subr.bf16.mxu0 0
        %2378 = vmatpush1.bf16.msra.mxu0 0
        %2379 = vmatprep.subr.bf16.mxu0 0
        %2380 = vmatpush1.bf16.msra.mxu0 0
        %2381 = vmatprep.subr.bf16.mxu0 0
        %2382 = vmatpush1.bf16.msra.mxu0 0
        %2383 = vmatprep.subr.bf16.mxu0 0
        %2384 = vmatpush1.bf16.msra.mxu0 0
        %2385 = vmatprep.subr.bf16.mxu0 0
        %2386 = vmatpush1.bf16.msra.mxu0 %v2371
        %2387 = vmatprep.subr.bf16.mxu0 0
        %2388 = vmatpush1.bf16.msra.mxu0 %v2362
        %2389 = vmatprep.subr.bf16.mxu0 0
        %2390 = vmatpush2.bf16.msra.mxu0 0
        %2391 = vmatprep.subr.bf16.mxu0 0
        %2392 = vmatpush2.bf16.msra.mxu0 0
        %2393 = vmatprep.subr.bf16.mxu0 0
        %2394 = vmatpush2.bf16.msra.mxu0 0
        %2395 = vmatprep.subr.bf16.mxu0 0
        %2396 = vmatpush2.bf16.msra.mxu0 0
        %2397 = vmatprep.subr.bf16.mxu0 0
        %2398 = vmatpush2.bf16.msra.mxu0 0
        %2399 = vmatprep.subr.bf16.mxu0 0
        %2400 = vmatpush2.bf16.msra.mxu0 0
        %2401 = vmatprep.subr.bf16.mxu0 0
        %2402 = vmatpush2.bf16.msra.mxu0 0
        %2403 = vmatprep.subr.bf16.mxu0 0
        %2404 = vmatpush2.bf16.msra.mxu0 0
        %2405 = vmatprep.mubr.bf16.mxu0 0
        %2406 = vmatmul.mubr.bf16.gmra.mxu0 %v2365
        %v2407 = vpop.f32.mrf.mxu0
        %v2408 = vadd.f32 0.0, %v2407
        %v2409 = vpop.f32.mrf.mxu0
        %v2410 = vpop.f32.mrf.mxu0
        %v2411 = vadd.f32 0.0, %v2410
        %v2412 = vpop.f32.mrf.mxu0
        %2413 = vmatprep.mubr.bf16.mxu0 0
        %2414 = vmatmul.mubr.bf16.gmra.mxu0 %v2368
        %v2415 = vpop.f32.mrf.mxu0
        %v2416 = vadd.f32 0.0, %v2415
        %v2417 = vpop.f32.mrf.mxu0
        %v2418 = vpop.f32.mrf.mxu0
        %v2419 = vpop.f32.mrf.mxu0
        %2420 = vdwg.mxu0
        %v2421 = vpack.c.bf16 %v2411, %v2408
        %v2422 = vpack.c.bf16 %v2416, %v2416
        %s2423 = scalar_lea.vmem %s963, 8
        %v2424 = vld [vmem:[%s2423] sm:$0xf]
        %v2426 = vsel %vm1379, %v2421, 0
        %v2429 = vsel %vm1379, %v2422, 0
        %v2432 = vsel %vm1932, %v2424, 0
        %2434 = vmatprep.subr.bf16.mxu0 0
        %2435 = vmatpush1.bf16.msra.mxu0 0
        %2436 = vmatprep.subr.bf16.mxu0 0
        %2437 = vmatpush1.bf16.msra.mxu0 0
        %2438 = vmatprep.subr.bf16.mxu0 0
        %2439 = vmatpush1.bf16.msra.mxu0 0
        %2440 = vmatprep.subr.bf16.mxu0 0
        %2441 = vmatpush1.bf16.msra.mxu0 0
        %2442 = vmatprep.subr.bf16.mxu0 0
        %2443 = vmatpush1.bf16.msra.mxu0 0
        %2444 = vmatprep.subr.bf16.mxu0 0
        %2445 = vmatpush1.bf16.msra.mxu0 0
        %2446 = vmatprep.subr.bf16.mxu0 0
        %2447 = vmatpush1.bf16.msra.mxu0 0
        %2448 = vmatprep.subr.bf16.mxu0 0
        %2449 = vmatpush1.bf16.msra.mxu0 %v2432
        %2450 = vmatprep.subr.bf16.mxu0 0
        %2451 = vmatpush2.bf16.msra.mxu0 0
        %2452 = vmatprep.subr.bf16.mxu0 0
        %2453 = vmatpush2.bf16.msra.mxu0 0
        %2454 = vmatprep.subr.bf16.mxu0 0
        %2455 = vmatpush2.bf16.msra.mxu0 0
        %2456 = vmatprep.subr.bf16.mxu0 0
        %2457 = vmatpush2.bf16.msra.mxu0 0
        %2458 = vmatprep.subr.bf16.mxu0 0
        %2459 = vmatpush2.bf16.msra.mxu0 0
        %2460 = vmatprep.subr.bf16.mxu0 0
        %2461 = vmatpush2.bf16.msra.mxu0 0
        %2462 = vmatprep.subr.bf16.mxu0 0
        %2463 = vmatpush2.bf16.msra.mxu0 0
        %2464 = vmatprep.subr.bf16.mxu0 0
        %2465 = vmatpush2.bf16.msra.mxu0 0
        %2466 = vmatprep.mubr.bf16.mxu0 0
        %2467 = vmatmul.mubr.bf16.gmra.mxu0 %v2426
        %v2468 = vpop.f32.mrf.mxu0
        %v2469 = vadd.f32 0.0, %v2468
        %v2470 = vpop.f32.mrf.mxu0
        %v2471 = vpop.f32.mrf.mxu0
        %v2472 = vadd.f32 0.0, %v2471
        %v2473 = vpop.f32.mrf.mxu0
        %2474 = vmatprep.mubr.bf16.mxu0 0
        %2475 = vmatmul.mubr.bf16.gmra.mxu0 %v2429
        %v2476 = vpop.f32.mrf.mxu0
        %v2477 = vadd.f32 0.0, %v2476
        %v2478 = vpop.f32.mrf.mxu0
        %v2479 = vpop.f32.mrf.mxu0
        %v2480 = vpop.f32.mrf.mxu0
        %2481 = vdwg.mxu0
        %v2482 = vadd.f32 %v2028, %v2469
        %v2483 = vadd.f32 %v2031, %v2472
        %v2484 = vadd.f32 %v2036, %v2477
        %s2485 = scalar_lea.vmem %s936, 48
        %v2486 = vld [vmem:[%s2485] sm:$0xf]
        %v2487 = vld [vmem:[%s2485 + $0x4] sm:$0xf]
        %v2488 = vld [vmem:[%s2485 + $0x8] sm:$0xf]
        %v2489 = vld [vmem:[%s2485 + $0xc] sm:$0xf]
        %s2490 = scalar_lea.vmem %s950, 3
        %v2491 = vld [vmem:[%s2490] sm:$0x1]
        %v2493 = vlaneseq
        %v2494 = vshrl.u32 %v2493, 7
        %v2495 = vsub.s32 0, %v2494
        %v2496 = vrot.slane %v2491, %v2495
        %v2502 = vunpack.c.l.b16 %v2486
        %v2503 = vunpack.c.l.b16 %v2487
        %v2504 = vunpack.c.l.b16 %v2488
        %v2505 = vunpack.c.l.b16 %v2489
        %v2506 = vpack.c.b16 %v2503, %v2502
        %v2507 = vpack.c.b16 %v2505, %v2504
        %2510 = vmatprep.subr.bf16.mxu0 0
        %2511 = vmatpush1.bf16.msra.mxu0 0
        %2512 = vmatprep.subr.bf16.mxu0 0
        %2513 = vmatpush1.bf16.msra.mxu0 0
        %2514 = vmatprep.subr.bf16.mxu0 0
        %2515 = vmatpush1.bf16.msra.mxu0 0
        %2516 = vmatprep.subr.bf16.mxu0 0
        %2517 = vmatpush1.bf16.msra.mxu0 0
        %2518 = vmatprep.subr.bf16.mxu0 0
        %2519 = vmatpush1.bf16.msra.mxu0 0
        %2520 = vmatprep.subr.bf16.mxu0 0
        %2521 = vmatpush1.bf16.msra.mxu0 0
        %2522 = vmatprep.subr.bf16.mxu0 0
        %2523 = vmatpush1.bf16.msra.mxu0 %v2507
        %2524 = vmatprep.subr.bf16.mxu0 0
        %2525 = vmatpush1.bf16.msra.mxu0 %v2506
        %2526 = vmatprep.subr.bf16.mxu0 0
        %2527 = vmatpush2.bf16.msra.mxu0 0
        %2528 = vmatprep.subr.bf16.mxu0 0
        %2529 = vmatpush2.bf16.msra.mxu0 0
        %2530 = vmatprep.subr.bf16.mxu0 0
        %2531 = vmatpush2.bf16.msra.mxu0 0
        %2532 = vmatprep.subr.bf16.mxu0 0
        %2533 = vmatpush2.bf16.msra.mxu0 0
        %2534 = vmatprep.subr.bf16.mxu0 0
        %2535 = vmatpush2.bf16.msra.mxu0 0
        %2536 = vmatprep.subr.bf16.mxu0 0
        %2537 = vmatpush2.bf16.msra.mxu0 0
        %2538 = vmatprep.subr.bf16.mxu0 0
        %2539 = vmatpush2.bf16.msra.mxu0 0
        %2540 = vmatprep.subr.bf16.mxu0 0
        %2541 = vmatpush2.bf16.msra.mxu0 0
        %2542 = vmatprep.mubr.bf16.mxu0 0
        %2543 = vmatmul.mubr.bf16.gmra.mxu0 %v1177
        %v2544 = vpop.f32.mrf.mxu0
        %v2545 = vadd.f32 %v2496, %v2544
        %v2546 = vpop.f32.mrf.mxu0
        %v2547 = vpop.f32.mrf.mxu0
        %v2548 = vadd.f32 %v2496, %v2547
        %v2549 = vpop.f32.mrf.mxu0
        %2550 = vmatprep.mubr.bf16.mxu0 0
        %2551 = vmatmul.mubr.bf16.gmra.mxu0 %v1180
        %v2552 = vpop.f32.mrf.mxu0
        %v2553 = vadd.f32 %v2496, %v2552
        %v2554 = vpop.f32.mrf.mxu0
        %v2555 = vpop.f32.mrf.mxu0
        %v2556 = vpop.f32.mrf.mxu0
        %2557 = vdwg.mxu0
        %s2558 = scalar_lea.vmem %s941, 48
        %v2559 = vld [vmem:[%s2558] sm:$0xf]
        %v2560 = vld [vmem:[%s2558 + $0x4] sm:$0xf]
        %v2561 = vld [vmem:[%s2558 + $0x8] sm:$0xf]
        %v2562 = vld [vmem:[%s2558 + $0xc] sm:$0xf]
        %s2563 = scalar_lea.vmem %s954, 3
        %v2564 = vld [vmem:[%s2563] sm:$0x1]
        %v2566 = vlaneseq
        %v2567 = vshrl.u32 %v2566, 7
        %v2568 = vsub.s32 0, %v2567
        %v2569 = vrot.slane %v2564, %v2568
        %v2575 = vunpack.c.l.b16 %v2559
        %v2576 = vunpack.c.l.b16 %v2560
        %v2577 = vunpack.c.l.b16 %v2561
        %v2578 = vunpack.c.l.b16 %v2562
        %v2579 = vpack.c.b16 %v2576, %v2575
        %v2580 = vpack.c.b16 %v2578, %v2577
        %2583 = vmatprep.subr.bf16.mxu0 0
        %2584 = vmatpush1.bf16.msra.mxu0 0
        %2585 = vmatprep.subr.bf16.mxu0 0
        %2586 = vmatpush1.bf16.msra.mxu0 0
        %2587 = vmatprep.subr.bf16.mxu0 0
        %2588 = vmatpush1.bf16.msra.mxu0 0
        %2589 = vmatprep.subr.bf16.mxu0 0
        %2590 = vmatpush1.bf16.msra.mxu0 0
        %2591 = vmatprep.subr.bf16.mxu0 0
        %2592 = vmatpush1.bf16.msra.mxu0 0
        %2593 = vmatprep.subr.bf16.mxu0 0
        %2594 = vmatpush1.bf16.msra.mxu0 0
        %2595 = vmatprep.subr.bf16.mxu0 0
        %2596 = vmatpush1.bf16.msra.mxu0 %v2580
        %2597 = vmatprep.subr.bf16.mxu0 0
        %2598 = vmatpush1.bf16.msra.mxu0 %v2579
        %2599 = vmatprep.subr.bf16.mxu0 0
        %2600 = vmatpush2.bf16.msra.mxu0 0
        %2601 = vmatprep.subr.bf16.mxu0 0
        %2602 = vmatpush2.bf16.msra.mxu0 0
        %2603 = vmatprep.subr.bf16.mxu0 0
        %2604 = vmatpush2.bf16.msra.mxu0 0
        %2605 = vmatprep.subr.bf16.mxu0 0
        %2606 = vmatpush2.bf16.msra.mxu0 0
        %2607 = vmatprep.subr.bf16.mxu0 0
        %2608 = vmatpush2.bf16.msra.mxu0 0
        %2609 = vmatprep.subr.bf16.mxu0 0
        %2610 = vmatpush2.bf16.msra.mxu0 0
        %2611 = vmatprep.subr.bf16.mxu0 0
        %2612 = vmatpush2.bf16.msra.mxu0 0
        %2613 = vmatprep.subr.bf16.mxu0 0
        %2614 = vmatpush2.bf16.msra.mxu0 0
        %2615 = vmatprep.mubr.bf16.mxu0 0
        %2616 = vmatmul.mubr.bf16.gmra.mxu0 %v1177
        %v2617 = vpop.f32.mrf.mxu0
        %v2618 = vadd.f32 %v2569, %v2617
        %v2619 = vpop.f32.mrf.mxu0
        %v2620 = vpop.f32.mrf.mxu0
        %v2621 = vadd.f32 %v2569, %v2620
        %v2622 = vpop.f32.mrf.mxu0
        %2623 = vmatprep.mubr.bf16.mxu0 0
        %2624 = vmatmul.mubr.bf16.gmra.mxu0 %v1180
        %v2625 = vpop.f32.mrf.mxu0
        %v2626 = vadd.f32 %v2569, %v2625
        %v2627 = vpop.f32.mrf.mxu0
        %v2628 = vpop.f32.mrf.mxu0
        %v2629 = vpop.f32.mrf.mxu0
        %2630 = vdwg.mxu0
        %s2631 = scalar_lea.vmem %s946, 48
        %v2632 = vld [vmem:[%s2631] sm:$0xf]
        %v2633 = vld [vmem:[%s2631 + $0x4] sm:$0xf]
        %v2634 = vld [vmem:[%s2631 + $0x8] sm:$0xf]
        %v2635 = vld [vmem:[%s2631 + $0xc] sm:$0xf]
        %s2636 = scalar_lea.vmem %s958, 3
        %v2637 = vld [vmem:[%s2636] sm:$0x1]
        %v2639 = vlaneseq
        %v2640 = vshrl.u32 %v2639, 7
        %v2641 = vsub.s32 0, %v2640
        %v2642 = vrot.slane %v2637, %v2641
        %v2648 = vunpack.c.l.b16 %v2632
        %v2649 = vunpack.c.l.b16 %v2633
        %v2650 = vunpack.c.l.b16 %v2634
        %v2651 = vunpack.c.l.b16 %v2635
        %v2652 = vpack.c.b16 %v2649, %v2648
        %v2653 = vpack.c.b16 %v2651, %v2650
        %2656 = vmatprep.subr.bf16.mxu0 0
        %2657 = vmatpush1.bf16.msra.mxu0 0
        %2658 = vmatprep.subr.bf16.mxu0 0
        %2659 = vmatpush1.bf16.msra.mxu0 0
        %2660 = vmatprep.subr.bf16.mxu0 0
        %2661 = vmatpush1.bf16.msra.mxu0 0
        %2662 = vmatprep.subr.bf16.mxu0 0
        %2663 = vmatpush1.bf16.msra.mxu0 0
        %2664 = vmatprep.subr.bf16.mxu0 0
        %2665 = vmatpush1.bf16.msra.mxu0 0
        %2666 = vmatprep.subr.bf16.mxu0 0
        %2667 = vmatpush1.bf16.msra.mxu0 0
        %2668 = vmatprep.subr.bf16.mxu0 0
        %2669 = vmatpush1.bf16.msra.mxu0 %v2653
        %2670 = vmatprep.subr.bf16.mxu0 0
        %2671 = vmatpush1.bf16.msra.mxu0 %v2652
        %2672 = vmatprep.subr.bf16.mxu0 0
        %2673 = vmatpush2.bf16.msra.mxu0 0
        %2674 = vmatprep.subr.bf16.mxu0 0
        %2675 = vmatpush2.bf16.msra.mxu0 0
        %2676 = vmatprep.subr.bf16.mxu0 0
        %2677 = vmatpush2.bf16.msra.mxu0 0
        %2678 = vmatprep.subr.bf16.mxu0 0
        %2679 = vmatpush2.bf16.msra.mxu0 0
        %2680 = vmatprep.subr.bf16.mxu0 0
        %2681 = vmatpush2.bf16.msra.mxu0 0
        %2682 = vmatprep.subr.bf16.mxu0 0
        %2683 = vmatpush2.bf16.msra.mxu0 0
        %2684 = vmatprep.subr.bf16.mxu0 0
        %2685 = vmatpush2.bf16.msra.mxu0 0
        %2686 = vmatprep.subr.bf16.mxu0 0
        %2687 = vmatpush2.bf16.msra.mxu0 0
        %2688 = vmatprep.mubr.bf16.mxu0 0
        %2689 = vmatmul.mubr.bf16.gmra.mxu0 %v1177
        %v2690 = vpop.f32.mrf.mxu0
        %v2691 = vadd.f32 %v2642, %v2690
        %v2692 = vpop.f32.mrf.mxu0
        %v2693 = vpop.f32.mrf.mxu0
        %v2694 = vadd.f32 %v2642, %v2693
        %v2695 = vpop.f32.mrf.mxu0
        %2696 = vmatprep.mubr.bf16.mxu0 0
        %2697 = vmatmul.mubr.bf16.gmra.mxu0 %v1180
        %v2698 = vpop.f32.mrf.mxu0
        %v2699 = vadd.f32 %v2642, %v2698
        %v2700 = vpop.f32.mrf.mxu0
        %v2701 = vpop.f32.mrf.mxu0
        %v2702 = vpop.f32.mrf.mxu0
        %2703 = vdwg.mxu0
        %v2704 = vmul.f32 %v2545, 0.35355338
        %v2705 = vmul.f32 %v2548, 0.35355338
        %v2706 = vmul.f32 %v2553, 0.35355338
        %v2707 = vpack.c.bf16 %v2705, %v2704
        %v2708 = vpack.c.bf16 %v2706, %v2706
        %v2709 = vpack.c.bf16 %v2621, %v2618
        %v2710 = vpack.c.bf16 %v2626, %v2626
        %v2712 = vsel %vm1379, %v2707, 0
        %v2715 = vsel %vm1379, %v2708, 0
        %v2718 = vsel %vm1379, %v2709, 0
        %v2721 = vsel %vm1379, %v2710, 0
        %2723 = vmatprep.subr.bf16.mxu0 0
        %2724 = vmatpush1.bf16.xpose.msra.mxu0 0
        %2725 = vmatprep.subr.bf16.mxu0 0
        %2726 = vmatpush1.bf16.xpose.msra.mxu0 0
        %2727 = vmatprep.subr.bf16.mxu0 0
        %2728 = vmatpush1.bf16.xpose.msra.mxu0 0
        %2729 = vmatprep.subr.bf16.mxu0 0
        %2730 = vmatpush1.bf16.xpose.msra.mxu0 0
        %2731 = vmatprep.subr.bf16.mxu0 0
        %2732 = vmatpush1.bf16.xpose.msra.mxu0 0
        %2733 = vmatprep.subr.bf16.mxu0 0
        %2734 = vmatpush1.bf16.xpose.msra.mxu0 0
        %2735 = vmatprep.subr.bf16.mxu0 0
        %2736 = vmatpush1.bf16.xpose.msra.mxu0 %v2721
        %2737 = vmatprep.subr.bf16.mxu0 0
        %2738 = vmatpush1.bf16.xpose.msra.mxu0 %v2718
        %2739 = vmatprep.subr.bf16.mxu0 0
        %2740 = vmatpush2.bf16.xpose.msra.mxu0 0
        %2741 = vmatprep.subr.bf16.mxu0 0
        %2742 = vmatpush2.bf16.xpose.msra.mxu0 0
        %2743 = vmatprep.subr.bf16.mxu0 0
        %2744 = vmatpush2.bf16.xpose.msra.mxu0 0
        %2745 = vmatprep.subr.bf16.mxu0 0
        %2746 = vmatpush2.bf16.xpose.msra.mxu0 0
        %2747 = vmatprep.subr.bf16.mxu0 0
        %2748 = vmatpush2.bf16.xpose.msra.mxu0 0
        %2749 = vmatprep.subr.bf16.mxu0 0
        %2750 = vmatpush2.bf16.xpose.msra.mxu0 0
        %2751 = vmatprep.subr.bf16.mxu0 0
        %2752 = vmatpush2.bf16.xpose.msra.mxu0 0
        %2753 = vmatprep.subr.bf16.mxu0 0
        %2754 = vmatpush2.bf16.xpose.msra.mxu0 0
        %2755 = vmatprep.mubr.bf16.mxu0 0
        %2756 = vmatmul.mubr.bf16.gmra.mxu0 %v2712
        %v2757 = vpop.f32.mrf.mxu0
        %v2758 = vadd.f32 0.0, %v2757
        %v2759 = vpop.f32.mrf.mxu0
        %v2760 = vpop.f32.mrf.mxu0
        %v2761 = vadd.f32 0.0, %v2760
        %v2762 = vpop.f32.mrf.mxu0
        %2763 = vmatprep.mubr.bf16.mxu0 0
        %2764 = vmatmul.mubr.bf16.gmra.mxu0 %v2715
        %v2765 = vpop.f32.mrf.mxu0
        %v2766 = vadd.f32 0.0, %v2765
        %v2767 = vpop.f32.mrf.mxu0
        %v2768 = vpop.f32.mrf.mxu0
        %v2769 = vpop.f32.mrf.mxu0
        %2770 = vdwg.mxu0
        %v2771 = vsel %vm1440, %v2758, -inf
        %2772 = vmax.xlane.f32.xlu0 %v2771
        %v2773 = vpop.xlane.xlu0 %2772
        %v2774 = vsel %vm1440, %v2761, -inf
        %2775 = vmax.xlane.f32.xlu0 %v2774
        %v2776 = vpop.xlane.xlu0 %2775
        %v2777 = vsel %vm1447, %v2766, -inf
        %2778 = vmax.xlane.f32.xlu0 %v2777
        %v2779 = vpop.xlane.xlu0 %2778
        %v2780 = vsub.f32 %v2758, %v2773
        %v2781 = vsub.f32 %v2761, %v2776
        %v2782 = vsub.f32 %v2766, %v2779
        %v2783 = vmul.f32 %v2780, 1.442695
        %v2784 = vpow.pop %v2783
        %v2785 = vmul.f32 %v2781, 1.442695
        %v2786 = vpow.pop %v2785
        %v2787 = vmul.f32 %v2782, 1.442695
        %v2788 = vpow.pop %v2787
        %v2789 = vsel %vm1440, %v2784, 0.0
        %2790 = vadd.xlane.f32.xlu0 %v2789
        %v2791 = vpop.xlane.xlu0 %2790
        %v2792 = vsel %vm1440, %v2786, 0.0
        %2793 = vadd.xlane.f32.xlu0 %v2792
        %v2794 = vpop.xlane.xlu0 %2793
        %v2795 = vsel %vm1447, %v2788, 0.0
        %2796 = vadd.xlane.f32.xlu0 %v2795
        %v2797 = vpop.xlane.xlu0 %2796
        %v2798 = vrcp.pop %v2791
        %v2799 = vrcp.pop %v2794
        %v2800 = vrcp.pop %v2797
        %v2801 = vmul.f32 %v2784, %v2798
        %v2802 = vmul.f32 %v2786, %v2799
        %v2803 = vmul.f32 %v2788, %v2800
        %v2804 = vpack.c.bf16 %v2802, %v2801
        %v2805 = vpack.c.bf16 %v2803, %v2803
        %v2806 = vpack.c.bf16 %v2694, %v2691
        %v2807 = vpack.c.bf16 %v2699, %v2699
        %v2809 = vsel %vm1440, %v2804, 0
        %v2812 = vsel %vm1440, %v2805, 0
        %v2815 = vand.u32 %v2807, %v1487
        %2817 = vmatprep.subr.bf16.mxu0 0
        %2818 = vmatpush1.bf16.msra.mxu0 0
        %2819 = vmatprep.subr.bf16.mxu0 0
        %2820 = vmatpush1.bf16.msra.mxu0 0
        %2821 = vmatprep.subr.bf16.mxu0 0
        %2822 = vmatpush1.bf16.msra.mxu0 0
        %2823 = vmatprep.subr.bf16.mxu0 0
        %2824 = vmatpush1.bf16.msra.mxu0 0
        %2825 = vmatprep.subr.bf16.mxu0 0
        %2826 = vmatpush1.bf16.msra.mxu0 0
        %2827 = vmatprep.subr.bf16.mxu0 0
        %2828 = vmatpush1.bf16.msra.mxu0 0
        %2829 = vmatprep.subr.bf16.mxu0 0
        %2830 = vmatpush1.bf16.msra.mxu0 %v2815
        %2831 = vmatprep.subr.bf16.mxu0 0
        %2832 = vmatpush1.bf16.msra.mxu0 %v2806
        %2833 = vmatprep.subr.bf16.mxu0 0
        %2834 = vmatpush2.bf16.msra.mxu0 0
        %2835 = vmatprep.subr.bf16.mxu0 0
        %2836 = vmatpush2.bf16.msra.mxu0 0
        %2837 = vmatprep.subr.bf16.mxu0 0
        %2838 = vmatpush2.bf16.msra.mxu0 0
        %2839 = vmatprep.subr.bf16.mxu0 0
        %2840 = vmatpush2.bf16.msra.mxu0 0
        %2841 = vmatprep.subr.bf16.mxu0 0
        %2842 = vmatpush2.bf16.msra.mxu0 0
        %2843 = vmatprep.subr.bf16.mxu0 0
        %2844 = vmatpush2.bf16.msra.mxu0 0
        %2845 = vmatprep.subr.bf16.mxu0 0
        %2846 = vmatpush2.bf16.msra.mxu0 0
        %2847 = vmatprep.subr.bf16.mxu0 0
        %2848 = vmatpush2.bf16.msra.mxu0 0
        %2849 = vmatprep.mubr.bf16.mxu0 0
        %2850 = vmatmul.mubr.bf16.gmra.mxu0 %v2809
        %v2851 = vpop.f32.mrf.mxu0
        %v2852 = vadd.f32 0.0, %v2851
        %v2853 = vpop.f32.mrf.mxu0
        %v2854 = vpop.f32.mrf.mxu0
        %v2855 = vadd.f32 0.0, %v2854
        %v2856 = vpop.f32.mrf.mxu0
        %2857 = vmatprep.mubr.bf16.mxu0 0
        %2858 = vmatmul.mubr.bf16.gmra.mxu0 %v2812
        %v2859 = vpop.f32.mrf.mxu0
        %v2860 = vadd.f32 0.0, %v2859
        %v2861 = vpop.f32.mrf.mxu0
        %v2862 = vpop.f32.mrf.mxu0
        %v2863 = vpop.f32.mrf.mxu0
        %2864 = vdwg.mxu0
        %v2865 = vpack.c.bf16 %v2855, %v2852
        %v2866 = vpack.c.bf16 %v2860, %v2860
        %s2867 = scalar_lea.vmem %s963, 12
        %v2868 = vld [vmem:[%s2867] sm:$0xf]
        %v2870 = vsel %vm1379, %v2865, 0
        %v2873 = vsel %vm1379, %v2866, 0
        %v2876 = vsel %vm1932, %v2868, 0
        %2878 = vmatprep.subr.bf16.mxu0 0
        %2879 = vmatpush1.bf16.msra.mxu0 0
        %2880 = vmatprep.subr.bf16.mxu0 0
        %2881 = vmatpush1.bf16.msra.mxu0 0
        %2882 = vmatprep.subr.bf16.mxu0 0
        %2883 = vmatpush1.bf16.msra.mxu0 0
        %2884 = vmatprep.subr.bf16.mxu0 0
        %2885 = vmatpush1.bf16.msra.mxu0 0
        %2886 = vmatprep.subr.bf16.mxu0 0
        %2887 = vmatpush1.bf16.msra.mxu0 0
        %2888 = vmatprep.subr.bf16.mxu0 0
        %2889 = vmatpush1.bf16.msra.mxu0 0
        %2890 = vmatprep.subr.bf16.mxu0 0
        %2891 = vmatpush1.bf16.msra.mxu0 0
        %2892 = vmatprep.subr.bf16.mxu0 0
        %2893 = vmatpush1.bf16.msra.mxu0 %v2876
        %2894 = vmatprep.subr.bf16.mxu0 0
        %2895 = vmatpush2.bf16.msra.mxu0 0
        %2896 = vmatprep.subr.bf16.mxu0 0
        %2897 = vmatpush2.bf16.msra.mxu0 0
        %2898 = vmatprep.subr.bf16.mxu0 0
        %2899 = vmatpush2.bf16.msra.mxu0 0
        %2900 = vmatprep.subr.bf16.mxu0 0
        %2901 = vmatpush2.bf16.msra.mxu0 0
        %2902 = vmatprep.subr.bf16.mxu0 0
        %2903 = vmatpush2.bf16.msra.mxu0 0
        %2904 = vmatprep.subr.bf16.mxu0 0
        %2905 = vmatpush2.bf16.msra.mxu0 0
        %2906 = vmatprep.subr.bf16.mxu0 0
        %2907 = vmatpush2.bf16.msra.mxu0 0
        %2908 = vmatprep.subr.bf16.mxu0 0
        %2909 = vmatpush2.bf16.msra.mxu0 0
        %2910 = vmatprep.mubr.bf16.mxu0 0
        %2911 = vmatmul.mubr.bf16.gmra.mxu0 %v2870
        %v2912 = vpop.f32.mrf.mxu0
        %v2913 = vadd.f32 0.0, %v2912
        %v2914 = vpop.f32.mrf.mxu0
        %v2915 = vpop.f32.mrf.mxu0
        %v2916 = vadd.f32 0.0, %v2915
        %v2917 = vpop.f32.mrf.mxu0
        %2918 = vmatprep.mubr.bf16.mxu0 0
        %2919 = vmatmul.mubr.bf16.gmra.mxu0 %v2873
        %v2920 = vpop.f32.mrf.mxu0
        %v2921 = vadd.f32 0.0, %v2920
        %v2922 = vpop.f32.mrf.mxu0
        %v2923 = vpop.f32.mrf.mxu0
        %v2924 = vpop.f32.mrf.mxu0
        %2925 = vdwg.mxu0
        %v2926 = vadd.f32 %v2482, %v2913
        %v2927 = vadd.f32 %v2483, %v2916
        %v2928 = vadd.f32 %v2484, %v2921
        %v2929 = vld [vmem:[%s966] sm:$0x1]
        %v2931 = vlaneseq
        %v2932 = vshrl.u32 %v2931, 7
        %v2933 = vsub.s32 0, %v2932
        %v2934 = vrot.slane %v2929, %v2933
        %v2936 = vadd.f32 %v2926, %v2934
        %v2937 = vadd.f32 %v2927, %v2934
        %v2938 = vadd.f32 %v2928, %v2934
        %v2939 = vld [vmem:[%s969] sm:$0x1]
        %v2940 = vld [vmem:[%s972] sm:$0x1]
        %v2941 = vsel %vm1091, %v2936, 0.0
        %2942 = vadd.xlane.f32.xlu0 %v2941
        %v2943 = vpop.xlane.xlu0 %2942
        %v2944 = vsel %vm1091, %v2937, 0.0
        %2945 = vadd.xlane.f32.xlu0 %v2944
        %v2946 = vpop.xlane.xlu0 %2945
        %v2947 = vsel %vm1098, %v2938, 0.0
        %2948 = vadd.xlane.f32.xlu0 %v2947
        %v2949 = vpop.xlane.xlu0 %2948
        %v2950 = vmul.f32 %v2943, %v1102
        %v2951 = vmul.f32 %v2946, %v1102
        %v2952 = vmul.f32 %v2949, %v1102
        %v2953 = vsub.f32 %v2936, %v2950
        %v2954 = vsub.f32 %v2937, %v2951
        %v2955 = vsub.f32 %v2938, %v2952
        %v2956 = vmul.f32 %v2953, %v2953
        %v2957 = vmul.f32 %v2954, %v2954
        %v2958 = vmul.f32 %v2955, %v2955
        %v2959 = vsel %vm1091, %v2956, 0.0
        %2960 = vadd.xlane.f32.xlu0 %v2959
        %v2961 = vpop.xlane.xlu0 %2960
        %v2962 = vsel %vm1091, %v2957, 0.0
        %2963 = vadd.xlane.f32.xlu0 %v2962
        %v2964 = vpop.xlane.xlu0 %2963
        %v2965 = vsel %vm1098, %v2958, 0.0
        %2966 = vadd.xlane.f32.xlu0 %v2965
        %v2967 = vpop.xlane.xlu0 %2966
        %v2968 = vmul.f32 %v2961, %v1102
        %v2969 = vmul.f32 %v2964, %v1102
        %v2970 = vmul.f32 %v2967, %v1102
        %v2971 = vadd.f32 %v2968, 1e-05
        %v2972 = vadd.f32 %v2969, 1e-05
        %v2973 = vadd.f32 %v2970, 1e-05
        %v2974 = vrsqrt.pop %v2971
        %v2975 = vrsqrt.pop %v2972
        %v2976 = vrsqrt.pop %v2973
        %v2977 = vmul.f32 %v2953, %v2974
        %v2978 = vmul.f32 %v2954, %v2975
        %v2979 = vmul.f32 %v2955, %v2976
        %v2981 = vlaneseq
        %v2982 = vshrl.u32 %v2981, 7
        %v2983 = vsub.s32 0, %v2982
        %v2984 = vrot.slane %v2939, %v2983
        %v2986 = vmul.f32 %v2977, %v2984
        %v2987 = vmul.f32 %v2978, %v2984
        %v2988 = vmul.f32 %v2979, %v2984
        %v2990 = vlaneseq
        %v2991 = vshrl.u32 %v2990, 7
        %v2992 = vsub.s32 0, %v2991
        %v2993 = vrot.slane %v2940, %v2992
        %v2995 = vadd.f32 %v2986, %v2993
        %v2996 = vadd.f32 %v2987, %v2993
        %v2997 = vadd.f32 %v2988, %v2993
        %v2998 = vpack.c.bf16 %v2996, %v2995
        %v2999 = vpack.c.bf16 %v2997, %v2997
        %v3000 = vld [vmem:[%s977] sm:$0xf]
        %v3001 = vld [vmem:[%s977 + $0x4] sm:$0xf]
        %v3002 = vld [vmem:[%s977 + $0x8] sm:$0xf]
        %v3003 = vld [vmem:[%s977 + $0xc] sm:$0xf]
        %v3004 = vld [vmem:[%s980] sm:$0x1]
        %v3006 = vlaneseq
        %v3007 = vshrl.u32 %v3006, 7
        %v3008 = vsub.s32 0, %v3007
        %v3009 = vrot.slane %v3004, %v3008
        %v3015 = vunpack.c.l.b16 %v3000
        %v3016 = vunpack.c.l.b16 %v3001
        %v3017 = vunpack.c.l.b16 %v3002
        %v3018 = vunpack.c.l.b16 %v3003
        %v3019 = vpack.c.b16 %v3016, %v3015
        %v3020 = vpack.c.b16 %v3018, %v3017
        %v3024 = vsel %vm1091, %v2998, 0
        %v3027 = vsel %vm1091, %v2999, 0
        %3029 = vmatprep.subr.bf16.mxu0 0
        %3030 = vmatpush1.bf16.msra.mxu0 0
        %3031 = vmatprep.subr.bf16.mxu0 0
        %3032 = vmatpush1.bf16.msra.mxu0 0
        %3033 = vmatprep.subr.bf16.mxu0 0
        %3034 = vmatpush1.bf16.msra.mxu0 0
        %3035 = vmatprep.subr.bf16.mxu0 0
        %3036 = vmatpush1.bf16.msra.mxu0 0
        %3037 = vmatprep.subr.bf16.mxu0 0
        %3038 = vmatpush1.bf16.msra.mxu0 0
        %3039 = vmatprep.subr.bf16.mxu0 0
        %3040 = vmatpush1.bf16.msra.mxu0 0
        %3041 = vmatprep.subr.bf16.mxu0 0
        %3042 = vmatpush1.bf16.msra.mxu0 %v3020
        %3043 = vmatprep.subr.bf16.mxu0 0
        %3044 = vmatpush1.bf16.msra.mxu0 %v3019
        %3045 = vmatprep.subr.bf16.mxu0 0
        %3046 = vmatpush2.bf16.msra.mxu0 0
        %3047 = vmatprep.subr.bf16.mxu0 0
        %3048 = vmatpush2.bf16.msra.mxu0 0
        %3049 = vmatprep.subr.bf16.mxu0 0
        %3050 = vmatpush2.bf16.msra.mxu0 0
        %3051 = vmatprep.subr.bf16.mxu0 0
        %3052 = vmatpush2.bf16.msra.mxu0 0
        %3053 = vmatprep.subr.bf16.mxu0 0
        %3054 = vmatpush2.bf16.msra.mxu0 0
        %3055 = vmatprep.subr.bf16.mxu0 0
        %3056 = vmatpush2.bf16.msra.mxu0 0
        %3057 = vmatprep.subr.bf16.mxu0 0
        %3058 = vmatpush2.bf16.msra.mxu0 0
        %3059 = vmatprep.subr.bf16.mxu0 0
        %3060 = vmatpush2.bf16.msra.mxu0 0
        %3061 = vmatprep.mubr.bf16.mxu0 0
        %3062 = vmatmul.mubr.bf16.gmra.mxu0 %v3024
        %v3063 = vpop.f32.mrf.mxu0
        %v3064 = vadd.f32 %v3009, %v3063
        %v3065 = vpop.f32.mrf.mxu0
        %v3066 = vpop.f32.mrf.mxu0
        %v3067 = vadd.f32 %v3009, %v3066
        %v3068 = vpop.f32.mrf.mxu0
        %3069 = vmatprep.mubr.bf16.mxu0 0
        %3070 = vmatmul.mubr.bf16.gmra.mxu0 %v3027
        %v3071 = vpop.f32.mrf.mxu0
        %v3072 = vadd.f32 %v3009, %v3071
        %v3073 = vpop.f32.mrf.mxu0
        %v3074 = vpop.f32.mrf.mxu0
        %v3075 = vpop.f32.mrf.mxu0
        %3076 = vdwg.mxu0
        %v3077 = vmul.f32 %v3064, 0.5
        %v3078 = vmul.f32 %v3067, 0.5
        %v3079 = vmul.f32 %v3072, 0.5
        %v3080 = vmul.f32 %v3064, 0.044715
        %v3081 = vmul.f32 %v3067, 0.044715
        %v3082 = vmul.f32 %v3072, 0.044715
        %v3083 = vmul.f32 %v3080, %v3064
        %v3084 = vmul.f32 %v3081, %v3067
        %v3085 = vmul.f32 %v3082, %v3072
        %v3086 = vmul.f32 %v3083, %v3064
        %v3087 = vmul.f32 %v3084, %v3067
        %v3088 = vmul.f32 %v3085, %v3072
        %v3089 = vadd.f32 %v3064, %v3086
        %v3090 = vadd.f32 %v3067, %v3087
        %v3091 = vadd.f32 %v3072, %v3088
        %v3092 = vmul.f32 %v3089, 0.7978846
        %v3093 = vmul.f32 %v3090, 0.7978846
        %v3094 = vmul.f32 %v3091, 0.7978846
        %v3095 = vtanh.pop %v3092
        %v3096 = vtanh.pop %v3093
        %v3097 = vtanh.pop %v3094
        %v3098 = vadd.f32 %v3095, 1.0
        %v3099 = vadd.f32 %v3096, 1.0
        %v3100 = vadd.f32 %v3097, 1.0
        %v3101 = vmul.f32 %v3077, %v3098
        %v3102 = vmul.f32 %v3078, %v3099
        %v3103 = vmul.f32 %v3079, %v3100
        %v3104 = vpack.c.bf16 %v3102, %v3101
        %v3105 = vpack.c.bf16 %v3103, %v3103
        %v3106 = vld [vmem:[%s985] sm:$0xf]
        %v3107 = vld [vmem:[%s985 + $0x4] sm:$0xf]
        %v3108 = vld [vmem:[%s985 + $0x8] sm:$0xf]
        %v3109 = vld [vmem:[%s985 + $0xc] sm:$0xf]
        %v3110 = vld [vmem:[%s985 + $0x10] sm:$0xf]
        %v3111 = vld [vmem:[%s985 + $0x14] sm:$0xf]
        %v3112 = vld [vmem:[%s985 + $0x18] sm:$0xf]
        %v3113 = vld [vmem:[%s985 + $0x1c] sm:$0xf]
        %v3114 = vld [vmem:[%s988] sm:$0x1]
        %v3116 = vlaneseq
        %v3117 = vshrl.u32 %v3116, 7
        %v3118 = vsub.s32 0, %v3117
        %v3119 = vrot.slane %v3114, %v3118
        %v3129 = vunpack.c.l.b16 %v3106
        %v3130 = vunpack.c.l.b16 %v3107
        %v3131 = vunpack.c.l.b16 %v3108
        %v3132 = vunpack.c.l.b16 %v3109
        %v3133 = vunpack.c.l.b16 %v3110
        %v3134 = vunpack.c.l.b16 %v3111
        %v3135 = vunpack.c.l.b16 %v3112
        %v3136 = vunpack.c.l.b16 %v3113
        %v3137 = vpack.c.b16 %v3130, %v3129
        %v3138 = vpack.c.b16 %v3132, %v3131
        %v3139 = vpack.c.b16 %v3134, %v3133
        %v3140 = vpack.c.b16 %v3136, %v3135
        %vm3145 = vcmask 523264
        %v3147 = vsel %vm3145, %v3104, 0
        %v3150 = vsel %vm3145, %v3105, 0
        %3152 = vmatprep.subr.bf16.mxu0 0
        %3153 = vmatpush1.bf16.msra.mxu0 0
        %3154 = vmatprep.subr.bf16.mxu0 0
        %3155 = vmatpush1.bf16.msra.mxu0 0
        %3156 = vmatprep.subr.bf16.mxu0 0
        %3157 = vmatpush1.bf16.msra.mxu0 0
        %3158 = vmatprep.subr.bf16.mxu0 0
        %3159 = vmatpush1.bf16.msra.mxu0 0
        %3160 = vmatprep.subr.bf16.mxu0 0
        %3161 = vmatpush1.bf16.msra.mxu0 %v3140
        %3162 = vmatprep.subr.bf16.mxu0 0
        %3163 = vmatpush1.bf16.msra.mxu0 %v3139
        %3164 = vmatprep.subr.bf16.mxu0 0
        %3165 = vmatpush1.bf16.msra.mxu0 %v3138
        %3166 = vmatprep.subr.bf16.mxu0 0
        %3167 = vmatpush1.bf16.msra.mxu0 %v3137
        %3168 = vmatprep.subr.bf16.mxu0 0
        %3169 = vmatpush2.bf16.msra.mxu0 0
        %3170 = vmatprep.subr.bf16.mxu0 0
        %3171 = vmatpush2.bf16.msra.mxu0 0
        %3172 = vmatprep.subr.bf16.mxu0 0
        %3173 = vmatpush2.bf16.msra.mxu0 0
        %3174 = vmatprep.subr.bf16.mxu0 0
        %3175 = vmatpush2.bf16.msra.mxu0 0
        %3176 = vmatprep.subr.bf16.mxu0 0
        %3177 = vmatpush2.bf16.msra.mxu0 0
        %3178 = vmatprep.subr.bf16.mxu0 0
        %3179 = vmatpush2.bf16.msra.mxu0 0
        %3180 = vmatprep.subr.bf16.mxu0 0
        %3181 = vmatpush2.bf16.msra.mxu0 0
        %3182 = vmatprep.subr.bf16.mxu0 0
        %3183 = vmatpush2.bf16.msra.mxu0 0
        %3184 = vmatprep.mubr.bf16.mxu0 0
        %3185 = vmatmul.mubr.bf16.gmra.mxu0 %v3147
        %v3186 = vpop.f32.mrf.mxu0
        %v3187 = vadd.f32 %v3119, %v3186
        %v3188 = vpop.f32.mrf.mxu0
        %v3189 = vpop.f32.mrf.mxu0
        %v3190 = vadd.f32 %v3119, %v3189
        %v3191 = vpop.f32.mrf.mxu0
        %3192 = vmatprep.mubr.bf16.mxu0 0
        %3193 = vmatmul.mubr.bf16.gmra.mxu0 %v3150
        %v3194 = vpop.f32.mrf.mxu0
        %v3195 = vadd.f32 %v3119, %v3194
        %v3196 = vpop.f32.mrf.mxu0
        %v3197 = vpop.f32.mrf.mxu0
        %v3198 = vpop.f32.mrf.mxu0
        %3199 = vdwg.mxu0
        %3200 = vst.msk [vmem:[#allocation2] sm:$0xff] %vm1091, %v3187
        %3201 = vst.msk [vmem:[#allocation2 + $0x8] sm:$0xff] %vm1091, %v3190
        %3202 = vst.msk [vmem:[#allocation2 + $0x10] sm:$0x1] %vm1098, %v3195
        %p3203 = scmp.eq.s32.totalorder %s42, 1
        // Predicated region
        $region117: #{vit_forward.1} parent=111 // pred_check
          %p3204 = pneg %p3203
        $region118: #{vit_forward.1} parent=111 // pred_check_branch
          %3206 = sbr.rel (%p3204) target = $region120
        $region119: #{vit_forward.1} parent=111 // pred_region
          %v3207 = vld [vmem:[#allocation2] sm:$0x1]
          %v3208 = vld [vmem:[%s19] sm:$0x1]
          %v3209 = vld [vmem:[%s20] sm:$0x1]
          %v3210 = vsel %vm1098, %v3207, 0.0
          %3211 = vadd.xlane.f32.xlu0 %v3210
          %v3212 = vpop.xlane.xlu0 %3211
          %v3213 = vmul.f32 %v3212, %v1102
          %v3214 = vsub.f32 %v3207, %v3213
          %v3215 = vmul.f32 %v3214, %v3214
          %v3216 = vsel %vm1098, %v3215, 0.0
          %3217 = vadd.xlane.f32.xlu0 %v3216
          %v3218 = vpop.xlane.xlu0 %3217
          %v3219 = vmul.f32 %v3218, %v1102
          %v3220 = vadd.f32 %v3219, 1e-05
          %v3221 = vrsqrt.pop %v3220
          %v3222 = vmul.f32 %v3214, %v3221
          %v3223 = vmul.f32 %v3222, %v3208
          %v3224 = vadd.f32 %v3223, %v3209
          %v3225 = vpack.c.bf16 %v3224, %v3224
          %v3226 = vld [vmem:[%s21] sm:$0xf]
          %v3227 = vld [vmem:[%s21 + $0x4] sm:$0xf]
          %v3228 = vld [vmem:[%s21 + $0x8] sm:$0xf]
          %v3229 = vld [vmem:[%s21 + $0xc] sm:$0xf]
          %v3230 = vld [vmem:[%s22] sm:$0x1]
          %v3235 = vunpack.c.l.b16 %v3226
          %v3236 = vunpack.c.l.b16 %v3227
          %v3237 = vunpack.c.l.b16 %v3228
          %v3238 = vunpack.c.l.b16 %v3229
          %v3239 = vpack.c.b16 %v3236, %v3235
          %v3240 = vpack.c.b16 %v3238, %v3237
          %v3244 = vsel %vm1091, %v3225, 0
          %3246 = vmatprep.subr.bf16.mxu0 0
          %3247 = vmatpush1.bf16.msra.mxu0 0
          %3248 = vmatprep.subr.bf16.mxu0 0
          %3249 = vmatpush1.bf16.msra.mxu0 0
          %3250 = vmatprep.subr.bf16.mxu0 0
          %3251 = vmatpush1.bf16.msra.mxu0 0
          %3252 = vmatprep.subr.bf16.mxu0 0
          %3253 = vmatpush1.bf16.msra.mxu0 0
          %3254 = vmatprep.subr.bf16.mxu0 0
          %3255 = vmatpush1.bf16.msra.mxu0 0
          %3256 = vmatprep.subr.bf16.mxu0 0
          %3257 = vmatpush1.bf16.msra.mxu0 0
          %3258 = vmatprep.subr.bf16.mxu0 0
          %3259 = vmatpush1.bf16.msra.mxu0 %v3240
          %3260 = vmatprep.subr.bf16.mxu0 0
          %3261 = vmatpush1.bf16.msra.mxu0 %v3239
          %3262 = vmatprep.subr.bf16.mxu0 0
          %3263 = vmatpush2.bf16.msra.mxu0 0
          %3264 = vmatprep.subr.bf16.mxu0 0
          %3265 = vmatpush2.bf16.msra.mxu0 0
          %3266 = vmatprep.subr.bf16.mxu0 0
          %3267 = vmatpush2.bf16.msra.mxu0 0
          %3268 = vmatprep.subr.bf16.mxu0 0
          %3269 = vmatpush2.bf16.msra.mxu0 0
          %3270 = vmatprep.subr.bf16.mxu0 0
          %3271 = vmatpush2.bf16.msra.mxu0 0
          %3272 = vmatprep.subr.bf16.mxu0 0
          %3273 = vmatpush2.bf16.msra.mxu0 0
          %3274 = vmatprep.subr.bf16.mxu0 0
          %3275 = vmatpush2.bf16.msra.mxu0 0
          %3276 = vmatprep.subr.bf16.mxu0 0
          %3277 = vmatpush2.bf16.msra.mxu0 0
          %3278 = vmatprep.mubr.bf16.mxu0 0
          %3279 = vmatmul.mubr.bf16.gmra.mxu0 %v3244
          %v3280 = vpop.f32.mrf.mxu0
          %v3281 = vadd.f32 %v3230, %v3280
          %v3282 = vpop.f32.mrf.mxu0
          %v3283 = vpop.f32.mrf.mxu0
          %v3284 = vpop.f32.mrf.mxu0
          %3285 = vdwg.mxu0
          %vm3286 = vcmask 73728
          %3287 = vst.msk [vmem:[%s920] sm:$0x1] %vm3286, %v3281
        $region120: #{vit_forward.1} parent=111 // pred_fallthru
          _
        %s3288 = sand.u32 %s625, 1
        %s3289 = scalar_lea.sflag [#allocation4], %s3288
        %s3290 = sand.u32 %s625, 1
        %s3291 = scalar_lea.vmem [#allocation3], %s3290
        // Predicated region
        $region121: #{vit_forward.1} parent=111 // pred_check
          %p3292 = pneg %p635
        $region122: #{vit_forward.1} parent=111 // pred_check_branch
          %3294 = sbr.rel (%p3292) target = $region124
        $region123: #{vit_forward.1} parent=111 // pred_region
          %s3296 = ssub.s32 16, 16
          %3297 = vsyncadd %s3289, %s3296
          %s3298 = smul.addr %s41, 16
          %s3299 = scalar_lea.hbm %s23, %s3298
          %s3301 = sshll.u32 %s3291, 4
          %s3302 = int_to_ptr.vmem [resolvable:$true] %s3301
          %3304 = dma.vmem_to_hbm [thread:$0]  %s3302, 16, %s3299, %s3289
        $region124: #{vit_forward.1} parent=111 // pred_fallthru
          _
      $region112: #{vit_forward.1} parent=5 // pred_fallthru
        _
      %p3305 = scmp.le.s32.totalorder 2, %s32
      // Predicated region
      $region125: #{vit_forward.1} parent=5 // pred_check
        %p3306 = pneg %p3305
      $region126: #{vit_forward.1} parent=5 // pred_check_branch
        %3308 = sbr.rel (%p3306) target = $region128
      $region127: #{vit_forward.1} parent=5 // pred_region
        %s3309 = ssub.s32 %s32, 2
        // Predicated region
        $region129: #{vit_forward.1} parent=127 // pred_check
          %p3310 = pneg %p641
        $region130: #{vit_forward.1} parent=127 // pred_check_branch
          %3312 = sbr.rel (%p3310) target = $region132
        $region131: #{vit_forward.1} parent=127 // pred_region
          %s3313 = sand.u32 %s626, 1
          %s3314 = scalar_lea.sflag [#allocation4], %s3313
          %s3315 = sand.u32 %s626, 1
          %s3316 = scalar_lea.vmem [#allocation3], %s3315
          %3317 = dma.done %s3314, 16
        $region132: #{vit_forward.1} parent=127 // pred_fallthru
          _
      $region128: #{vit_forward.1} parent=5 // pred_fallthru
        _
    $region6: #{vit_forward.1} parent=1 // loop_footer
      %s36 = sadd.s32 1, %s32
    $region7: #{vit_forward.1} parent=1 // loop_footer_branch
      %31 = sbr.rel target = $region3
    $region8: #{vit_forward.1} parent=1 // loop_exit
      _
    %3318 = vsyncpa [#allocation4], 1
    %s3319 = scalar_lea.sflag [#allocation4], 1
    %3320 = vsyncpa %s3319, 1

</llo_original>
